<compile_context>
chip_gen: v6e
topology: v6e:2x2x1
jax: 0.10.0
libtpu: 0.0.40
codegen_flags: <defaults>
</compile_context>

<pallas_src>
import math
import functools

import jax
import jax.numpy as jnp
from jax import lax
from jax.experimental import pallas as pl
from jax.experimental.pallas import tpu as pltpu


# ---------------------------------------------------------------------------
# The single fused kernel.
#   inputs : x (B,T,F), slab_a (rows, 8H), slab_b (rows, 16H)
#   output : (B, out_dim)
#   scratch: ybuf (T*B, 2H)  -- lstm_1 layer-0 outputs in iteration order
# ---------------------------------------------------------------------------
def _predictor_kernel(x_ref, a_ref, b_ref, out_ref, ybuf,
                      *, T, B, F, H, offs_a, offs_b):
    f32 = jnp.float32
    H2, H4, H6, H8, H12, H16 = 2 * H, 4 * H, 6 * H, 8 * H, 12 * H, 16 * H
    dot = lambda l, r: jnp.dot(l, r, preferred_element_type=f32)

    # ---- unpack weights from the two slabs (static row/col slices, one-time) ----
    oa = offs_a
    w1    = a_ref[oa["w1"]:oa["w1"] + 2 * F, :]        # (2F, 8H)  layer-0 input proj
    whh1  = a_ref[oa["whh1"]:oa["whh1"] + H2, :]       # (2H, 8H)  layer-0 recurrent
    w3    = a_ref[oa["w3"]:oa["w3"] + H2, :]           # (2H, 8H)  lstm_2 layer 0
    w4    = a_ref[oa["w4"]:oa["w4"] + H2, :]           # (2H, 8H)  lstm_2 layer 1
    whh2  = a_ref[oa["whh2"]:oa["whh2"] + H, 0:H4]     # (H, 4H)   layer-1 fwd recurrent
    fcw1  = a_ref[oa["fcw1"]:oa["fcw1"] + H2, 0:H]     # (2H, H)
    fcw2  = a_ref[oa["fcw2"]:oa["fcw2"] + H, 0:1]      # (H, 1)
    b1    = a_ref[oa["b1"]:oa["b1"] + 1, :]            # (1, 8H)
    b3    = a_ref[oa["b3"]:oa["b3"] + 1, :]            # (1, 8H)
    b4    = a_ref[oa["b4"]:oa["b4"] + 1, :]            # (1, 8H)
    fcb1  = a_ref[oa["fcb1"]:oa["fcb1"] + 1, 0:H]      # (1, H)
    fcb2  = a_ref[oa["fcb2"]:oa["fcb2"] + 1, 0:1]      # (1, 1)
    w2ext = b_ref[offs_b["w2"]:offs_b["w2"] + H2, :]   # (2H, 16H) layer-1 input proj
    b2ext = b_ref[offs_b["b2"]:offs_b["b2"] + 1, :]    # (1, 16H)

    # ---- time-major input assembly folded into the kernel (one-time shuffle) ----
    x3 = x_ref[...]                                    # (B, T, F)
    xs = [x3[:, t, :] for t in range(T)]               # T static slices, (B, F) each
    x_pair = jnp.concatenate(
        [jnp.concatenate(xs, axis=0),                  # row-block t : x(t)
         jnp.concatenate(xs[::-1], axis=0)], axis=1)   # row-block t : x(T-1-t)
    # (T*B, 2F)

    # ---- lstm_1 layer 0: fwd + bwd fused (interleaved gate columns) ----
    g1 = dot(x_pair, w1) + b1                          # (T*B, 8H) hoisted input proj
    h = jnp.zeros((B, H2), f32)                        # [h_f | h_b]
    c = jnp.zeros((B, H2), f32)
    for s in range(T):                                 # unrolled recurrence
        g = g1[s * B:(s + 1) * B, :] + dot(h, whh1)    # (B, 8H)
        sg = jax.nn.sigmoid(g)                         # full-width: 1 EUP pass
        tg = jnp.tanh(g)                               # full-width: 1 EUP pass
        c = sg[:, H2:H4] * c + sg[:, 0:H2] * tg[:, H4:H6]
        h = sg[:, H6:H8] * jnp.tanh(c)
        ybuf[s * B:(s + 1) * B, :] = h                 # [h_f(s) | h_b(T-1-s)]

    # ---- lstm_1 layer 1: fwd full recurrence; bwd only needs its first step ----
    # One hoisted matmul produces, per row-block s:
    #   cols [0:4H]   = h_f(s)      @ w2f_ih[:H] + b2f
    #   cols [4H:8H]  = h_b(T-1-s)  @ w2f_ih[H:]
    #   cols [8H:12H] = h_f(s)      @ w2b_ih[:H] + b2b
    #   cols [12H:16H]= h_b(T-1-s)  @ w2b_ih[H:]
    p = dot(ybuf[...], w2ext) + b2ext                  # (T*B, 16H)
    h2 = jnp.zeros((B, H), f32)
    c2 = jnp.zeros((B, H), f32)
    for t in range(T):
        g = (p[t * B:(t + 1) * B, 0:H4]
             + p[(T - 1 - t) * B:(T - t) * B, H4:H8]
             + dot(h2, whh2))                          # (B, 4H)
        sg = jax.nn.sigmoid(g)
        tg = jnp.tanh(g)
        c2 = sg[:, H:2 * H] * c2 + sg[:, 0:H] * tg[:, 2 * H:3 * H]
        h2 = sg[:, 3 * H:4 * H] * jnp.tanh(c2)
    # Backward direction at the last timestep == its first step (zero state).
    gb = p[(T - 1) * B:T * B, H8:H12] + p[0:B, H12:H16]
    sgb = jax.nn.sigmoid(gb)
    tgb = jnp.tanh(gb)
    hb = sgb[:, 3 * H:4 * H] * jnp.tanh(sgb[:, 0:H] * tgb[:, 2 * H:3 * H])
    feat = jnp.concatenate([h2, hb], axis=1)           # (B, 2H)

    # ---- lstm_2: T=1, zero init -> one fused bidirectional cell per layer ----
    def bicell0(g):                                    # interleaved [i_f i_b|f_f f_b|g_f g_b|o_f o_b]
        sg = jax.nn.sigmoid(g)
        tg = jnp.tanh(g)
        return sg[:, H6:H8] * jnp.tanh(sg[:, 0:H2] * tg[:, H4:H6])   # -> [h_f | h_b]

    z = bicell0(dot(feat, w3) + b3)                    # (B, 2H)
    z = bicell0(dot(z, w4) + b4)                       # (B, 2H)

    # ---- fc head: Dropout(identity) -> Linear -> ReLU -> Linear ----
    hmid = jnp.maximum(dot(z, fcw1) + fcb1, 0.0)
    out_ref[...] = dot(hmid, fcw2) + fcb2


def predictor_forward(x, slab_a, slab_b, *, offs_a, offs_b, T, B, F, H, out_dim):
    """x: (B, T, F) float32 -> (B, out_dim). Entire forward pass in one pallas_call."""
    kernel = functools.partial(_predictor_kernel, T=T, B=B, F=F, H=H,
                               offs_a=offs_a, offs_b=offs_b)
    vmem = functools.partial(pl.BlockSpec, memory_space=pltpu.MemorySpace.VMEM)
    return pl.pallas_call(
        kernel,
        out_shape=jax.ShapeDtypeStruct((B, out_dim), jnp.float32),
        in_specs=[vmem(), vmem(), vmem()],
        out_specs=vmem(),
        scratch_shapes=[pltpu.VMEM((T * B, 2 * H), jnp.float32)],
    )(x, slab_a, slab_b)


# ---------------------------------------------------------------------------
# Host-side weight packing: 23 small arrays -> 2 contiguous f32 slabs + static offsets.
# ---------------------------------------------------------------------------
def pack_params(params, F, H):
    lstm1, lstm2, fc = params["lstm1"], params["lstm2"], params["fc"]
    H2, H4, H8, H16 = 2 * H, 4 * H, 8 * H, 16 * H

    def il(wf, wb):
        # per-gate interleave of two (..., 4H) -> (..., 8H): [i_f i_b f_f f_b g_f g_b o_f o_b]
        parts = []
        for k in range(4):
            parts += [wf[..., k * H:(k + 1) * H], wb[..., k * H:(k + 1) * H]]
        return jnp.concatenate(parts, axis=-1)

    # lstm_1 layer 0: fused bidirectional weights (block-structured rows, interleaved cols)
    w1f_ih, w1f_hh, b1f = lstm1[0]["fwd"]
    w1b_ih, w1b_hh, b1b = lstm1[0]["bwd"]
    zF = jnp.zeros_like(w1f_ih)
    zH = jnp.zeros_like(w1f_hh)
    w1comb = jnp.concatenate([il(w1f_ih, zF), il(zF, w1b_ih)], axis=0)   # (2F, 8H)
    whh1 = jnp.concatenate([il(w1f_hh, zH), il(zH, w1b_hh)], axis=0)     # (2H, 8H)
    b1c = il(b1f, b1b)                                                   # (1, 8H)

    # lstm_1 layer 1: fwd projection split by input rows + bwd single-step projection,
    # all as extra columns of one (2H, 16H) weight.
    w2f_ih, w2f_hh, b2f = lstm1[1]["fwd"]
    w2b_ih, _, b2b = lstm1[1]["bwd"]
    z4 = jnp.zeros((H, H4), jnp.float32)
    w2ext = jnp.concatenate([
        jnp.concatenate([w2f_ih[:H], z4], axis=0),
        jnp.concatenate([z4, w2f_ih[H:]], axis=0),
        jnp.concatenate([w2b_ih[:H], z4], axis=0),
        jnp.concatenate([z4, w2b_ih[H:]], axis=0)], axis=1)              # (2H, 16H)
    zb = jnp.zeros((1, H4), jnp.float32)
    b2ext = jnp.concatenate([b2f, zb, b2b, zb], axis=1)                  # (1, 16H)
    whh2 = w2f_hh                                                        # (H, 4H)

    # lstm_2 (T=1 -> pure cells): interleaved fwd/bwd weights, shared input.
    w3f_ih, _, b3f = lstm2[0]["fwd"]; w3b_ih, _, b3b = lstm2[0]["bwd"]
    w4f_ih, _, b4f = lstm2[1]["fwd"]; w4b_ih, _, b4b = lstm2[1]["bwd"]
    w3c, b3c = il(w3f_ih, w3b_ih), il(b3f, b3b)
    w4c, b4c = il(w4f_ih, w4b_ih), il(b4f, b4b)

    def padw(a, w):
        return jnp.pad(a, ((0, 0), (0, w - a.shape[1])))

    # Slab A (lane width 8H)
    sections = [
        ("w1", w1comb), ("whh1", whh1), ("w3", w3c), ("w4", w4c),
        ("whh2", padw(whh2, H8)), ("fcw1", padw(fc["w1"], H8)),
        ("fcw2", padw(fc["w2"], H8)),
        ("b1", b1c), ("b3", b3c), ("b4", b4c),
        ("fcb1", padw(fc["b1"], H8)), ("fcb2", padw(fc["b2"], H8)),
    ]
    offs_a, rows, r = {}, [], 0
    for name, arr in sections:
        offs_a[name] = r
        rows.append(arr.astype(jnp.float32))
        r += arr.shape[0]
    pad = (-r) % 8
    if pad:
        rows.append(jnp.zeros((pad, H8), jnp.float32))
    slab_a = jnp.concatenate(rows, axis=0)

    # Slab B (lane width 16H)
    offs_b = {"w2": 0, "b2": H2}
    rows_b = [w2ext.astype(jnp.float32), b2ext.astype(jnp.float32)]
    pad = (-(H2 + 1)) % 8
    if pad:
        rows_b.append(jnp.zeros((pad, H16), jnp.float32))
    slab_b = jnp.concatenate(rows_b, axis=0)

    return slab_a, slab_b, offs_a, offs_b


# ---------------------------------------------------------------------------
# Parameter init (deterministic, mirrors PyTorch uniform(-1/sqrt(H), 1/sqrt(H)))
# ---------------------------------------------------------------------------
def init_lstm_stack(key, input_size, hidden, num_layers):
    layers = []
    bound = 1.0 / math.sqrt(hidden)
    for l in range(num_layers):
        d_in = input_size if l == 0 else 2 * hidden
        layer = {}
        for direc in ("fwd", "bwd"):
            key, k1, k2, k3, k4 = jax.random.split(key, 5)
            wih = jax.random.uniform(k1, (d_in, 4 * hidden), jnp.float32, -bound, bound)
            whh = jax.random.uniform(k2, (hidden, 4 * hidden), jnp.float32, -bound, bound)
            b_ih = jax.random.uniform(k3, (4 * hidden,), jnp.float32, -bound, bound)
            b_hh = jax.random.uniform(k4, (4 * hidden,), jnp.float32, -bound, bound)
            layer[direc] = (wih, whh, (b_ih + b_hh)[None, :])
        layers.append(layer)
    return key, layers


def init_params(key, input_size, hidden, output_size=1):
    key, lstm1 = init_lstm_stack(key, input_size, hidden, num_layers=2)
    key, lstm2 = init_lstm_stack(key, 2 * hidden, hidden, num_layers=2)
    b1 = 1.0 / math.sqrt(2 * hidden)
    b2 = 1.0 / math.sqrt(hidden)
    key, k1, k2, k3, k4 = jax.random.split(key, 5)
    fc = {
        "w1": jax.random.uniform(k1, (2 * hidden, hidden), jnp.float32, -b1, b1),
        "b1": jax.random.uniform(k2, (1, hidden), jnp.float32, -b1, b1),
        "w2": jax.random.uniform(k3, (hidden, output_size), jnp.float32, -b2, b2),
        "b2": jax.random.uniform(k4, (1, output_size), jnp.float32, -b2, b2),
    }
    return {"lstm1": lstm1, "lstm2": lstm2, "fc": fc}


# ---------------------------------------------------------------------------
# Pure-JAX reference (for correctness check)
# ---------------------------------------------------------------------------
def _ref_lstm_dir(x_tbd, wih, whh, b):
    T, B, _ = x_tbd.shape
    H = whh.shape[0]

    def step(carry, x_t):
        h, c = carry
        gates = x_t @ wih + h @ whh + b
        i_g, f_g, g_g, o_g = jnp.split(gates, 4, axis=-1)
        i_g, f_g, o_g = jax.nn.sigmoid(i_g), jax.nn.sigmoid(f_g), jax.nn.sigmoid(o_g)
        g_g = jnp.tanh(g_g)
        c_new = f_g * c + i_g * g_g
        h_new = o_g * jnp.tanh(c_new)
        return (h_new, c_new), h_new

    init = (jnp.zeros((B, H), jnp.float32), jnp.zeros((B, H), jnp.float32))
    _, hs = lax.scan(step, init, x_tbd)
    return hs


def _ref_bilstm_layer(x_btd, lp):
    x_tbd = jnp.transpose(x_btd, (1, 0, 2))
    fwd = _ref_lstm_dir(x_tbd, *lp["fwd"])
    bwd = _ref_lstm_dir(x_tbd[::-1], *lp["bwd"])[::-1]
    return jnp.transpose(jnp.concatenate([fwd, bwd], axis=-1), (1, 0, 2))


def predictor_forward_ref(x, params):
    h = x
    for lp in params["lstm1"]:
        h = _ref_bilstm_layer(h, lp)
    h2 = h[:, -1, :][:, None, :]
    for lp in params["lstm2"]:
        h2 = _ref_bilstm_layer(h2, lp)
    feat = h2[:, -1, :]
    fc = params["fc"]
    hid = jnp.maximum(feat @ fc["w1"] + fc["b1"], 0.0)
    return hid @ fc["w2"] + fc["b2"]


if __name__ == "__main__":
    B, T, INPUT_SIZE, HIDDEN = 2, 8, 8, 32

    key = jax.random.PRNGKey(0)
    key, kx = jax.random.split(key)
    x = jax.random.normal(kx, (B, T, INPUT_SIZE), jnp.float32)

    params = init_params(jax.random.PRNGKey(0), INPUT_SIZE, HIDDEN, output_size=1)
    slab_a, slab_b, offs_a, offs_b = pack_params(params, INPUT_SIZE, HIDDEN)

    fwd = jax.jit(functools.partial(
        predictor_forward, offs_a=offs_a, offs_b=offs_b,
        T=T, B=B, F=INPUT_SIZE, H=HIDDEN, out_dim=1))
    out = jax.block_until_ready(fwd(x, slab_a, slab_b))

    ref = predictor_forward_ref(x, params)
    assert out.shape == (B, 1), out.shape
    assert jnp.all(jnp.isfinite(out))
    assert jnp.allclose(out, ref, atol=1e-4, rtol=1e-4), (out, ref)

    print("KERNEL_OK")
</pallas_src>

<mosaic_0001>
module attributes {stable_mosaic.version = 11 : i64} {
  func.func @_predictor_kernel(%arg0: memref<2x8x8xf32, #tpu.memory_space<vmem>>, %arg1: memref<344x256xf32, #tpu.memory_space<vmem>>, %arg2: memref<72x512xf32, #tpu.memory_space<vmem>>, %arg3: memref<2x1xf32, #tpu.memory_space<vmem>>, %arg4: memref<16x64xf32, #tpu.memory_space<vmem>>) attributes {dimension_semantics = [], scalar_prefetch = 0 : i64, scratch_operands = 1 : i64, tpu.core_type = #tpu.core_type<tc>} {
    %c0 = arith.constant 0 : index
    %c0_0 = arith.constant 0 : index
    %0 = vector.load %arg1[%c0, %c0_0] : memref<344x256xf32, #tpu.memory_space<vmem>>, vector<16x256xf32>
    %c16 = arith.constant 16 : index
    %c0_1 = arith.constant 0 : index
    %1 = vector.load %arg1[%c16, %c0_1] : memref<344x256xf32, #tpu.memory_space<vmem>>, vector<64x256xf32>
    %c80 = arith.constant 80 : index
    %c0_2 = arith.constant 0 : index
    %2 = vector.load %arg1[%c80, %c0_2] : memref<344x256xf32, #tpu.memory_space<vmem>>, vector<64x256xf32>
    %c144 = arith.constant 144 : index
    %c0_3 = arith.constant 0 : index
    %3 = vector.load %arg1[%c144, %c0_3] : memref<344x256xf32, #tpu.memory_space<vmem>>, vector<64x256xf32>
    %c208 = arith.constant 208 : index
    %c0_4 = arith.constant 0 : index
    %4 = vector.load %arg1[%c208, %c0_4] : memref<344x256xf32, #tpu.memory_space<vmem>>, vector<32x128xf32>
    %c240 = arith.constant 240 : index
    %c0_5 = arith.constant 0 : index
    %5 = vector.load %arg1[%c240, %c0_5] : memref<344x256xf32, #tpu.memory_space<vmem>>, vector<64x32xf32>
    %c304 = arith.constant 304 : index
    %c0_6 = arith.constant 0 : index
    %6 = vector.load %arg1[%c304, %c0_6] : memref<344x256xf32, #tpu.memory_space<vmem>>, vector<32x1xf32>
    %c336 = arith.constant 336 : index
    %c0_7 = arith.constant 0 : index
    %7 = vector.load %arg1[%c336, %c0_7] : memref<344x256xf32, #tpu.memory_space<vmem>>, vector<1x256xf32>
    %c337 = arith.constant 337 : index
    %c0_8 = arith.constant 0 : index
    %8 = vector.load %arg1[%c337, %c0_8] : memref<344x256xf32, #tpu.memory_space<vmem>>, vector<1x256xf32>
    %c338 = arith.constant 338 : index
    %c0_9 = arith.constant 0 : index
    %9 = vector.load %arg1[%c338, %c0_9] : memref<344x256xf32, #tpu.memory_space<vmem>>, vector<1x256xf32>
    %c339 = arith.constant 339 : index
    %c0_10 = arith.constant 0 : index
    %10 = vector.load %arg1[%c339, %c0_10] : memref<344x256xf32, #tpu.memory_space<vmem>>, vector<1x32xf32>
    %c340 = arith.constant 340 : index
    %c0_11 = arith.constant 0 : index
    %11 = vector.load %arg1[%c340, %c0_11] : memref<344x256xf32, #tpu.memory_space<vmem>>, vector<1x1xf32>
    %c0_12 = arith.constant 0 : index
    %c0_13 = arith.constant 0 : index
    %12 = vector.load %arg2[%c0_12, %c0_13] : memref<72x512xf32, #tpu.memory_space<vmem>>, vector<64x512xf32>
    %c64 = arith.constant 64 : index
    %c0_14 = arith.constant 0 : index
    %13 = vector.load %arg2[%c64, %c0_14] : memref<72x512xf32, #tpu.memory_space<vmem>>, vector<1x512xf32>
    %c0_15 = arith.constant 0 : index
    %c0_16 = arith.constant 0 : index
    %c0_17 = arith.constant 0 : index
    %14 = vector.load %arg0[%c0_15, %c0_16, %c0_17] : memref<2x8x8xf32, #tpu.memory_space<vmem>>, vector<2x8x8xf32>
    %15 = vector.extract_strided_slice %14 {offsets = [0, 0, 0], sizes = [2, 1, 8], strides = [1, 1, 1]} : vector<2x8x8xf32> to vector<2x1x8xf32>
    %16 = vector.shape_cast %15 : vector<2x1x8xf32> to vector<2x8xf32>
    %17 = vector.extract_strided_slice %14 {offsets = [0, 1, 0], sizes = [2, 1, 8], strides = [1, 1, 1]} : vector<2x8x8xf32> to vector<2x1x8xf32>
    %18 = vector.shape_cast %17 : vector<2x1x8xf32> to vector<2x8xf32>
    %19 = vector.extract_strided_slice %14 {offsets = [0, 2, 0], sizes = [2, 1, 8], strides = [1, 1, 1]} : vector<2x8x8xf32> to vector<2x1x8xf32>
    %20 = vector.shape_cast %19 : vector<2x1x8xf32> to vector<2x8xf32>
    %21 = vector.extract_strided_slice %14 {offsets = [0, 3, 0], sizes = [2, 1, 8], strides = [1, 1, 1]} : vector<2x8x8xf32> to vector<2x1x8xf32>
    %22 = vector.shape_cast %21 : vector<2x1x8xf32> to vector<2x8xf32>
    %23 = vector.extract_strided_slice %14 {offsets = [0, 4, 0], sizes = [2, 1, 8], strides = [1, 1, 1]} : vector<2x8x8xf32> to vector<2x1x8xf32>
    %24 = vector.shape_cast %23 : vector<2x1x8xf32> to vector<2x8xf32>
    %25 = vector.extract_strided_slice %14 {offsets = [0, 5, 0], sizes = [2, 1, 8], strides = [1, 1, 1]} : vector<2x8x8xf32> to vector<2x1x8xf32>
    %26 = vector.shape_cast %25 : vector<2x1x8xf32> to vector<2x8xf32>
    %27 = vector.extract_strided_slice %14 {offsets = [0, 6, 0], sizes = [2, 1, 8], strides = [1, 1, 1]} : vector<2x8x8xf32> to vector<2x1x8xf32>
    %28 = vector.shape_cast %27 : vector<2x1x8xf32> to vector<2x8xf32>
    %29 = vector.extract_strided_slice %14 {offsets = [0, 7, 0], sizes = [2, 1, 8], strides = [1, 1, 1]} : vector<2x8x8xf32> to vector<2x1x8xf32>
    %30 = vector.shape_cast %29 : vector<2x1x8xf32> to vector<2x8xf32>
    %31 = tpu.concatenate %16, %18, %20, %22, %24, %26, %28, %30 in 0 : vector<2x8xf32>, vector<2x8xf32>, vector<2x8xf32>, vector<2x8xf32>, vector<2x8xf32>, vector<2x8xf32>, vector<2x8xf32>, vector<2x8xf32> -> vector<16x8xf32>
    %32 = tpu.concatenate %30, %28, %26, %24, %22, %20, %18, %16 in 0 : vector<2x8xf32>, vector<2x8xf32>, vector<2x8xf32>, vector<2x8xf32>, vector<2x8xf32>, vector<2x8xf32>, vector<2x8xf32>, vector<2x8xf32> -> vector<16x8xf32>
    %33 = tpu.concatenate %31, %32 in 1 : vector<16x8xf32>, vector<16x8xf32> -> vector<16x16xf32>
    %cst = arith.constant dense<0.000000e+00> : vector<16x256xf32>
    %34 = tpu.matmul %33, %0, %cst {dimension_numbers = #tpu.dot_dimension_numbers<[1], [0], [0], [1], [0, 0, 1, 1], [], []>} : vector<16x16xf32>, vector<16x256xf32>, vector<16x256xf32> -> vector<16x256xf32>
    %35 = vector.broadcast %7 : vector<1x256xf32> to vector<16x256xf32>
    %36 = arith.addf %34, %35 : vector<16x256xf32>
    %cst_18 = arith.constant 0.000000e+00 : f32
    %37 = vector.broadcast %cst_18 : f32 to vector<2x64xf32>
    %cst_19 = arith.constant 0.000000e+00 : f32
    %38 = vector.broadcast %cst_19 : f32 to vector<2x64xf32>
    %39 = vector.extract_strided_slice %36 {offsets = [0, 0], sizes = [2, 256], strides = [1, 1]} : vector<16x256xf32> to vector<2x256xf32>
    %cst_20 = arith.constant dense<0.000000e+00> : vector<2x256xf32>
    %40 = tpu.matmul %37, %1, %cst_20 {dimension_numbers = #tpu.dot_dimension_numbers<[1], [0], [0], [1], [0, 0, 1, 1], [], []>} : vector<2x64xf32>, vector<64x256xf32>, vector<2x256xf32> -> vector<2x256xf32>
    %41 = arith.addf %39, %40 : vector<2x256xf32>
    %42 = arith.negf %41 : vector<2x256xf32>
    %43 = math.exp %42 : vector<2x256xf32>
    %cst_21 = arith.constant 1.000000e+00 : f32
    %44 = vector.broadcast %cst_21 : f32 to vector<2x256xf32>
    %45 = arith.addf %44, %43 : vector<2x256xf32>
    %46 = arith.divf %44, %45 : vector<2x256xf32>
    %47 = math.tanh %41 : vector<2x256xf32>
    %48 = vector.extract_strided_slice %46 {offsets = [0, 64], sizes = [2, 64], strides = [1, 1]} : vector<2x256xf32> to vector<2x64xf32>
    %49 = arith.mulf %48, %38 : vector<2x64xf32>
    %50 = vector.extract_strided_slice %46 {offsets = [0, 0], sizes = [2, 64], strides = [1, 1]} : vector<2x256xf32> to vector<2x64xf32>
    %51 = vector.extract_strided_slice %47 {offsets = [0, 128], sizes = [2, 64], strides = [1, 1]} : vector<2x256xf32> to vector<2x64xf32>
    %52 = arith.mulf %50, %51 : vector<2x64xf32>
    %53 = arith.addf %49, %52 : vector<2x64xf32>
    %54 = vector.extract_strided_slice %46 {offsets = [0, 192], sizes = [2, 64], strides = [1, 1]} : vector<2x256xf32> to vector<2x64xf32>
    %55 = math.tanh %53 : vector<2x64xf32>
    %56 = arith.mulf %54, %55 : vector<2x64xf32>
    %c0_22 = arith.constant 0 : index
    %c0_23 = arith.constant 0 : index
    %57 = vector.load %arg4[%c0_22, %c0_23] : memref<16x64xf32, #tpu.memory_space<vmem>>, vector<2x64xf32>
    tpu.vector_store %arg4[%c0_22, %c0_23], %56 {strides = array<i32>} : memref<16x64xf32, #tpu.memory_space<vmem>>, vector<2x64xf32>,
    %58 = vector.extract_strided_slice %36 {offsets = [2, 0], sizes = [2, 256], strides = [1, 1]} : vector<16x256xf32> to vector<2x256xf32>
    %cst_24 = arith.constant dense<0.000000e+00> : vector<2x256xf32>
    %59 = tpu.matmul %56, %1, %cst_24 {dimension_numbers = #tpu.dot_dimension_numbers<[1], [0], [0], [1], [0, 0, 1, 1], [], []>} : vector<2x64xf32>, vector<64x256xf32>, vector<2x256xf32> -> vector<2x256xf32>
    %60 = arith.addf %58, %59 : vector<2x256xf32>
    %61 = arith.negf %60 : vector<2x256xf32>
    %62 = math.exp %61 : vector<2x256xf32>
    %cst_25 = arith.constant 1.000000e+00 : f32
    %63 = vector.broadcast %cst_25 : f32 to vector<2x256xf32>
    %64 = arith.addf %63, %62 : vector<2x256xf32>
    %65 = arith.divf %63, %64 : vector<2x256xf32>
    %66 = math.tanh %60 : vector<2x256xf32>
    %67 = vector.extract_strided_slice %65 {offsets = [0, 64], sizes = [2, 64], strides = [1, 1]} : vector<2x256xf32> to vector<2x64xf32>
    %68 = arith.mulf %67, %53 : vector<2x64xf32>
    %69 = vector.extract_strided_slice %65 {offsets = [0, 0], sizes = [2, 64], strides = [1, 1]} : vector<2x256xf32> to vector<2x64xf32>
    %70 = vector.extract_strided_slice %66 {offsets = [0, 128], sizes = [2, 64], strides = [1, 1]} : vector<2x256xf32> to vector<2x64xf32>
    %71 = arith.mulf %69, %70 : vector<2x64xf32>
    %72 = arith.addf %68, %71 : vector<2x64xf32>
    %73 = vector.extract_strided_slice %65 {offsets = [0, 192], sizes = [2, 64], strides = [1, 1]} : vector<2x256xf32> to vector<2x64xf32>
    %74 = math.tanh %72 : vector<2x64xf32>
    %75 = arith.mulf %73, %74 : vector<2x64xf32>
    %c2 = arith.constant 2 : index
    %c0_26 = arith.constant 0 : index
    %76 = vector.load %arg4[%c2, %c0_26] : memref<16x64xf32, #tpu.memory_space<vmem>>, vector<2x64xf32>
    tpu.vector_store %arg4[%c2, %c0_26], %75 {strides = array<i32>} : memref<16x64xf32, #tpu.memory_space<vmem>>, vector<2x64xf32>,
    %77 = vector.extract_strided_slice %36 {offsets = [4, 0], sizes = [2, 256], strides = [1, 1]} : vector<16x256xf32> to vector<2x256xf32>
    %cst_27 = arith.constant dense<0.000000e+00> : vector<2x256xf32>
    %78 = tpu.matmul %75, %1, %cst_27 {dimension_numbers = #tpu.dot_dimension_numbers<[1], [0], [0], [1], [0, 0, 1, 1], [], []>} : vector<2x64xf32>, vector<64x256xf32>, vector<2x256xf32> -> vector<2x256xf32>
    %79 = arith.addf %77, %78 : vector<2x256xf32>
    %80 = arith.negf %79 : vector<2x256xf32>
    %81 = math.exp %80 : vector<2x256xf32>
    %cst_28 = arith.constant 1.000000e+00 : f32
    %82 = vector.broadcast %cst_28 : f32 to vector<2x256xf32>
    %83 = arith.addf %82, %81 : vector<2x256xf32>
    %84 = arith.divf %82, %83 : vector<2x256xf32>
    %85 = math.tanh %79 : vector<2x256xf32>
    %86 = vector.extract_strided_slice %84 {offsets = [0, 64], sizes = [2, 64], strides = [1, 1]} : vector<2x256xf32> to vector<2x64xf32>
    %87 = arith.mulf %86, %72 : vector<2x64xf32>
    %88 = vector.extract_strided_slice %84 {offsets = [0, 0], sizes = [2, 64], strides = [1, 1]} : vector<2x256xf32> to vector<2x64xf32>
    %89 = vector.extract_strided_slice %85 {offsets = [0, 128], sizes = [2, 64], strides = [1, 1]} : vector<2x256xf32> to vector<2x64xf32>
    %90 = arith.mulf %88, %89 : vector<2x64xf32>
    %91 = arith.addf %87, %90 : vector<2x64xf32>
    %92 = vector.extract_strided_slice %84 {offsets = [0, 192], sizes = [2, 64], strides = [1, 1]} : vector<2x256xf32> to vector<2x64xf32>
    %93 = math.tanh %91 : vector<2x64xf32>
    %94 = arith.mulf %92, %93 : vector<2x64xf32>
    %c4 = arith.constant 4 : index
    %c0_29 = arith.constant 0 : index
    %95 = vector.load %arg4[%c4, %c0_29] : memref<16x64xf32, #tpu.memory_space<vmem>>, vector<2x64xf32>
    tpu.vector_store %arg4[%c4, %c0_29], %94 {strides = array<i32>} : memref<16x64xf32, #tpu.memory_space<vmem>>, vector<2x64xf32>,
    %96 = vector.extract_strided_slice %36 {offsets = [6, 0], sizes = [2, 256], strides = [1, 1]} : vector<16x256xf32> to vector<2x256xf32>
    %cst_30 = arith.constant dense<0.000000e+00> : vector<2x256xf32>
    %97 = tpu.matmul %94, %1, %cst_30 {dimension_numbers = #tpu.dot_dimension_numbers<[1], [0], [0], [1], [0, 0, 1, 1], [], []>} : vector<2x64xf32>, vector<64x256xf32>, vector<2x256xf32> -> vector<2x256xf32>
    %98 = arith.addf %96, %97 : vector<2x256xf32>
    %99 = arith.negf %98 : vector<2x256xf32>
    %100 = math.exp %99 : vector<2x256xf32>
    %cst_31 = arith.constant 1.000000e+00 : f32
    %101 = vector.broadcast %cst_31 : f32 to vector<2x256xf32>
    %102 = arith.addf %101, %100 : vector<2x256xf32>
    %103 = arith.divf %101, %102 : vector<2x256xf32>
    %104 = math.tanh %98 : vector<2x256xf32>
    %105 = vector.extract_strided_slice %103 {offsets = [0, 64], sizes = [2, 64], strides = [1, 1]} : vector<2x256xf32> to vector<2x64xf32>
    %106 = arith.mulf %105, %91 : vector<2x64xf32>
    %107 = vector.extract_strided_slice %103 {offsets = [0, 0], sizes = [2, 64], strides = [1, 1]} : vector<2x256xf32> to vector<2x64xf32>
    %108 = vector.extract_strided_slice %104 {offsets = [0, 128], sizes = [2, 64], strides = [1, 1]} : vector<2x256xf32> to vector<2x64xf32>
    %109 = arith.mulf %107, %108 : vector<2x64xf32>
    %110 = arith.addf %106, %109 : vector<2x64xf32>
    %111 = vector.extract_strided_slice %103 {offsets = [0, 192], sizes = [2, 64], strides = [1, 1]} : vector<2x256xf32> to vector<2x64xf32>
    %112 = math.tanh %110 : vector<2x64xf32>
    %113 = arith.mulf %111, %112 : vector<2x64xf32>
    %c6 = arith.constant 6 : index
    %c0_32 = arith.constant 0 : index
    %114 = vector.load %arg4[%c6, %c0_32] : memref<16x64xf32, #tpu.memory_space<vmem>>, vector<2x64xf32>
    tpu.vector_store %arg4[%c6, %c0_32], %113 {strides = array<i32>} : memref<16x64xf32, #tpu.memory_space<vmem>>, vector<2x64xf32>,
    %115 = vector.extract_strided_slice %36 {offsets = [8, 0], sizes = [2, 256], strides = [1, 1]} : vector<16x256xf32> to vector<2x256xf32>
    %cst_33 = arith.constant dense<0.000000e+00> : vector<2x256xf32>
    %116 = tpu.matmul %113, %1, %cst_33 {dimension_numbers = #tpu.dot_dimension_numbers<[1], [0], [0], [1], [0, 0, 1, 1], [], []>} : vector<2x64xf32>, vector<64x256xf32>, vector<2x256xf32> -> vector<2x256xf32>
    %117 = arith.addf %115, %116 : vector<2x256xf32>
    %118 = arith.negf %117 : vector<2x256xf32>
    %119 = math.exp %118 : vector<2x256xf32>
    %cst_34 = arith.constant 1.000000e+00 : f32
    %120 = vector.broadcast %cst_34 : f32 to vector<2x256xf32>
    %121 = arith.addf %120, %119 : vector<2x256xf32>
    %122 = arith.divf %120, %121 : vector<2x256xf32>
    %123 = math.tanh %117 : vector<2x256xf32>
    %124 = vector.extract_strided_slice %122 {offsets = [0, 64], sizes = [2, 64], strides = [1, 1]} : vector<2x256xf32> to vector<2x64xf32>
    %125 = arith.mulf %124, %110 : vector<2x64xf32>
    %126 = vector.extract_strided_slice %122 {offsets = [0, 0], sizes = [2, 64], strides = [1, 1]} : vector<2x256xf32> to vector<2x64xf32>
    %127 = vector.extract_strided_slice %123 {offsets = [0, 128], sizes = [2, 64], strides = [1, 1]} : vector<2x256xf32> to vector<2x64xf32>
    %128 = arith.mulf %126, %127 : vector<2x64xf32>
    %129 = arith.addf %125, %128 : vector<2x64xf32>
    %130 = vector.extract_strided_slice %122 {offsets = [0, 192], sizes = [2, 64], strides = [1, 1]} : vector<2x256xf32> to vector<2x64xf32>
    %131 = math.tanh %129 : vector<2x64xf32>
    %132 = arith.mulf %130, %131 : vector<2x64xf32>
    %c8 = arith.constant 8 : index
    %c0_35 = arith.constant 0 : index
    %133 = vector.load %arg4[%c8, %c0_35] : memref<16x64xf32, #tpu.memory_space<vmem>>, vector<2x64xf32>
    tpu.vector_store %arg4[%c8, %c0_35], %132 {strides = array<i32>} : memref<16x64xf32, #tpu.memory_space<vmem>>, vector<2x64xf32>,
    %134 = vector.extract_strided_slice %36 {offsets = [10, 0], sizes = [2, 256], strides = [1, 1]} : vector<16x256xf32> to vector<2x256xf32>
    %cst_36 = arith.constant dense<0.000000e+00> : vector<2x256xf32>
    %135 = tpu.matmul %132, %1, %cst_36 {dimension_numbers = #tpu.dot_dimension_numbers<[1], [0], [0], [1], [0, 0, 1, 1], [], []>} : vector<2x64xf32>, vector<64x256xf32>, vector<2x256xf32> -> vector<2x256xf32>
    %136 = arith.addf %134, %135 : vector<2x256xf32>
    %137 = arith.negf %136 : vector<2x256xf32>
    %138 = math.exp %137 : vector<2x256xf32>
    %cst_37 = arith.constant 1.000000e+00 : f32
    %139 = vector.broadcast %cst_37 : f32 to vector<2x256xf32>
    %140 = arith.addf %139, %138 : vector<2x256xf32>
    %141 = arith.divf %139, %140 : vector<2x256xf32>
    %142 = math.tanh %136 : vector<2x256xf32>
    %143 = vector.extract_strided_slice %141 {offsets = [0, 64], sizes = [2, 64], strides = [1, 1]} : vector<2x256xf32> to vector<2x64xf32>
    %144 = arith.mulf %143, %129 : vector<2x64xf32>
    %145 = vector.extract_strided_slice %141 {offsets = [0, 0], sizes = [2, 64], strides = [1, 1]} : vector<2x256xf32> to vector<2x64xf32>
    %146 = vector.extract_strided_slice %142 {offsets = [0, 128], sizes = [2, 64], strides = [1, 1]} : vector<2x256xf32> to vector<2x64xf32>
    %147 = arith.mulf %145, %146 : vector<2x64xf32>
    %148 = arith.addf %144, %147 : vector<2x64xf32>
    %149 = vector.extract_strided_slice %141 {offsets = [0, 192], sizes = [2, 64], strides = [1, 1]} : vector<2x256xf32> to vector<2x64xf32>
    %150 = math.tanh %148 : vector<2x64xf32>
    %151 = arith.mulf %149, %150 : vector<2x64xf32>
    %c10 = arith.constant 10 : index
    %c0_38 = arith.constant 0 : index
    %152 = vector.load %arg4[%c10, %c0_38] : memref<16x64xf32, #tpu.memory_space<vmem>>, vector<2x64xf32>
    tpu.vector_store %arg4[%c10, %c0_38], %151 {strides = array<i32>} : memref<16x64xf32, #tpu.memory_space<vmem>>, vector<2x64xf32>,
    %153 = vector.extract_strided_slice %36 {offsets = [12, 0], sizes = [2, 256], strides = [1, 1]} : vector<16x256xf32> to vector<2x256xf32>
    %cst_39 = arith.constant dense<0.000000e+00> : vector<2x256xf32>
    %154 = tpu.matmul %151, %1, %cst_39 {dimension_numbers = #tpu.dot_dimension_numbers<[1], [0], [0], [1], [0, 0, 1, 1], [], []>} : vector<2x64xf32>, vector<64x256xf32>, vector<2x256xf32> -> vector<2x256xf32>
    %155 = arith.addf %153, %154 : vector<2x256xf32>
    %156 = arith.negf %155 : vector<2x256xf32>
    %157 = math.exp %156 : vector<2x256xf32>
    %cst_40 = arith.constant 1.000000e+00 : f32
    %158 = vector.broadcast %cst_40 : f32 to vector<2x256xf32>
    %159 = arith.addf %158, %157 : vector<2x256xf32>
    %160 = arith.divf %158, %159 : vector<2x256xf32>
    %161 = math.tanh %155 : vector<2x256xf32>
    %162 = vector.extract_strided_slice %160 {offsets = [0, 64], sizes = [2, 64], strides = [1, 1]} : vector<2x256xf32> to vector<2x64xf32>
    %163 = arith.mulf %162, %148 : vector<2x64xf32>
    %164 = vector.extract_strided_slice %160 {offsets = [0, 0], sizes = [2, 64], strides = [1, 1]} : vector<2x256xf32> to vector<2x64xf32>
    %165 = vector.extract_strided_slice %161 {offsets = [0, 128], sizes = [2, 64], strides = [1, 1]} : vector<2x256xf32> to vector<2x64xf32>
    %166 = arith.mulf %164, %165 : vector<2x64xf32>
    %167 = arith.addf %163, %166 : vector<2x64xf32>
    %168 = vector.extract_strided_slice %160 {offsets = [0, 192], sizes = [2, 64], strides = [1, 1]} : vector<2x256xf32> to vector<2x64xf32>
    %169 = math.tanh %167 : vector<2x64xf32>
    %170 = arith.mulf %168, %169 : vector<2x64xf32>
    %c12 = arith.constant 12 : index
    %c0_41 = arith.constant 0 : index
    %171 = vector.load %arg4[%c12, %c0_41] : memref<16x64xf32, #tpu.memory_space<vmem>>, vector<2x64xf32>
    tpu.vector_store %arg4[%c12, %c0_41], %170 {strides = array<i32>} : memref<16x64xf32, #tpu.memory_space<vmem>>, vector<2x64xf32>,
    %172 = vector.extract_strided_slice %36 {offsets = [14, 0], sizes = [2, 256], strides = [1, 1]} : vector<16x256xf32> to vector<2x256xf32>
    %cst_42 = arith.constant dense<0.000000e+00> : vector<2x256xf32>
    %173 = tpu.matmul %170, %1, %cst_42 {dimension_numbers = #tpu.dot_dimension_numbers<[1], [0], [0], [1], [0, 0, 1, 1], [], []>} : vector<2x64xf32>, vector<64x256xf32>, vector<2x256xf32> -> vector<2x256xf32>
    %174 = arith.addf %172, %173 : vector<2x256xf32>
    %175 = arith.negf %174 : vector<2x256xf32>
    %176 = math.exp %175 : vector<2x256xf32>
    %cst_43 = arith.constant 1.000000e+00 : f32
    %177 = vector.broadcast %cst_43 : f32 to vector<2x256xf32>
    %178 = arith.addf %177, %176 : vector<2x256xf32>
    %179 = arith.divf %177, %178 : vector<2x256xf32>
    %180 = math.tanh %174 : vector<2x256xf32>
    %181 = vector.extract_strided_slice %179 {offsets = [0, 64], sizes = [2, 64], strides = [1, 1]} : vector<2x256xf32> to vector<2x64xf32>
    %182 = arith.mulf %181, %167 : vector<2x64xf32>
    %183 = vector.extract_strided_slice %179 {offsets = [0, 0], sizes = [2, 64], strides = [1, 1]} : vector<2x256xf32> to vector<2x64xf32>
    %184 = vector.extract_strided_slice %180 {offsets = [0, 128], sizes = [2, 64], strides = [1, 1]} : vector<2x256xf32> to vector<2x64xf32>
    %185 = arith.mulf %183, %184 : vector<2x64xf32>
    %186 = arith.addf %182, %185 : vector<2x64xf32>
    %187 = vector.extract_strided_slice %179 {offsets = [0, 192], sizes = [2, 64], strides = [1, 1]} : vector<2x256xf32> to vector<2x64xf32>
    %188 = math.tanh %186 : vector<2x64xf32>
    %189 = arith.mulf %187, %188 : vector<2x64xf32>
    %c14 = arith.constant 14 : index
    %c0_44 = arith.constant 0 : index
    %190 = vector.load %arg4[%c14, %c0_44] : memref<16x64xf32, #tpu.memory_space<vmem>>, vector<2x64xf32>
    tpu.vector_store %arg4[%c14, %c0_44], %189 {strides = array<i32>} : memref<16x64xf32, #tpu.memory_space<vmem>>, vector<2x64xf32>,
    %c0_45 = arith.constant 0 : index
    %c0_46 = arith.constant 0 : index
    %191 = vector.load %arg4[%c0_45, %c0_46] : memref<16x64xf32, #tpu.memory_space<vmem>>, vector<16x64xf32>
    %cst_47 = arith.constant dense<0.000000e+00> : vector<16x512xf32>
    %192 = tpu.matmul %191, %12, %cst_47 {dimension_numbers = #tpu.dot_dimension_numbers<[1], [0], [0], [1], [0, 0, 1, 1], [], []>} : vector<16x64xf32>, vector<64x512xf32>, vector<16x512xf32> -> vector<16x512xf32>
    %193 = vector.broadcast %13 : vector<1x512xf32> to vector<16x512xf32>
    %194 = arith.addf %192, %193 : vector<16x512xf32>
    %cst_48 = arith.constant 0.000000e+00 : f32
    %195 = vector.broadcast %cst_48 : f32 to vector<2x32xf32>
    %cst_49 = arith.constant 0.000000e+00 : f32
    %196 = vector.broadcast %cst_49 : f32 to vector<2x32xf32>
    %197 = vector.extract_strided_slice %194 {offsets = [0, 0], sizes = [2, 128], strides = [1, 1]} : vector<16x512xf32> to vector<2x128xf32>
    %198 = vector.extract_strided_slice %194 {offsets = [14, 128], sizes = [2, 128], strides = [1, 1]} : vector<16x512xf32> to vector<2x128xf32>
    %199 = arith.addf %197, %198 : vector<2x128xf32>
    %cst_50 = arith.constant dense<0.000000e+00> : vector<2x128xf32>
    %200 = tpu.matmul %195, %4, %cst_50 {dimension_numbers = #tpu.dot_dimension_numbers<[1], [0], [0], [1], [0, 0, 1, 1], [], []>} : vector<2x32xf32>, vector<32x128xf32>, vector<2x128xf32> -> vector<2x128xf32>
    %201 = arith.addf %199, %200 : vector<2x128xf32>
    %202 = arith.negf %201 : vector<2x128xf32>
    %203 = math.exp %202 : vector<2x128xf32>
    %cst_51 = arith.constant 1.000000e+00 : f32
    %204 = vector.broadcast %cst_51 : f32 to vector<2x128xf32>
    %205 = arith.addf %204, %203 : vector<2x128xf32>
    %206 = arith.divf %204, %205 : vector<2x128xf32>
    %207 = math.tanh %201 : vector<2x128xf32>
    %208 = vector.extract_strided_slice %206 {offsets = [0, 32], sizes = [2, 32], strides = [1, 1]} : vector<2x128xf32> to vector<2x32xf32>
    %209 = arith.mulf %208, %196 : vector<2x32xf32>
    %210 = vector.extract_strided_slice %206 {offsets = [0, 0], sizes = [2, 32], strides = [1, 1]} : vector<2x128xf32> to vector<2x32xf32>
    %211 = vector.extract_strided_slice %207 {offsets = [0, 64], sizes = [2, 32], strides = [1, 1]} : vector<2x128xf32> to vector<2x32xf32>
    %212 = arith.mulf %210, %211 : vector<2x32xf32>
    %213 = arith.addf %209, %212 : vector<2x32xf32>
    %214 = vector.extract_strided_slice %206 {offsets = [0, 96], sizes = [2, 32], strides = [1, 1]} : vector<2x128xf32> to vector<2x32xf32>
    %215 = math.tanh %213 : vector<2x32xf32>
    %216 = arith.mulf %214, %215 : vector<2x32xf32>
    %217 = vector.extract_strided_slice %194 {offsets = [2, 0], sizes = [2, 128], strides = [1, 1]} : vector<16x512xf32> to vector<2x128xf32>
    %218 = vector.extract_strided_slice %194 {offsets = [12, 128], sizes = [2, 128], strides = [1, 1]} : vector<16x512xf32> to vector<2x128xf32>
    %219 = arith.addf %217, %218 : vector<2x128xf32>
    %cst_52 = arith.constant dense<0.000000e+00> : vector<2x128xf32>
    %220 = tpu.matmul %216, %4, %cst_52 {dimension_numbers = #tpu.dot_dimension_numbers<[1], [0], [0], [1], [0, 0, 1, 1], [], []>} : vector<2x32xf32>, vector<32x128xf32>, vector<2x128xf32> -> vector<2x128xf32>
    %221 = arith.addf %219, %220 : vector<2x128xf32>
    %222 = arith.negf %221 : vector<2x128xf32>
    %223 = math.exp %222 : vector<2x128xf32>
    %cst_53 = arith.constant 1.000000e+00 : f32
    %224 = vector.broadcast %cst_53 : f32 to vector<2x128xf32>
    %225 = arith.addf %224, %223 : vector<2x128xf32>
    %226 = arith.divf %224, %225 : vector<2x128xf32>
    %227 = math.tanh %221 : vector<2x128xf32>
    %228 = vector.extract_strided_slice %226 {offsets = [0, 32], sizes = [2, 32], strides = [1, 1]} : vector<2x128xf32> to vector<2x32xf32>
    %229 = arith.mulf %228, %213 : vector<2x32xf32>
    %230 = vector.extract_strided_slice %226 {offsets = [0, 0], sizes = [2, 32], strides = [1, 1]} : vector<2x128xf32> to vector<2x32xf32>
    %231 = vector.extract_strided_slice %227 {offsets = [0, 64], sizes = [2, 32], strides = [1, 1]} : vector<2x128xf32> to vector<2x32xf32>
    %232 = arith.mulf %230, %231 : vector<2x32xf32>
    %233 = arith.addf %229, %232 : vector<2x32xf32>
    %234 = vector.extract_strided_slice %226 {offsets = [0, 96], sizes = [2, 32], strides = [1, 1]} : vector<2x128xf32> to vector<2x32xf32>
    %235 = math.tanh %233 : vector<2x32xf32>
    %236 = arith.mulf %234, %235 : vector<2x32xf32>
    %237 = vector.extract_strided_slice %194 {offsets = [4, 0], sizes = [2, 128], strides = [1, 1]} : vector<16x512xf32> to vector<2x128xf32>
    %238 = vector.extract_strided_slice %194 {offsets = [10, 128], sizes = [2, 128], strides = [1, 1]} : vector<16x512xf32> to vector<2x128xf32>
    %239 = arith.addf %237, %238 : vector<2x128xf32>
    %cst_54 = arith.constant dense<0.000000e+00> : vector<2x128xf32>
    %240 = tpu.matmul %236, %4, %cst_54 {dimension_numbers = #tpu.dot_dimension_numbers<[1], [0], [0], [1], [0, 0, 1, 1], [], []>} : vector<2x32xf32>, vector<32x128xf32>, vector<2x128xf32> -> vector<2x128xf32>
    %241 = arith.addf %239, %240 : vector<2x128xf32>
    %242 = arith.negf %241 : vector<2x128xf32>
    %243 = math.exp %242 : vector<2x128xf32>
    %cst_55 = arith.constant 1.000000e+00 : f32
    %244 = vector.broadcast %cst_55 : f32 to vector<2x128xf32>
    %245 = arith.addf %244, %243 : vector<2x128xf32>
    %246 = arith.divf %244, %245 : vector<2x128xf32>
    %247 = math.tanh %241 : vector<2x128xf32>
    %248 = vector.extract_strided_slice %246 {offsets = [0, 32], sizes = [2, 32], strides = [1, 1]} : vector<2x128xf32> to vector<2x32xf32>
    %249 = arith.mulf %248, %233 : vector<2x32xf32>
    %250 = vector.extract_strided_slice %246 {offsets = [0, 0], sizes = [2, 32], strides = [1, 1]} : vector<2x128xf32> to vector<2x32xf32>
    %251 = vector.extract_strided_slice %247 {offsets = [0, 64], sizes = [2, 32], strides = [1, 1]} : vector<2x128xf32> to vector<2x32xf32>
    %252 = arith.mulf %250, %251 : vector<2x32xf32>
    %253 = arith.addf %249, %252 : vector<2x32xf32>
    %254 = vector.extract_strided_slice %246 {offsets = [0, 96], sizes = [2, 32], strides = [1, 1]} : vector<2x128xf32> to vector<2x32xf32>
    %255 = math.tanh %253 : vector<2x32xf32>
    %256 = arith.mulf %254, %255 : vector<2x32xf32>
    %257 = vector.extract_strided_slice %194 {offsets = [6, 0], sizes = [2, 128], strides = [1, 1]} : vector<16x512xf32> to vector<2x128xf32>
    %258 = vector.extract_strided_slice %194 {offsets = [8, 128], sizes = [2, 128], strides = [1, 1]} : vector<16x512xf32> to vector<2x128xf32>
    %259 = arith.addf %257, %258 : vector<2x128xf32>
    %cst_56 = arith.constant dense<0.000000e+00> : vector<2x128xf32>
    %260 = tpu.matmul %256, %4, %cst_56 {dimension_numbers = #tpu.dot_dimension_numbers<[1], [0], [0], [1], [0, 0, 1, 1], [], []>} : vector<2x32xf32>, vector<32x128xf32>, vector<2x128xf32> -> vector<2x128xf32>
    %261 = arith.addf %259, %260 : vector<2x128xf32>
    %262 = arith.negf %261 : vector<2x128xf32>
    %263 = math.exp %262 : vector<2x128xf32>
    %cst_57 = arith.constant 1.000000e+00 : f32
    %264 = vector.broadcast %cst_57 : f32 to vector<2x128xf32>
    %265 = arith.addf %264, %263 : vector<2x128xf32>
    %266 = arith.divf %264, %265 : vector<2x128xf32>
    %267 = math.tanh %261 : vector<2x128xf32>
    %268 = vector.extract_strided_slice %266 {offsets = [0, 32], sizes = [2, 32], strides = [1, 1]} : vector<2x128xf32> to vector<2x32xf32>
    %269 = arith.mulf %268, %253 : vector<2x32xf32>
    %270 = vector.extract_strided_slice %266 {offsets = [0, 0], sizes = [2, 32], strides = [1, 1]} : vector<2x128xf32> to vector<2x32xf32>
    %271 = vector.extract_strided_slice %267 {offsets = [0, 64], sizes = [2, 32], strides = [1, 1]} : vector<2x128xf32> to vector<2x32xf32>
    %272 = arith.mulf %270, %271 : vector<2x32xf32>
    %273 = arith.addf %269, %272 : vector<2x32xf32>
    %274 = vector.extract_strided_slice %266 {offsets = [0, 96], sizes = [2, 32], strides = [1, 1]} : vector<2x128xf32> to vector<2x32xf32>
    %275 = math.tanh %273 : vector<2x32xf32>
    %276 = arith.mulf %274, %275 : vector<2x32xf32>
    %277 = vector.extract_strided_slice %194 {offsets = [8, 0], sizes = [2, 128], strides = [1, 1]} : vector<16x512xf32> to vector<2x128xf32>
    %278 = vector.extract_strided_slice %194 {offsets = [6, 128], sizes = [2, 128], strides = [1, 1]} : vector<16x512xf32> to vector<2x128xf32>
    %279 = arith.addf %277, %278 : vector<2x128xf32>
    %cst_58 = arith.constant dense<0.000000e+00> : vector<2x128xf32>
    %280 = tpu.matmul %276, %4, %cst_58 {dimension_numbers = #tpu.dot_dimension_numbers<[1], [0], [0], [1], [0, 0, 1, 1], [], []>} : vector<2x32xf32>, vector<32x128xf32>, vector<2x128xf32> -> vector<2x128xf32>
    %281 = arith.addf %279, %280 : vector<2x128xf32>
    %282 = arith.negf %281 : vector<2x128xf32>
    %283 = math.exp %282 : vector<2x128xf32>
    %cst_59 = arith.constant 1.000000e+00 : f32
    %284 = vector.broadcast %cst_59 : f32 to vector<2x128xf32>
    %285 = arith.addf %284, %283 : vector<2x128xf32>
    %286 = arith.divf %284, %285 : vector<2x128xf32>
    %287 = math.tanh %281 : vector<2x128xf32>
    %288 = vector.extract_strided_slice %286 {offsets = [0, 32], sizes = [2, 32], strides = [1, 1]} : vector<2x128xf32> to vector<2x32xf32>
    %289 = arith.mulf %288, %273 : vector<2x32xf32>
    %290 = vector.extract_strided_slice %286 {offsets = [0, 0], sizes = [2, 32], strides = [1, 1]} : vector<2x128xf32> to vector<2x32xf32>
    %291 = vector.extract_strided_slice %287 {offsets = [0, 64], sizes = [2, 32], strides = [1, 1]} : vector<2x128xf32> to vector<2x32xf32>
    %292 = arith.mulf %290, %291 : vector<2x32xf32>
    %293 = arith.addf %289, %292 : vector<2x32xf32>
    %294 = vector.extract_strided_slice %286 {offsets = [0, 96], sizes = [2, 32], strides = [1, 1]} : vector<2x128xf32> to vector<2x32xf32>
    %295 = math.tanh %293 : vector<2x32xf32>
    %296 = arith.mulf %294, %295 : vector<2x32xf32>
    %297 = vector.extract_strided_slice %194 {offsets = [10, 0], sizes = [2, 128], strides = [1, 1]} : vector<16x512xf32> to vector<2x128xf32>
    %298 = vector.extract_strided_slice %194 {offsets = [4, 128], sizes = [2, 128], strides = [1, 1]} : vector<16x512xf32> to vector<2x128xf32>
    %299 = arith.addf %297, %298 : vector<2x128xf32>
    %cst_60 = arith.constant dense<0.000000e+00> : vector<2x128xf32>
    %300 = tpu.matmul %296, %4, %cst_60 {dimension_numbers = #tpu.dot_dimension_numbers<[1], [0], [0], [1], [0, 0, 1, 1], [], []>} : vector<2x32xf32>, vector<32x128xf32>, vector<2x128xf32> -> vector<2x128xf32>
    %301 = arith.addf %299, %300 : vector<2x128xf32>
    %302 = arith.negf %301 : vector<2x128xf32>
    %303 = math.exp %302 : vector<2x128xf32>
    %cst_61 = arith.constant 1.000000e+00 : f32
    %304 = vector.broadcast %cst_61 : f32 to vector<2x128xf32>
    %305 = arith.addf %304, %303 : vector<2x128xf32>
    %306 = arith.divf %304, %305 : vector<2x128xf32>
    %307 = math.tanh %301 : vector<2x128xf32>
    %308 = vector.extract_strided_slice %306 {offsets = [0, 32], sizes = [2, 32], strides = [1, 1]} : vector<2x128xf32> to vector<2x32xf32>
    %309 = arith.mulf %308, %293 : vector<2x32xf32>
    %310 = vector.extract_strided_slice %306 {offsets = [0, 0], sizes = [2, 32], strides = [1, 1]} : vector<2x128xf32> to vector<2x32xf32>
    %311 = vector.extract_strided_slice %307 {offsets = [0, 64], sizes = [2, 32], strides = [1, 1]} : vector<2x128xf32> to vector<2x32xf32>
    %312 = arith.mulf %310, %311 : vector<2x32xf32>
    %313 = arith.addf %309, %312 : vector<2x32xf32>
    %314 = vector.extract_strided_slice %306 {offsets = [0, 96], sizes = [2, 32], strides = [1, 1]} : vector<2x128xf32> to vector<2x32xf32>
    %315 = math.tanh %313 : vector<2x32xf32>
    %316 = arith.mulf %314, %315 : vector<2x32xf32>
    %317 = vector.extract_strided_slice %194 {offsets = [12, 0], sizes = [2, 128], strides = [1, 1]} : vector<16x512xf32> to vector<2x128xf32>
    %318 = vector.extract_strided_slice %194 {offsets = [2, 128], sizes = [2, 128], strides = [1, 1]} : vector<16x512xf32> to vector<2x128xf32>
    %319 = arith.addf %317, %318 : vector<2x128xf32>
    %cst_62 = arith.constant dense<0.000000e+00> : vector<2x128xf32>
    %320 = tpu.matmul %316, %4, %cst_62 {dimension_numbers = #tpu.dot_dimension_numbers<[1], [0], [0], [1], [0, 0, 1, 1], [], []>} : vector<2x32xf32>, vector<32x128xf32>, vector<2x128xf32> -> vector<2x128xf32>
    %321 = arith.addf %319, %320 : vector<2x128xf32>
    %322 = arith.negf %321 : vector<2x128xf32>
    %323 = math.exp %322 : vector<2x128xf32>
    %cst_63 = arith.constant 1.000000e+00 : f32
    %324 = vector.broadcast %cst_63 : f32 to vector<2x128xf32>
    %325 = arith.addf %324, %323 : vector<2x128xf32>
    %326 = arith.divf %324, %325 : vector<2x128xf32>
    %327 = math.tanh %321 : vector<2x128xf32>
    %328 = vector.extract_strided_slice %326 {offsets = [0, 32], sizes = [2, 32], strides = [1, 1]} : vector<2x128xf32> to vector<2x32xf32>
    %329 = arith.mulf %328, %313 : vector<2x32xf32>
    %330 = vector.extract_strided_slice %326 {offsets = [0, 0], sizes = [2, 32], strides = [1, 1]} : vector<2x128xf32> to vector<2x32xf32>
    %331 = vector.extract_strided_slice %327 {offsets = [0, 64], sizes = [2, 32], strides = [1, 1]} : vector<2x128xf32> to vector<2x32xf32>
    %332 = arith.mulf %330, %331 : vector<2x32xf32>
    %333 = arith.addf %329, %332 : vector<2x32xf32>
    %334 = vector.extract_strided_slice %326 {offsets = [0, 96], sizes = [2, 32], strides = [1, 1]} : vector<2x128xf32> to vector<2x32xf32>
    %335 = math.tanh %333 : vector<2x32xf32>
    %336 = arith.mulf %334, %335 : vector<2x32xf32>
    %337 = vector.extract_strided_slice %194 {offsets = [14, 0], sizes = [2, 128], strides = [1, 1]} : vector<16x512xf32> to vector<2x128xf32>
    %338 = vector.extract_strided_slice %194 {offsets = [0, 128], sizes = [2, 128], strides = [1, 1]} : vector<16x512xf32> to vector<2x128xf32>
    %339 = arith.addf %337, %338 : vector<2x128xf32>
    %cst_64 = arith.constant dense<0.000000e+00> : vector<2x128xf32>
    %340 = tpu.matmul %336, %4, %cst_64 {dimension_numbers = #tpu.dot_dimension_numbers<[1], [0], [0], [1], [0, 0, 1, 1], [], []>} : vector<2x32xf32>, vector<32x128xf32>, vector<2x128xf32> -> vector<2x128xf32>
    %341 = arith.addf %339, %340 : vector<2x128xf32>
    %342 = arith.negf %341 : vector<2x128xf32>
    %343 = math.exp %342 : vector<2x128xf32>
    %cst_65 = arith.constant 1.000000e+00 : f32
    %344 = vector.broadcast %cst_65 : f32 to vector<2x128xf32>
    %345 = arith.addf %344, %343 : vector<2x128xf32>
    %346 = arith.divf %344, %345 : vector<2x128xf32>
    %347 = math.tanh %341 : vector<2x128xf32>
    %348 = vector.extract_strided_slice %346 {offsets = [0, 32], sizes = [2, 32], strides = [1, 1]} : vector<2x128xf32> to vector<2x32xf32>
    %349 = arith.mulf %348, %333 : vector<2x32xf32>
    %350 = vector.extract_strided_slice %346 {offsets = [0, 0], sizes = [2, 32], strides = [1, 1]} : vector<2x128xf32> to vector<2x32xf32>
    %351 = vector.extract_strided_slice %347 {offsets = [0, 64], sizes = [2, 32], strides = [1, 1]} : vector<2x128xf32> to vector<2x32xf32>
    %352 = arith.mulf %350, %351 : vector<2x32xf32>
    %353 = arith.addf %349, %352 : vector<2x32xf32>
    %354 = vector.extract_strided_slice %346 {offsets = [0, 96], sizes = [2, 32], strides = [1, 1]} : vector<2x128xf32> to vector<2x32xf32>
    %355 = math.tanh %353 : vector<2x32xf32>
    %356 = arith.mulf %354, %355 : vector<2x32xf32>
    %357 = vector.extract_strided_slice %194 {offsets = [14, 256], sizes = [2, 128], strides = [1, 1]} : vector<16x512xf32> to vector<2x128xf32>
    %358 = vector.extract_strided_slice %194 {offsets = [0, 384], sizes = [2, 128], strides = [1, 1]} : vector<16x512xf32> to vector<2x128xf32>
    %359 = arith.addf %357, %358 : vector<2x128xf32>
    %360 = arith.negf %359 : vector<2x128xf32>
    %361 = math.exp %360 : vector<2x128xf32>
    %cst_66 = arith.constant 1.000000e+00 : f32
    %362 = vector.broadcast %cst_66 : f32 to vector<2x128xf32>
    %363 = arith.addf %362, %361 : vector<2x128xf32>
    %364 = arith.divf %362, %363 : vector<2x128xf32>
    %365 = math.tanh %359 : vector<2x128xf32>
    %366 = vector.extract_strided_slice %364 {offsets = [0, 96], sizes = [2, 32], strides = [1, 1]} : vector<2x128xf32> to vector<2x32xf32>
    %367 = vector.extract_strided_slice %364 {offsets = [0, 0], sizes = [2, 32], strides = [1, 1]} : vector<2x128xf32> to vector<2x32xf32>
    %368 = vector.extract_strided_slice %365 {offsets = [0, 64], sizes = [2, 32], strides = [1, 1]} : vector<2x128xf32> to vector<2x32xf32>
    %369 = arith.mulf %367, %368 : vector<2x32xf32>
    %370 = math.tanh %369 : vector<2x32xf32>
    %371 = arith.mulf %366, %370 : vector<2x32xf32>
    %372 = tpu.concatenate %356, %371 in 1 : vector<2x32xf32>, vector<2x32xf32> -> vector<2x64xf32>
    %cst_67 = arith.constant dense<0.000000e+00> : vector<2x256xf32>
    %373 = tpu.matmul %372, %2, %cst_67 {dimension_numbers = #tpu.dot_dimension_numbers<[1], [0], [0], [1], [0, 0, 1, 1], [], []>} : vector<2x64xf32>, vector<64x256xf32>, vector<2x256xf32> -> vector<2x256xf32>
    %374 = vector.broadcast %8 : vector<1x256xf32> to vector<2x256xf32>
    %375 = arith.addf %373, %374 : vector<2x256xf32>
    %376 = arith.negf %375 : vector<2x256xf32>
    %377 = math.exp %376 : vector<2x256xf32>
    %cst_68 = arith.constant 1.000000e+00 : f32
    %378 = vector.broadcast %cst_68 : f32 to vector<2x256xf32>
    %379 = arith.addf %378, %377 : vector<2x256xf32>
    %380 = arith.divf %378, %379 : vector<2x256xf32>
    %381 = math.tanh %375 : vector<2x256xf32>
    %382 = vector.extract_strided_slice %380 {offsets = [0, 192], sizes = [2, 64], strides = [1, 1]} : vector<2x256xf32> to vector<2x64xf32>
    %383 = vector.extract_strided_slice %380 {offsets = [0, 0], sizes = [2, 64], strides = [1, 1]} : vector<2x256xf32> to vector<2x64xf32>
    %384 = vector.extract_strided_slice %381 {offsets = [0, 128], sizes = [2, 64], strides = [1, 1]} : vector<2x256xf32> to vector<2x64xf32>
    %385 = arith.mulf %383, %384 : vector<2x64xf32>
    %386 = math.tanh %385 : vector<2x64xf32>
    %387 = arith.mulf %382, %386 : vector<2x64xf32>
    %cst_69 = arith.constant dense<0.000000e+00> : vector<2x256xf32>
    %388 = tpu.matmul %387, %3, %cst_69 {dimension_numbers = #tpu.dot_dimension_numbers<[1], [0], [0], [1], [0, 0, 1, 1], [], []>} : vector<2x64xf32>, vector<64x256xf32>, vector<2x256xf32> -> vector<2x256xf32>
    %389 = vector.broadcast %9 : vector<1x256xf32> to vector<2x256xf32>
    %390 = arith.addf %388, %389 : vector<2x256xf32>
    %391 = arith.negf %390 : vector<2x256xf32>
    %392 = math.exp %391 : vector<2x256xf32>
    %cst_70 = arith.constant 1.000000e+00 : f32
    %393 = vector.broadcast %cst_70 : f32 to vector<2x256xf32>
    %394 = arith.addf %393, %392 : vector<2x256xf32>
    %395 = arith.divf %393, %394 : vector<2x256xf32>
    %396 = math.tanh %390 : vector<2x256xf32>
    %397 = vector.extract_strided_slice %395 {offsets = [0, 192], sizes = [2, 64], strides = [1, 1]} : vector<2x256xf32> to vector<2x64xf32>
    %398 = vector.extract_strided_slice %395 {offsets = [0, 0], sizes = [2, 64], strides = [1, 1]} : vector<2x256xf32> to vector<2x64xf32>
    %399 = vector.extract_strided_slice %396 {offsets = [0, 128], sizes = [2, 64], strides = [1, 1]} : vector<2x256xf32> to vector<2x64xf32>
    %400 = arith.mulf %398, %399 : vector<2x64xf32>
    %401 = math.tanh %400 : vector<2x64xf32>
    %402 = arith.mulf %397, %401 : vector<2x64xf32>
    %cst_71 = arith.constant dense<0.000000e+00> : vector<2x32xf32>
    %403 = tpu.matmul %402, %5, %cst_71 {dimension_numbers = #tpu.dot_dimension_numbers<[1], [0], [0], [1], [0, 0, 1, 1], [], []>} : vector<2x64xf32>, vector<64x32xf32>, vector<2x32xf32> -> vector<2x32xf32>
    %404 = vector.broadcast %10 : vector<1x32xf32> to vector<2x32xf32>
    %405 = arith.addf %403, %404 : vector<2x32xf32>
    %cst_72 = arith.constant 0.000000e+00 : f32
    %406 = vector.broadcast %cst_72 : f32 to vector<2x32xf32>
    %407 = arith.maximumf %405, %406 : vector<2x32xf32>
    %cst_73 = arith.constant dense<0.000000e+00> : vector<2x1xf32>
    %408 = tpu.matmul %407, %6, %cst_73 {dimension_numbers = #tpu.dot_dimension_numbers<[1], [0], [0], [1], [0, 0, 1, 1], [], []>} : vector<2x32xf32>, vector<32x1xf32>, vector<2x1xf32> -> vector<2x1xf32>
    %409 = vector.broadcast %11 : vector<1x1xf32> to vector<2x1xf32>
    %410 = arith.addf %408, %409 : vector<2x1xf32>
    %c0_74 = arith.constant 0 : index
    %c0_75 = arith.constant 0 : index
    %411 = vector.load %arg3[%c0_74, %c0_75] : memref<2x1xf32, #tpu.memory_space<vmem>>, vector<2x1xf32>
    tpu.vector_store %arg3[%c0_74, %c0_75], %410 {strides = array<i32>} : memref<2x1xf32, #tpu.memory_space<vmem>>, vector<2x1xf32>,
    return
  }
}

</mosaic_0001>

<llo_original>
// kernel: predictor_forward.1
$region0: #{predictor_forward.1}
  #allocation0 [shape = 'u32[]', space=smem, size = 0x4, offset = 0x4, fixed_abs, tag = 'smem constant byte address 0x4 - core index']
  #allocation1 [shape = 'u32[144,128]{1,0:T(1,128)}', space=vmem, size = 0x12000, scoped, tag = 'internal scratch']
  #allocation2 [shape = 'f32[16,64]{1,0:T(8,128)}', space=vmem, size = 0x2000, scoped, tag = 'scratch operand']
  %s0 = inlined_call_operand.hbm [shape: f32[2,8,8], index: 0, kind: input, shape index: {}]
  %s1 = inlined_call_operand.hbm [shape: f32[344,256], index: 1, kind: input, shape index: {}]
  %s2 = inlined_call_operand.hbm [shape: f32[72,512], index: 2, kind: input, shape index: {}]
  %s3 = inlined_call_operand.vmem [shape: f32[2,1], index: 3, kind: output, shape index: {}]
  %s4 = sld [smem:[#allocation0]]
  $region34: #{predictor_forward.1} parent=0
    _
  %s6 = ssub.s32 1, %s4
  %s7 = scalar_select 0, %s6, %s4
  $region1: #{predictor_forward.1} parent=0
    #allocation3 [shape = 'u8[8192]{0}', space=vmem, size = 0x2000, scoped, tag = 'input window, operand 0, single buffered']
    #allocation4 [shape = 's32[1]{0}', space=sflag, size = 0x4, scoped, tag = 'scoped memory for predictor_forward.1']
    #allocation5 [shape = 'u8[352256]{0}', space=vmem, size = 0x56000, scoped, tag = 'input window, operand 1, single buffered']
    #allocation6 [shape = 's32[1]{0}', space=sflag, size = 0x4, scoped, tag = 'scoped memory for predictor_forward.1']
    #allocation7 [shape = 'u8[147456]{0}', space=vmem, size = 0x24000, scoped, tag = 'input window, operand 2, single buffered']
    %8 = vsyncpa [#allocation4], 0
    %9 = vsyncpa [#allocation6], 0
    // Predicated region
    $region2: #{predictor_forward.1} parent=1 // pred_check
      _
    $region3: #{predictor_forward.1} parent=1 // pred_check_branch
      %11 = sbr.rel (0) target = $region5
    $region4: #{predictor_forward.1} parent=1 // pred_region
      %s13 = ssub.s32 256, 256
      %14 = vsyncadd [#allocation4], %s13
      %s15 = sshll.u32 [#allocation3], 4
      %s16 = int_to_ptr.vmem [resolvable:$true] %s15
      %21 = dma.hbm_to_vmem [thread:$0]  %s0, 256, %s16, [#allocation4], 128, 128, 8
    $region5: #{predictor_forward.1} parent=1 // pred_fallthru
      _
    // Predicated region
    $region6: #{predictor_forward.1} parent=1 // pred_check
      _
    $region7: #{predictor_forward.1} parent=1 // pred_check_branch
      %23 = sbr.rel (0) target = $region9
    $region8: #{predictor_forward.1} parent=1 // pred_region
      %s25 = ssub.s32 11008, 11008
      %26 = vsyncadd [#allocation6], %s25
      %s27 = sshll.u32 [#allocation5], 4
      %s28 = int_to_ptr.vmem [resolvable:$true] %s27
      %33 = dma.hbm_to_vmem [thread:$0]  %s1, 11008, %s28, [#allocation6], 256, 256, 16
    $region9: #{predictor_forward.1} parent=1 // pred_fallthru
      _
    // Predicated region
    $region10: #{predictor_forward.1} parent=1 // pred_check
      _
    $region11: #{predictor_forward.1} parent=1 // pred_check_branch
      %35 = sbr.rel (0) target = $region13
    $region12: #{predictor_forward.1} parent=1 // pred_region
      %s37 = ssub.s32 4608, 4608
      %38 = vsyncadd [#allocation6], %s37
      %s39 = sshll.u32 [#allocation7], 4
      %s40 = int_to_ptr.vmem [resolvable:$true] %s39
      %45 = dma.hbm_to_vmem [thread:$0]  %s2, 4608, %s40, [#allocation6], 512, 512, 32
    $region13: #{predictor_forward.1} parent=1 // pred_fallthru
      _
    // Predicated region
    $region14: #{predictor_forward.1} parent=1 // pred_check
      _
    $region15: #{predictor_forward.1} parent=1 // pred_check_branch
      %47 = sbr.rel (0) target = $region17
    $region16: #{predictor_forward.1} parent=1 // pred_region
      %48 = dma.done [#allocation4], 256
    $region17: #{predictor_forward.1} parent=1 // pred_fallthru
      _
    // Predicated region
    $region18: #{predictor_forward.1} parent=1 // pred_check
      _
    $region19: #{predictor_forward.1} parent=1 // pred_check_branch
      %50 = sbr.rel (0) target = $region21
    $region20: #{predictor_forward.1} parent=1 // pred_region
      %51 = dma.done [#allocation6], 11008
    $region21: #{predictor_forward.1} parent=1 // pred_fallthru
      _
    // Predicated region
    $region22: #{predictor_forward.1} parent=1 // pred_check
      _
    $region23: #{predictor_forward.1} parent=1 // pred_check_branch
      %53 = sbr.rel (0) target = $region25
    $region24: #{predictor_forward.1} parent=1 // pred_region
      %54 = dma.done [#allocation6], 4608
    $region25: #{predictor_forward.1} parent=1 // pred_fallthru
      _
    %v55 = vld [vmem:[#allocation5] sm:$0xff]
    %v56 = vld [vmem:[#allocation5 + $0x8] sm:$0xff]
    %v57 = vld [vmem:[#allocation5 + $0x10] sm:$0xff]
    %v58 = vld [vmem:[#allocation5 + $0x18] sm:$0xff]
    %v59 = vld [vmem:[#allocation5 + $0x20] sm:$0xff]
    %v60 = vld [vmem:[#allocation5 + $0x28] sm:$0xff]
    %v61 = vld [vmem:[#allocation5 + $0x30] sm:$0xff]
    %v62 = vld [vmem:[#allocation5 + $0x38] sm:$0xff]
    %v63 = vld [vmem:[#allocation5 + $0x40] sm:$0xff]
    %v64 = vld [vmem:[#allocation5 + $0x48] sm:$0xff]
    %v65 = vld [vmem:[#allocation5 + $0x50] sm:$0xff]
    %v66 = vld [vmem:[#allocation5 + $0x58] sm:$0xff]
    %v67 = vld [vmem:[#allocation5 + $0x60] sm:$0xff]
    %v68 = vld [vmem:[#allocation5 + $0x68] sm:$0xff]
    %v69 = vld [vmem:[#allocation5 + $0x70] sm:$0xff]
    %v70 = vld [vmem:[#allocation5 + $0x78] sm:$0xff]
    %v71 = vld [vmem:[#allocation5 + $0x80] sm:$0xff]
    %v72 = vld [vmem:[#allocation5 + $0x88] sm:$0xff]
    %v73 = vld [vmem:[#allocation5 + $0x90] sm:$0xff]
    %v74 = vld [vmem:[#allocation5 + $0x98] sm:$0xff]
    %v75 = vld [vmem:[#allocation5 + $0xa0] sm:$0xff]
    %v76 = vld [vmem:[#allocation5 + $0xa8] sm:$0xff]
    %v77 = vld [vmem:[#allocation5 + $0xb0] sm:$0xff]
    %v78 = vld [vmem:[#allocation5 + $0xb8] sm:$0xff]
    %v79 = vld [vmem:[#allocation5 + $0xc0] sm:$0xff]
    %v80 = vld [vmem:[#allocation5 + $0xc8] sm:$0xff]
    %v81 = vld [vmem:[#allocation5 + $0xd0] sm:$0xff]
    %v82 = vld [vmem:[#allocation5 + $0xd8] sm:$0xff]
    %v83 = vld [vmem:[#allocation5 + $0xe0] sm:$0xff]
    %v84 = vld [vmem:[#allocation5 + $0xe8] sm:$0xff]
    %v85 = vld [vmem:[#allocation5 + $0xf0] sm:$0xff]
    %v86 = vld [vmem:[#allocation5 + $0xf8] sm:$0xff]
    %v87 = vld [vmem:[#allocation5 + $0x100] sm:$0xff]
    %v88 = vld [vmem:[#allocation5 + $0x108] sm:$0xff]
    %v89 = vld [vmem:[#allocation5 + $0x110] sm:$0xff]
    %v90 = vld [vmem:[#allocation5 + $0x118] sm:$0xff]
    %v91 = vld [vmem:[#allocation5 + $0x120] sm:$0xff]
    %v92 = vld [vmem:[#allocation5 + $0x128] sm:$0xff]
    %v93 = vld [vmem:[#allocation5 + $0x130] sm:$0xff]
    %v94 = vld [vmem:[#allocation5 + $0x138] sm:$0xff]
    %v95 = vld [vmem:[#allocation5 + $0x140] sm:$0xff]
    %v96 = vld [vmem:[#allocation5 + $0x148] sm:$0xff]
    %v97 = vld [vmem:[#allocation5 + $0x150] sm:$0xff]
    %v98 = vld [vmem:[#allocation5 + $0x158] sm:$0xff]
    %v99 = vld [vmem:[#allocation5 + $0x160] sm:$0xff]
    %v100 = vld [vmem:[#allocation5 + $0x168] sm:$0xff]
    %v101 = vld [vmem:[#allocation5 + $0x170] sm:$0xff]
    %v102 = vld [vmem:[#allocation5 + $0x178] sm:$0xff]
    %v103 = vld [vmem:[#allocation5 + $0x180] sm:$0xff]
    %v104 = vld [vmem:[#allocation5 + $0x188] sm:$0xff]
    %v105 = vld [vmem:[#allocation5 + $0x190] sm:$0xff]
    %v106 = vld [vmem:[#allocation5 + $0x198] sm:$0xff]
    %v107 = vld [vmem:[#allocation5 + $0x1a0] sm:$0xff]
    %v108 = vld [vmem:[#allocation5 + $0x1b0] sm:$0xff]
    %v109 = vld [vmem:[#allocation5 + $0x1c0] sm:$0xff]
    %v110 = vld [vmem:[#allocation5 + $0x1d0] sm:$0xff]
    %v111 = vld [vmem:[#allocation5 + $0x1e0] sm:$0xff]
    %v112 = vld [vmem:[#allocation5 + $0x1f0] sm:$0xff]
    %v113 = vld [vmem:[#allocation5 + $0x200] sm:$0xff]
    %v114 = vld [vmem:[#allocation5 + $0x210] sm:$0xff]
    %v115 = vld [vmem:[#allocation5 + $0x220] sm:$0xff]
    %v116 = vld [vmem:[#allocation5 + $0x230] sm:$0xff]
    %v117 = vld [vmem:[#allocation5 + $0x240] sm:$0xff]
    %v118 = vld [vmem:[#allocation5 + $0x250] sm:$0xff]
    %v119 = vld [vmem:[#allocation5 + $0x260] sm:$0xff]
    %v120 = vld [vmem:[#allocation5 + $0x270] sm:$0xff]
    %v121 = vld [vmem:[#allocation5 + $0x280] sm:$0xff]
    %v122 = vld [vmem:[#allocation5 + $0x290] sm:$0xff]
    %s123 = scalar_lea.vmem [#allocation5], 672
    %v124 = vld [vmem:[%s123] ss:$8 sm:$0x3]
    %s125 = scalar_lea.vmem [#allocation5], 673
    %v126 = vld [vmem:[%s125] ss:$8 sm:$0x3]
    %s127 = scalar_lea.vmem [#allocation5], 674
    %v128 = vld [vmem:[%s127] ss:$8 sm:$0x3]
    %v129 = vld [vmem:[#allocation5 + $0x2a3] ss:$0 sm:$0xff]
    %v130 = vld [vmem:[#allocation5 + $0x2a4] ss:$0 sm:$0xff]
    %v131 = vld [vmem:[#allocation7] sm:$0xff]
    %v132 = vld [vmem:[#allocation7 + $0x8] sm:$0xff]
    %v133 = vld [vmem:[#allocation7 + $0x10] sm:$0xff]
    %v134 = vld [vmem:[#allocation7 + $0x18] sm:$0xff]
    %v135 = vld [vmem:[#allocation7 + $0x20] sm:$0xff]
    %v136 = vld [vmem:[#allocation7 + $0x28] sm:$0xff]
    %v137 = vld [vmem:[#allocation7 + $0x30] sm:$0xff]
    %v138 = vld [vmem:[#allocation7 + $0x38] sm:$0xff]
    %v139 = vld [vmem:[#allocation7 + $0x40] sm:$0xff]
    %v140 = vld [vmem:[#allocation7 + $0x48] sm:$0xff]
    %v141 = vld [vmem:[#allocation7 + $0x50] sm:$0xff]
    %v142 = vld [vmem:[#allocation7 + $0x58] sm:$0xff]
    %v143 = vld [vmem:[#allocation7 + $0x60] sm:$0xff]
    %v144 = vld [vmem:[#allocation7 + $0x68] sm:$0xff]
    %v145 = vld [vmem:[#allocation7 + $0x70] sm:$0xff]
    %v146 = vld [vmem:[#allocation7 + $0x78] sm:$0xff]
    %v147 = vld [vmem:[#allocation7 + $0x80] sm:$0xff]
    %v148 = vld [vmem:[#allocation7 + $0x88] sm:$0xff]
    %v149 = vld [vmem:[#allocation7 + $0x90] sm:$0xff]
    %v150 = vld [vmem:[#allocation7 + $0x98] sm:$0xff]
    %v151 = vld [vmem:[#allocation7 + $0xa0] sm:$0xff]
    %v152 = vld [vmem:[#allocation7 + $0xa8] sm:$0xff]
    %v153 = vld [vmem:[#allocation7 + $0xb0] sm:$0xff]
    %v154 = vld [vmem:[#allocation7 + $0xb8] sm:$0xff]
    %v155 = vld [vmem:[#allocation7 + $0xc0] sm:$0xff]
    %v156 = vld [vmem:[#allocation7 + $0xc8] sm:$0xff]
    %v157 = vld [vmem:[#allocation7 + $0xd0] sm:$0xff]
    %v158 = vld [vmem:[#allocation7 + $0xd8] sm:$0xff]
    %v159 = vld [vmem:[#allocation7 + $0xe0] sm:$0xff]
    %v160 = vld [vmem:[#allocation7 + $0xe8] sm:$0xff]
    %v161 = vld [vmem:[#allocation7 + $0xf0] sm:$0xff]
    %v162 = vld [vmem:[#allocation7 + $0xf8] sm:$0xff]
    %s163 = scalar_lea.vmem [#allocation7], 256
    %v164 = vld [vmem:[%s163] ss:$8 sm:$0xf]
    %v165 = vld [vmem:[#allocation3] sm:$0xff]
    %v166 = vld [vmem:[#allocation3 + $0x8] sm:$0xff]
    %v169 = vrot.slane %v166, 7
    %vm170 = vcmask 1041409
    %v171 = vsel %vm170, %v169, %v165
    %v173 = vrot.slane %v165, 7
    %v174 = vrot.slane %v166, 6
    %vm175 = vcmask 1043459
    %v176 = vsel %vm175, %v174, %v173
    %v178 = vrot.slane %v165, 6
    %v179 = vrot.slane %v166, 5
    %vm180 = vcmask 1045509
    %v181 = vsel %vm180, %v179, %v178
    %v183 = vrot.slane %v165, 5
    %v184 = vrot.slane %v166, 4
    %vm185 = vcmask 1047559
    %v186 = vsel %vm185, %v184, %v183
    %v188 = vrot.slane %v165, 4
    %v189 = vrot.slane %v166, 3
    %v190 = vsel %vm170, %v189, %v188
    %v192 = vrot.slane %v165, 3
    %v193 = vrot.slane %v166, 2
    %v194 = vsel %vm175, %v193, %v192
    %v196 = vrot.slane %v165, 2
    %v197 = vrot.slane %v166, 1
    %v198 = vsel %vm180, %v197, %v196
    %v200 = vrot.slane %v165, 1
    %v201 = vsel %vm185, %v166, %v200
    %vm203 = vcmask 1041408
    %v204 = vsel %vm203, %v171, %v176
    %vm205 = vcmask 1043456
    %v206 = vsel %vm205, %v204, %v181
    %vm207 = vcmask 1045504
    %v208 = vsel %vm207, %v206, %v186
    %v209 = vsel %vm203, %v190, %v194
    %v210 = vsel %vm205, %v209, %v198
    %v211 = vsel %vm207, %v210, %v201
    %v212 = vsel %vm170, %v174, %v173
    %v214 = vsel %vm175, %v189, %v188
    %v216 = vsel %vm180, %v166, %v200
    %v218 = vsel %vm185, %v179, %v178
    %v220 = vsel %vm170, %v193, %v192
    %v222 = vsel %vm175, %v169, %v165
    %v224 = vsel %vm180, %v184, %v183
    %v226 = vsel %vm185, %v197, %v196
    %v228 = vsel %vm203, %v212, %v214
    %v229 = vsel %vm205, %v228, %v216
    %v230 = vsel %vm207, %v229, %v218
    %v231 = vsel %vm203, %v220, %v222
    %v232 = vsel %vm205, %v231, %v224
    %v233 = vsel %vm207, %v232, %v226
    %236 = vrot.lane.b32.xlu0 %v230, 8
    %v237 = vpop.permute.xlu0 %236
    %238 = vrot.lane.b32.xlu0 %v233, 8
    %v239 = vpop.permute.xlu0 %238
    %vm242 = vcmask 64512
    %v243 = vsel %vm242, %v208, %v237
    %v244 = vsel %vm242, %v211, %v239
    %v246 = vlaneseq
    %v247 = vshrl.u32 %v246, 7
    %v248 = vsub.s32 0, %v247
    %v249 = vrot.slane %v124, %v248
    %v250 = vlaneseq
    %v251 = vshrl.u32 %v250, 7
    %v252 = vsub.s32 1, %v251
    %v253 = vrot.slane %v124, %v252
    %vm256 = vcmask 130048
    %v258 = vsel %vm256, %v243, 0
    %v261 = vsel %vm256, %v244, 0
    %263 = vmatprep.subr.mxu0 0.0
    %264 = vmatpush1.msra.mxu0 0.0
    %265 = vmatprep.subr.mxu0 0.0
    %266 = vmatpush1.msra.mxu0 0.0
    %267 = vmatprep.subr.mxu0 0.0
    %268 = vmatpush1.msra.mxu0 0.0
    %269 = vmatprep.subr.mxu0 0.0
    %270 = vmatpush1.msra.mxu0 0.0
    %271 = vmatprep.subr.mxu0 0.0
    %272 = vmatpush1.msra.mxu0 0.0
    %273 = vmatprep.subr.mxu0 0.0
    %274 = vmatpush1.msra.mxu0 0.0
    %275 = vmatprep.subr.mxu0 0.0
    %276 = vmatpush1.msra.mxu0 0.0
    %277 = vmatprep.subr.mxu0 0.0
    %278 = vmatpush1.msra.mxu0 0.0
    %279 = vmatprep.subr.mxu0 0.0
    %280 = vmatpush1.msra.mxu0 0.0
    %281 = vmatprep.subr.mxu0 0.0
    %282 = vmatpush1.msra.mxu0 0.0
    %283 = vmatprep.subr.mxu0 0.0
    %284 = vmatpush1.msra.mxu0 0.0
    %285 = vmatprep.subr.mxu0 0.0
    %286 = vmatpush1.msra.mxu0 0.0
    %287 = vmatprep.subr.mxu0 0.0
    %288 = vmatpush1.msra.mxu0 0.0
    %289 = vmatprep.subr.mxu0 0.0
    %290 = vmatpush1.msra.mxu0 0.0
    %291 = vmatprep.subr.mxu0 %v58
    %292 = vmatpush1.msra.mxu0 %v57
    %293 = vmatprep.subr.mxu0 %v56
    %294 = vmatpush1.msra.mxu0 %v55
    %295 = vmatprep.subr.mxu0 0.0
    %296 = vmatpush2.msra.mxu0 0.0
    %297 = vmatprep.subr.mxu0 0.0
    %298 = vmatpush2.msra.mxu0 0.0
    %299 = vmatprep.subr.mxu0 0.0
    %300 = vmatpush2.msra.mxu0 0.0
    %301 = vmatprep.subr.mxu0 0.0
    %302 = vmatpush2.msra.mxu0 0.0
    %303 = vmatprep.subr.mxu0 0.0
    %304 = vmatpush2.msra.mxu0 0.0
    %305 = vmatprep.subr.mxu0 0.0
    %306 = vmatpush2.msra.mxu0 0.0
    %307 = vmatprep.subr.mxu0 0.0
    %308 = vmatpush2.msra.mxu0 0.0
    %309 = vmatprep.subr.mxu0 0.0
    %310 = vmatpush2.msra.mxu0 0.0
    %311 = vmatprep.subr.mxu0 0.0
    %312 = vmatpush2.msra.mxu0 0.0
    %313 = vmatprep.subr.mxu0 0.0
    %314 = vmatpush2.msra.mxu0 0.0
    %315 = vmatprep.subr.mxu0 0.0
    %316 = vmatpush2.msra.mxu0 0.0
    %317 = vmatprep.subr.mxu0 0.0
    %318 = vmatpush2.msra.mxu0 0.0
    %319 = vmatprep.subr.mxu0 0.0
    %320 = vmatpush2.msra.mxu0 0.0
    %321 = vmatprep.subr.mxu0 0.0
    %322 = vmatpush2.msra.mxu0 0.0
    %323 = vmatprep.subr.mxu0 0.0
    %324 = vmatpush2.msra.mxu0 0.0
    %325 = vmatprep.subr.mxu0 0.0
    %326 = vmatpush2.msra.mxu0 0.0
    %327 = vmatprep.mubr.f32.mxu0 0.0
    %328 = vmatmul.mubr.f32.gmra.mxu0 %v258
    %v329 = vpop.f32.mrf.mxu0
    %v330 = vadd.f32 %v249, %v329
    %v331 = vpop.f32.mrf.mxu0
    %v332 = vadd.f32 %v253, %v331
    %333 = vmatprep.mubr.f32.mxu0 0.0
    %334 = vmatmul.mubr.f32.gmra.mxu0 %v261
    %v335 = vpop.f32.mrf.mxu0
    %v336 = vadd.f32 %v249, %v335
    %v337 = vpop.f32.mrf.mxu0
    %v338 = vadd.f32 %v253, %v337
    %339 = vdwg.mxu0
    %vm340 = vcmask 523264
    %v342 = vsel %vm340, 0.0, 0
    %344 = vmatprep.subr.mxu0 0.0
    %345 = vmatpush1.msra.mxu0 0.0
    %346 = vmatprep.subr.mxu0 0.0
    %347 = vmatpush1.msra.mxu0 0.0
    %348 = vmatprep.subr.mxu0 0.0
    %349 = vmatpush1.msra.mxu0 0.0
    %350 = vmatprep.subr.mxu0 0.0
    %351 = vmatpush1.msra.mxu0 0.0
    %352 = vmatprep.subr.mxu0 0.0
    %353 = vmatpush1.msra.mxu0 0.0
    %354 = vmatprep.subr.mxu0 0.0
    %355 = vmatpush1.msra.mxu0 0.0
    %356 = vmatprep.subr.mxu0 0.0
    %357 = vmatpush1.msra.mxu0 0.0
    %358 = vmatprep.subr.mxu0 0.0
    %359 = vmatpush1.msra.mxu0 0.0
    %360 = vmatprep.subr.mxu0 %v74
    %361 = vmatpush1.msra.mxu0 %v73
    %362 = vmatprep.subr.mxu0 %v72
    %363 = vmatpush1.msra.mxu0 %v71
    %364 = vmatprep.subr.mxu0 %v70
    %365 = vmatpush1.msra.mxu0 %v69
    %366 = vmatprep.subr.mxu0 %v68
    %367 = vmatpush1.msra.mxu0 %v67
    %368 = vmatprep.subr.mxu0 %v66
    %369 = vmatpush1.msra.mxu0 %v65
    %370 = vmatprep.subr.mxu0 %v64
    %371 = vmatpush1.msra.mxu0 %v63
    %372 = vmatprep.subr.mxu0 %v62
    %373 = vmatpush1.msra.mxu0 %v61
    %374 = vmatprep.subr.mxu0 %v60
    %375 = vmatpush1.msra.mxu0 %v59
    %376 = vmatprep.subr.mxu0 0.0
    %377 = vmatpush2.msra.mxu0 0.0
    %378 = vmatprep.subr.mxu0 0.0
    %379 = vmatpush2.msra.mxu0 0.0
    %380 = vmatprep.subr.mxu0 0.0
    %381 = vmatpush2.msra.mxu0 0.0
    %382 = vmatprep.subr.mxu0 0.0
    %383 = vmatpush2.msra.mxu0 0.0
    %384 = vmatprep.subr.mxu0 0.0
    %385 = vmatpush2.msra.mxu0 0.0
    %386 = vmatprep.subr.mxu0 0.0
    %387 = vmatpush2.msra.mxu0 0.0
    %388 = vmatprep.subr.mxu0 0.0
    %389 = vmatpush2.msra.mxu0 0.0
    %390 = vmatprep.subr.mxu0 0.0
    %391 = vmatpush2.msra.mxu0 0.0
    %392 = vmatprep.subr.mxu0 0.0
    %393 = vmatpush2.msra.mxu0 0.0
    %394 = vmatprep.subr.mxu0 0.0
    %395 = vmatpush2.msra.mxu0 0.0
    %396 = vmatprep.subr.mxu0 0.0
    %397 = vmatpush2.msra.mxu0 0.0
    %398 = vmatprep.subr.mxu0 0.0
    %399 = vmatpush2.msra.mxu0 0.0
    %400 = vmatprep.subr.mxu0 0.0
    %401 = vmatpush2.msra.mxu0 0.0
    %402 = vmatprep.subr.mxu0 0.0
    %403 = vmatpush2.msra.mxu0 0.0
    %404 = vmatprep.subr.mxu0 0.0
    %405 = vmatpush2.msra.mxu0 0.0
    %406 = vmatprep.subr.mxu0 0.0
    %407 = vmatpush2.msra.mxu0 0.0
    %408 = vmatprep.mubr.f32.mxu0 0.0
    %409 = vmatmul.mubr.f32.gmra.mxu0 %v342
    %v410 = vpop.f32.mrf.mxu0
    %v411 = vadd.f32 0.0, %v410
    %v412 = vpop.f32.mrf.mxu0
    %v413 = vadd.f32 0.0, %v412
    %414 = vdwg.mxu0
    %v415 = vadd.f32 %v330, %v411
    %v416 = vadd.f32 %v332, %v413
    %v417 = vxor.u32 %v415, 2147483648
    %v418 = vxor.u32 %v416, 2147483648
    %v419 = vmul.f32 %v417, 1.442695
    %v420 = vpow.pop %v419
    %v421 = vmul.f32 %v418, 1.442695
    %v422 = vpow.pop %v421
    %v423 = vadd.f32 %v420, 1.0
    %v424 = vadd.f32 %v422, 1.0
    %v425 = vrcp.pop %v423
    %v426 = vmul.f32 1.0, %v425
    %v427 = vrcp.pop %v424
    %v428 = vmul.f32 1.0, %v427
    %v429 = vtanh.pop %v416
    %v430 = vmul.f32 %v426, 0.0
    %v431 = vmul.f32 %v426, %v429
    %433 = vrot.lane.b32.xlu0 %v431, 64
    %v434 = vpop.permute.xlu0 %433
    %v436 = vadd.f32 %v430, %v434
    %v437 = vtanh.pop %v436
    %v438 = vmul.f32 %v428, %v437
    %440 = vrot.lane.b32.xlu0 %v438, 64
    %v441 = vpop.permute.xlu0 %440
    %vm443 = vcmask 517120
    %444 = vst.msk [vmem:[#allocation2] sm:$0x3] %vm443, %v441
    %v445 = vsel %vm340, %v441, 0
    %447 = vmatprep.subr.mxu0 0.0
    %448 = vmatpush1.msra.mxu0 0.0
    %449 = vmatprep.subr.mxu0 0.0
    %450 = vmatpush1.msra.mxu0 0.0
    %451 = vmatprep.subr.mxu0 0.0
    %452 = vmatpush1.msra.mxu0 0.0
    %453 = vmatprep.subr.mxu0 0.0
    %454 = vmatpush1.msra.mxu0 0.0
    %455 = vmatprep.subr.mxu0 0.0
    %456 = vmatpush1.msra.mxu0 0.0
    %457 = vmatprep.subr.mxu0 0.0
    %458 = vmatpush1.msra.mxu0 0.0
    %459 = vmatprep.subr.mxu0 0.0
    %460 = vmatpush1.msra.mxu0 0.0
    %461 = vmatprep.subr.mxu0 0.0
    %462 = vmatpush1.msra.mxu0 0.0
    %463 = vmatprep.subr.mxu0 %v74
    %464 = vmatpush1.msra.mxu0 %v73
    %465 = vmatprep.subr.mxu0 %v72
    %466 = vmatpush1.msra.mxu0 %v71
    %467 = vmatprep.subr.mxu0 %v70
    %468 = vmatpush1.msra.mxu0 %v69
    %469 = vmatprep.subr.mxu0 %v68
    %470 = vmatpush1.msra.mxu0 %v67
    %471 = vmatprep.subr.mxu0 %v66
    %472 = vmatpush1.msra.mxu0 %v65
    %473 = vmatprep.subr.mxu0 %v64
    %474 = vmatpush1.msra.mxu0 %v63
    %475 = vmatprep.subr.mxu0 %v62
    %476 = vmatpush1.msra.mxu0 %v61
    %477 = vmatprep.subr.mxu0 %v60
    %478 = vmatpush1.msra.mxu0 %v59
    %479 = vmatprep.subr.mxu0 0.0
    %480 = vmatpush2.msra.mxu0 0.0
    %481 = vmatprep.subr.mxu0 0.0
    %482 = vmatpush2.msra.mxu0 0.0
    %483 = vmatprep.subr.mxu0 0.0
    %484 = vmatpush2.msra.mxu0 0.0
    %485 = vmatprep.subr.mxu0 0.0
    %486 = vmatpush2.msra.mxu0 0.0
    %487 = vmatprep.subr.mxu0 0.0
    %488 = vmatpush2.msra.mxu0 0.0
    %489 = vmatprep.subr.mxu0 0.0
    %490 = vmatpush2.msra.mxu0 0.0
    %491 = vmatprep.subr.mxu0 0.0
    %492 = vmatpush2.msra.mxu0 0.0
    %493 = vmatprep.subr.mxu0 0.0
    %494 = vmatpush2.msra.mxu0 0.0
    %495 = vmatprep.subr.mxu0 0.0
    %496 = vmatpush2.msra.mxu0 0.0
    %497 = vmatprep.subr.mxu0 0.0
    %498 = vmatpush2.msra.mxu0 0.0
    %499 = vmatprep.subr.mxu0 0.0
    %500 = vmatpush2.msra.mxu0 0.0
    %501 = vmatprep.subr.mxu0 0.0
    %502 = vmatpush2.msra.mxu0 0.0
    %503 = vmatprep.subr.mxu0 0.0
    %504 = vmatpush2.msra.mxu0 0.0
    %505 = vmatprep.subr.mxu0 0.0
    %506 = vmatpush2.msra.mxu0 0.0
    %507 = vmatprep.subr.mxu0 0.0
    %508 = vmatpush2.msra.mxu0 0.0
    %509 = vmatprep.subr.mxu0 0.0
    %510 = vmatpush2.msra.mxu0 0.0
    %511 = vmatprep.mubr.f32.mxu0 0.0
    %512 = vmatmul.mubr.f32.gmra.mxu0 %v445
    %v513 = vpop.f32.mrf.mxu0
    %v514 = vadd.f32 0.0, %v513
    %v515 = vpop.f32.mrf.mxu0
    %v516 = vadd.f32 0.0, %v515
    %517 = vdwg.mxu0
    %v520 = vrot.slane %v514, 6
    %v521 = vrot.slane %v516, 6
    %v524 = vadd.f32 %v330, %v520
    %v525 = vadd.f32 %v332, %v521
    %v526 = vxor.u32 %v524, 2147483648
    %v527 = vxor.u32 %v525, 2147483648
    %v528 = vmul.f32 %v526, 1.442695
    %v529 = vpow.pop %v528
    %v530 = vmul.f32 %v527, 1.442695
    %v531 = vpow.pop %v530
    %v532 = vadd.f32 %v529, 1.0
    %v533 = vadd.f32 %v531, 1.0
    %v534 = vrcp.pop %v532
    %v535 = vmul.f32 1.0, %v534
    %v536 = vrcp.pop %v533
    %v537 = vmul.f32 1.0, %v536
    %v538 = vtanh.pop %v525
    %v540 = vrot.slane %v436, 6
    %v542 = vmul.f32 %v535, %v540
    %v543 = vmul.f32 %v535, %v538
    %545 = vrot.lane.b32.xlu0 %v543, 64
    %v546 = vpop.permute.xlu0 %545
    %v548 = vadd.f32 %v542, %v546
    %v549 = vtanh.pop %v548
    %v550 = vmul.f32 %v537, %v549
    %552 = vrot.lane.b32.xlu0 %v550, 64
    %v553 = vpop.permute.xlu0 %552
    %vm555 = vcmask 519170
    %556 = vst.msk [vmem:[#allocation2] sm:$0xc] %vm555, %v553
    %v557 = vrot.slane %v550, 2
    %558 = vrot.lane.b32.xlu0 %v557, 64
    %v559 = vpop.permute.xlu0 %558
    %v560 = vsel %vm340, %v559, 0
    %562 = vmatprep.subr.mxu0 0.0
    %563 = vmatpush1.msra.mxu0 0.0
    %564 = vmatprep.subr.mxu0 0.0
    %565 = vmatpush1.msra.mxu0 0.0
    %566 = vmatprep.subr.mxu0 0.0
    %567 = vmatpush1.msra.mxu0 0.0
    %568 = vmatprep.subr.mxu0 0.0
    %569 = vmatpush1.msra.mxu0 0.0
    %570 = vmatprep.subr.mxu0 0.0
    %571 = vmatpush1.msra.mxu0 0.0
    %572 = vmatprep.subr.mxu0 0.0
    %573 = vmatpush1.msra.mxu0 0.0
    %574 = vmatprep.subr.mxu0 0.0
    %575 = vmatpush1.msra.mxu0 0.0
    %576 = vmatprep.subr.mxu0 0.0
    %577 = vmatpush1.msra.mxu0 0.0
    %578 = vmatprep.subr.mxu0 %v74
    %579 = vmatpush1.msra.mxu0 %v73
    %580 = vmatprep.subr.mxu0 %v72
    %581 = vmatpush1.msra.mxu0 %v71
    %582 = vmatprep.subr.mxu0 %v70
    %583 = vmatpush1.msra.mxu0 %v69
    %584 = vmatprep.subr.mxu0 %v68
    %585 = vmatpush1.msra.mxu0 %v67
    %586 = vmatprep.subr.mxu0 %v66
    %587 = vmatpush1.msra.mxu0 %v65
    %588 = vmatprep.subr.mxu0 %v64
    %589 = vmatpush1.msra.mxu0 %v63
    %590 = vmatprep.subr.mxu0 %v62
    %591 = vmatpush1.msra.mxu0 %v61
    %592 = vmatprep.subr.mxu0 %v60
    %593 = vmatpush1.msra.mxu0 %v59
    %594 = vmatprep.subr.mxu0 0.0
    %595 = vmatpush2.msra.mxu0 0.0
    %596 = vmatprep.subr.mxu0 0.0
    %597 = vmatpush2.msra.mxu0 0.0
    %598 = vmatprep.subr.mxu0 0.0
    %599 = vmatpush2.msra.mxu0 0.0
    %600 = vmatprep.subr.mxu0 0.0
    %601 = vmatpush2.msra.mxu0 0.0
    %602 = vmatprep.subr.mxu0 0.0
    %603 = vmatpush2.msra.mxu0 0.0
    %604 = vmatprep.subr.mxu0 0.0
    %605 = vmatpush2.msra.mxu0 0.0
    %606 = vmatprep.subr.mxu0 0.0
    %607 = vmatpush2.msra.mxu0 0.0
    %608 = vmatprep.subr.mxu0 0.0
    %609 = vmatpush2.msra.mxu0 0.0
    %610 = vmatprep.subr.mxu0 0.0
    %611 = vmatpush2.msra.mxu0 0.0
    %612 = vmatprep.subr.mxu0 0.0
    %613 = vmatpush2.msra.mxu0 0.0
    %614 = vmatprep.subr.mxu0 0.0
    %615 = vmatpush2.msra.mxu0 0.0
    %616 = vmatprep.subr.mxu0 0.0
    %617 = vmatpush2.msra.mxu0 0.0
    %618 = vmatprep.subr.mxu0 0.0
    %619 = vmatpush2.msra.mxu0 0.0
    %620 = vmatprep.subr.mxu0 0.0
    %621 = vmatpush2.msra.mxu0 0.0
    %622 = vmatprep.subr.mxu0 0.0
    %623 = vmatpush2.msra.mxu0 0.0
    %624 = vmatprep.subr.mxu0 0.0
    %625 = vmatpush2.msra.mxu0 0.0
    %626 = vmatprep.mubr.f32.mxu0 0.0
    %627 = vmatmul.mubr.f32.gmra.mxu0 %v560
    %v628 = vpop.f32.mrf.mxu0
    %v629 = vadd.f32 0.0, %v628
    %v630 = vpop.f32.mrf.mxu0
    %v631 = vadd.f32 0.0, %v630
    %632 = vdwg.mxu0
    %v635 = vrot.slane %v629, 4
    %v636 = vrot.slane %v631, 4
    %v639 = vadd.f32 %v330, %v635
    %v640 = vadd.f32 %v332, %v636
    %v641 = vxor.u32 %v639, 2147483648
    %v642 = vxor.u32 %v640, 2147483648
    %v643 = vmul.f32 %v641, 1.442695
    %v644 = vpow.pop %v643
    %v645 = vmul.f32 %v642, 1.442695
    %v646 = vpow.pop %v645
    %v647 = vadd.f32 %v644, 1.0
    %v648 = vadd.f32 %v646, 1.0
    %v649 = vrcp.pop %v647
    %v650 = vmul.f32 1.0, %v649
    %v651 = vrcp.pop %v648
    %v652 = vmul.f32 1.0, %v651
    %v653 = vtanh.pop %v640
    %v655 = vrot.slane %v548, 6
    %v657 = vmul.f32 %v650, %v655
    %v658 = vmul.f32 %v650, %v653
    %660 = vrot.lane.b32.xlu0 %v658, 64
    %v661 = vpop.permute.xlu0 %660
    %v663 = vadd.f32 %v657, %v661
    %v664 = vtanh.pop %v663
    %v665 = vmul.f32 %v652, %v664
    %667 = vrot.lane.b32.xlu0 %v665, 64
    %v668 = vpop.permute.xlu0 %667
    %vm670 = vcmask 521220
    %671 = vst.msk [vmem:[#allocation2] sm:$0x30] %vm670, %v668
    %v672 = vrot.slane %v665, 4
    %673 = vrot.lane.b32.xlu0 %v672, 64
    %v674 = vpop.permute.xlu0 %673
    %v675 = vsel %vm340, %v674, 0
    %677 = vmatprep.subr.mxu0 0.0
    %678 = vmatpush1.msra.mxu0 0.0
    %679 = vmatprep.subr.mxu0 0.0
    %680 = vmatpush1.msra.mxu0 0.0
    %681 = vmatprep.subr.mxu0 0.0
    %682 = vmatpush1.msra.mxu0 0.0
    %683 = vmatprep.subr.mxu0 0.0
    %684 = vmatpush1.msra.mxu0 0.0
    %685 = vmatprep.subr.mxu0 0.0
    %686 = vmatpush1.msra.mxu0 0.0
    %687 = vmatprep.subr.mxu0 0.0
    %688 = vmatpush1.msra.mxu0 0.0
    %689 = vmatprep.subr.mxu0 0.0
    %690 = vmatpush1.msra.mxu0 0.0
    %691 = vmatprep.subr.mxu0 0.0
    %692 = vmatpush1.msra.mxu0 0.0
    %693 = vmatprep.subr.mxu0 %v74
    %694 = vmatpush1.msra.mxu0 %v73
    %695 = vmatprep.subr.mxu0 %v72
    %696 = vmatpush1.msra.mxu0 %v71
    %697 = vmatprep.subr.mxu0 %v70
    %698 = vmatpush1.msra.mxu0 %v69
    %699 = vmatprep.subr.mxu0 %v68
    %700 = vmatpush1.msra.mxu0 %v67
    %701 = vmatprep.subr.mxu0 %v66
    %702 = vmatpush1.msra.mxu0 %v65
    %703 = vmatprep.subr.mxu0 %v64
    %704 = vmatpush1.msra.mxu0 %v63
    %705 = vmatprep.subr.mxu0 %v62
    %706 = vmatpush1.msra.mxu0 %v61
    %707 = vmatprep.subr.mxu0 %v60
    %708 = vmatpush1.msra.mxu0 %v59
    %709 = vmatprep.subr.mxu0 0.0
    %710 = vmatpush2.msra.mxu0 0.0
    %711 = vmatprep.subr.mxu0 0.0
    %712 = vmatpush2.msra.mxu0 0.0
    %713 = vmatprep.subr.mxu0 0.0
    %714 = vmatpush2.msra.mxu0 0.0
    %715 = vmatprep.subr.mxu0 0.0
    %716 = vmatpush2.msra.mxu0 0.0
    %717 = vmatprep.subr.mxu0 0.0
    %718 = vmatpush2.msra.mxu0 0.0
    %719 = vmatprep.subr.mxu0 0.0
    %720 = vmatpush2.msra.mxu0 0.0
    %721 = vmatprep.subr.mxu0 0.0
    %722 = vmatpush2.msra.mxu0 0.0
    %723 = vmatprep.subr.mxu0 0.0
    %724 = vmatpush2.msra.mxu0 0.0
    %725 = vmatprep.subr.mxu0 0.0
    %726 = vmatpush2.msra.mxu0 0.0
    %727 = vmatprep.subr.mxu0 0.0
    %728 = vmatpush2.msra.mxu0 0.0
    %729 = vmatprep.subr.mxu0 0.0
    %730 = vmatpush2.msra.mxu0 0.0
    %731 = vmatprep.subr.mxu0 0.0
    %732 = vmatpush2.msra.mxu0 0.0
    %733 = vmatprep.subr.mxu0 0.0
    %734 = vmatpush2.msra.mxu0 0.0
    %735 = vmatprep.subr.mxu0 0.0
    %736 = vmatpush2.msra.mxu0 0.0
    %737 = vmatprep.subr.mxu0 0.0
    %738 = vmatpush2.msra.mxu0 0.0
    %739 = vmatprep.subr.mxu0 0.0
    %740 = vmatpush2.msra.mxu0 0.0
    %741 = vmatprep.mubr.f32.mxu0 0.0
    %742 = vmatmul.mubr.f32.gmra.mxu0 %v675
    %v743 = vpop.f32.mrf.mxu0
    %v744 = vadd.f32 0.0, %v743
    %v745 = vpop.f32.mrf.mxu0
    %v746 = vadd.f32 0.0, %v745
    %747 = vdwg.mxu0
    %v750 = vrot.slane %v744, 2
    %v751 = vrot.slane %v746, 2
    %v754 = vadd.f32 %v330, %v750
    %v755 = vadd.f32 %v332, %v751
    %v756 = vxor.u32 %v754, 2147483648
    %v757 = vxor.u32 %v755, 2147483648
    %v758 = vmul.f32 %v756, 1.442695
    %v759 = vpow.pop %v758
    %v760 = vmul.f32 %v757, 1.442695
    %v761 = vpow.pop %v760
    %v762 = vadd.f32 %v759, 1.0
    %v763 = vadd.f32 %v761, 1.0
    %v764 = vrcp.pop %v762
    %v765 = vmul.f32 1.0, %v764
    %v766 = vrcp.pop %v763
    %v767 = vmul.f32 1.0, %v766
    %v768 = vtanh.pop %v755
    %v770 = vrot.slane %v663, 6
    %v772 = vmul.f32 %v765, %v770
    %v773 = vmul.f32 %v765, %v768
    %775 = vrot.lane.b32.xlu0 %v773, 64
    %v776 = vpop.permute.xlu0 %775
    %v778 = vadd.f32 %v772, %v776
    %v779 = vtanh.pop %v778
    %v780 = vmul.f32 %v767, %v779
    %782 = vrot.lane.b32.xlu0 %v780, 64
    %v783 = vpop.permute.xlu0 %782
    %vm785 = vcmask 523270
    %786 = vst.msk [vmem:[#allocation2] sm:$0xc0] %vm785, %v783
    %v787 = vrot.slane %v780, 6
    %788 = vrot.lane.b32.xlu0 %v787, 64
    %v789 = vpop.permute.xlu0 %788
    %v790 = vsel %vm340, %v789, 0
    %792 = vmatprep.subr.mxu0 0.0
    %793 = vmatpush1.msra.mxu0 0.0
    %794 = vmatprep.subr.mxu0 0.0
    %795 = vmatpush1.msra.mxu0 0.0
    %796 = vmatprep.subr.mxu0 0.0
    %797 = vmatpush1.msra.mxu0 0.0
    %798 = vmatprep.subr.mxu0 0.0
    %799 = vmatpush1.msra.mxu0 0.0
    %800 = vmatprep.subr.mxu0 0.0
    %801 = vmatpush1.msra.mxu0 0.0
    %802 = vmatprep.subr.mxu0 0.0
    %803 = vmatpush1.msra.mxu0 0.0
    %804 = vmatprep.subr.mxu0 0.0
    %805 = vmatpush1.msra.mxu0 0.0
    %806 = vmatprep.subr.mxu0 0.0
    %807 = vmatpush1.msra.mxu0 0.0
    %808 = vmatprep.subr.mxu0 %v74
    %809 = vmatpush1.msra.mxu0 %v73
    %810 = vmatprep.subr.mxu0 %v72
    %811 = vmatpush1.msra.mxu0 %v71
    %812 = vmatprep.subr.mxu0 %v70
    %813 = vmatpush1.msra.mxu0 %v69
    %814 = vmatprep.subr.mxu0 %v68
    %815 = vmatpush1.msra.mxu0 %v67
    %816 = vmatprep.subr.mxu0 %v66
    %817 = vmatpush1.msra.mxu0 %v65
    %818 = vmatprep.subr.mxu0 %v64
    %819 = vmatpush1.msra.mxu0 %v63
    %820 = vmatprep.subr.mxu0 %v62
    %821 = vmatpush1.msra.mxu0 %v61
    %822 = vmatprep.subr.mxu0 %v60
    %823 = vmatpush1.msra.mxu0 %v59
    %824 = vmatprep.subr.mxu0 0.0
    %825 = vmatpush2.msra.mxu0 0.0
    %826 = vmatprep.subr.mxu0 0.0
    %827 = vmatpush2.msra.mxu0 0.0
    %828 = vmatprep.subr.mxu0 0.0
    %829 = vmatpush2.msra.mxu0 0.0
    %830 = vmatprep.subr.mxu0 0.0
    %831 = vmatpush2.msra.mxu0 0.0
    %832 = vmatprep.subr.mxu0 0.0
    %833 = vmatpush2.msra.mxu0 0.0
    %834 = vmatprep.subr.mxu0 0.0
    %835 = vmatpush2.msra.mxu0 0.0
    %836 = vmatprep.subr.mxu0 0.0
    %837 = vmatpush2.msra.mxu0 0.0
    %838 = vmatprep.subr.mxu0 0.0
    %839 = vmatpush2.msra.mxu0 0.0
    %840 = vmatprep.subr.mxu0 0.0
    %841 = vmatpush2.msra.mxu0 0.0
    %842 = vmatprep.subr.mxu0 0.0
    %843 = vmatpush2.msra.mxu0 0.0
    %844 = vmatprep.subr.mxu0 0.0
    %845 = vmatpush2.msra.mxu0 0.0
    %846 = vmatprep.subr.mxu0 0.0
    %847 = vmatpush2.msra.mxu0 0.0
    %848 = vmatprep.subr.mxu0 0.0
    %849 = vmatpush2.msra.mxu0 0.0
    %850 = vmatprep.subr.mxu0 0.0
    %851 = vmatpush2.msra.mxu0 0.0
    %852 = vmatprep.subr.mxu0 0.0
    %853 = vmatpush2.msra.mxu0 0.0
    %854 = vmatprep.subr.mxu0 0.0
    %855 = vmatpush2.msra.mxu0 0.0
    %856 = vmatprep.mubr.f32.mxu0 0.0
    %857 = vmatmul.mubr.f32.gmra.mxu0 %v790
    %v858 = vpop.f32.mrf.mxu0
    %v859 = vadd.f32 0.0, %v858
    %v860 = vpop.f32.mrf.mxu0
    %v861 = vadd.f32 0.0, %v860
    %862 = vdwg.mxu0
    %v863 = vadd.f32 %v336, %v859
    %v864 = vadd.f32 %v338, %v861
    %v865 = vxor.u32 %v863, 2147483648
    %v866 = vxor.u32 %v864, 2147483648
    %v867 = vmul.f32 %v865, 1.442695
    %v868 = vpow.pop %v867
    %v869 = vmul.f32 %v866, 1.442695
    %v870 = vpow.pop %v869
    %v871 = vadd.f32 %v868, 1.0
    %v872 = vadd.f32 %v870, 1.0
    %v873 = vrcp.pop %v871
    %v874 = vmul.f32 1.0, %v873
    %v875 = vrcp.pop %v872
    %v876 = vmul.f32 1.0, %v875
    %v877 = vtanh.pop %v864
    %v879 = vrot.slane %v778, 6
    %v881 = vmul.f32 %v874, %v879
    %v882 = vmul.f32 %v874, %v877
    %884 = vrot.lane.b32.xlu0 %v882, 64
    %v885 = vpop.permute.xlu0 %884
    %v887 = vadd.f32 %v881, %v885
    %v888 = vtanh.pop %v887
    %v889 = vmul.f32 %v876, %v888
    %891 = vrot.lane.b32.xlu0 %v889, 64
    %v892 = vpop.permute.xlu0 %891
    %894 = vst.msk [vmem:[#allocation2 + $0x8] sm:$0x3] %vm443, %v892
    %v895 = vsel %vm340, %v892, 0
    %897 = vmatprep.subr.mxu0 0.0
    %898 = vmatpush1.msra.mxu0 0.0
    %899 = vmatprep.subr.mxu0 0.0
    %900 = vmatpush1.msra.mxu0 0.0
    %901 = vmatprep.subr.mxu0 0.0
    %902 = vmatpush1.msra.mxu0 0.0
    %903 = vmatprep.subr.mxu0 0.0
    %904 = vmatpush1.msra.mxu0 0.0
    %905 = vmatprep.subr.mxu0 0.0
    %906 = vmatpush1.msra.mxu0 0.0
    %907 = vmatprep.subr.mxu0 0.0
    %908 = vmatpush1.msra.mxu0 0.0
    %909 = vmatprep.subr.mxu0 0.0
    %910 = vmatpush1.msra.mxu0 0.0
    %911 = vmatprep.subr.mxu0 0.0
    %912 = vmatpush1.msra.mxu0 0.0
    %913 = vmatprep.subr.mxu0 %v74
    %914 = vmatpush1.msra.mxu0 %v73
    %915 = vmatprep.subr.mxu0 %v72
    %916 = vmatpush1.msra.mxu0 %v71
    %917 = vmatprep.subr.mxu0 %v70
    %918 = vmatpush1.msra.mxu0 %v69
    %919 = vmatprep.subr.mxu0 %v68
    %920 = vmatpush1.msra.mxu0 %v67
    %921 = vmatprep.subr.mxu0 %v66
    %922 = vmatpush1.msra.mxu0 %v65
    %923 = vmatprep.subr.mxu0 %v64
    %924 = vmatpush1.msra.mxu0 %v63
    %925 = vmatprep.subr.mxu0 %v62
    %926 = vmatpush1.msra.mxu0 %v61
    %927 = vmatprep.subr.mxu0 %v60
    %928 = vmatpush1.msra.mxu0 %v59
    %929 = vmatprep.subr.mxu0 0.0
    %930 = vmatpush2.msra.mxu0 0.0
    %931 = vmatprep.subr.mxu0 0.0
    %932 = vmatpush2.msra.mxu0 0.0
    %933 = vmatprep.subr.mxu0 0.0
    %934 = vmatpush2.msra.mxu0 0.0
    %935 = vmatprep.subr.mxu0 0.0
    %936 = vmatpush2.msra.mxu0 0.0
    %937 = vmatprep.subr.mxu0 0.0
    %938 = vmatpush2.msra.mxu0 0.0
    %939 = vmatprep.subr.mxu0 0.0
    %940 = vmatpush2.msra.mxu0 0.0
    %941 = vmatprep.subr.mxu0 0.0
    %942 = vmatpush2.msra.mxu0 0.0
    %943 = vmatprep.subr.mxu0 0.0
    %944 = vmatpush2.msra.mxu0 0.0
    %945 = vmatprep.subr.mxu0 0.0
    %946 = vmatpush2.msra.mxu0 0.0
    %947 = vmatprep.subr.mxu0 0.0
    %948 = vmatpush2.msra.mxu0 0.0
    %949 = vmatprep.subr.mxu0 0.0
    %950 = vmatpush2.msra.mxu0 0.0
    %951 = vmatprep.subr.mxu0 0.0
    %952 = vmatpush2.msra.mxu0 0.0
    %953 = vmatprep.subr.mxu0 0.0
    %954 = vmatpush2.msra.mxu0 0.0
    %955 = vmatprep.subr.mxu0 0.0
    %956 = vmatpush2.msra.mxu0 0.0
    %957 = vmatprep.subr.mxu0 0.0
    %958 = vmatpush2.msra.mxu0 0.0
    %959 = vmatprep.subr.mxu0 0.0
    %960 = vmatpush2.msra.mxu0 0.0
    %961 = vmatprep.mubr.f32.mxu0 0.0
    %962 = vmatmul.mubr.f32.gmra.mxu0 %v895
    %v963 = vpop.f32.mrf.mxu0
    %v964 = vadd.f32 0.0, %v963
    %v965 = vpop.f32.mrf.mxu0
    %v966 = vadd.f32 0.0, %v965
    %967 = vdwg.mxu0
    %v970 = vrot.slane %v964, 6
    %v971 = vrot.slane %v966, 6
    %v974 = vadd.f32 %v336, %v970
    %v975 = vadd.f32 %v338, %v971
    %v976 = vxor.u32 %v974, 2147483648
    %v977 = vxor.u32 %v975, 2147483648
    %v978 = vmul.f32 %v976, 1.442695
    %v979 = vpow.pop %v978
    %v980 = vmul.f32 %v977, 1.442695
    %v981 = vpow.pop %v980
    %v982 = vadd.f32 %v979, 1.0
    %v983 = vadd.f32 %v981, 1.0
    %v984 = vrcp.pop %v982
    %v985 = vmul.f32 1.0, %v984
    %v986 = vrcp.pop %v983
    %v987 = vmul.f32 1.0, %v986
    %v988 = vtanh.pop %v975
    %v990 = vrot.slane %v887, 6
    %v992 = vmul.f32 %v985, %v990
    %v993 = vmul.f32 %v985, %v988
    %995 = vrot.lane.b32.xlu0 %v993, 64
    %v996 = vpop.permute.xlu0 %995
    %v998 = vadd.f32 %v992, %v996
    %v999 = vtanh.pop %v998
    %v1000 = vmul.f32 %v987, %v999
    %1002 = vrot.lane.b32.xlu0 %v1000, 64
    %v1003 = vpop.permute.xlu0 %1002
    %1005 = vst.msk [vmem:[#allocation2 + $0x8] sm:$0xc] %vm555, %v1003
    %v1006 = vrot.slane %v1000, 2
    %1007 = vrot.lane.b32.xlu0 %v1006, 64
    %v1008 = vpop.permute.xlu0 %1007
    %v1009 = vsel %vm340, %v1008, 0
    %1011 = vmatprep.subr.mxu0 0.0
    %1012 = vmatpush1.msra.mxu0 0.0
    %1013 = vmatprep.subr.mxu0 0.0
    %1014 = vmatpush1.msra.mxu0 0.0
    %1015 = vmatprep.subr.mxu0 0.0
    %1016 = vmatpush1.msra.mxu0 0.0
    %1017 = vmatprep.subr.mxu0 0.0
    %1018 = vmatpush1.msra.mxu0 0.0
    %1019 = vmatprep.subr.mxu0 0.0
    %1020 = vmatpush1.msra.mxu0 0.0
    %1021 = vmatprep.subr.mxu0 0.0
    %1022 = vmatpush1.msra.mxu0 0.0
    %1023 = vmatprep.subr.mxu0 0.0
    %1024 = vmatpush1.msra.mxu0 0.0
    %1025 = vmatprep.subr.mxu0 0.0
    %1026 = vmatpush1.msra.mxu0 0.0
    %1027 = vmatprep.subr.mxu0 %v74
    %1028 = vmatpush1.msra.mxu0 %v73
    %1029 = vmatprep.subr.mxu0 %v72
    %1030 = vmatpush1.msra.mxu0 %v71
    %1031 = vmatprep.subr.mxu0 %v70
    %1032 = vmatpush1.msra.mxu0 %v69
    %1033 = vmatprep.subr.mxu0 %v68
    %1034 = vmatpush1.msra.mxu0 %v67
    %1035 = vmatprep.subr.mxu0 %v66
    %1036 = vmatpush1.msra.mxu0 %v65
    %1037 = vmatprep.subr.mxu0 %v64
    %1038 = vmatpush1.msra.mxu0 %v63
    %1039 = vmatprep.subr.mxu0 %v62
    %1040 = vmatpush1.msra.mxu0 %v61
    %1041 = vmatprep.subr.mxu0 %v60
    %1042 = vmatpush1.msra.mxu0 %v59
    %1043 = vmatprep.subr.mxu0 0.0
    %1044 = vmatpush2.msra.mxu0 0.0
    %1045 = vmatprep.subr.mxu0 0.0
    %1046 = vmatpush2.msra.mxu0 0.0
    %1047 = vmatprep.subr.mxu0 0.0
    %1048 = vmatpush2.msra.mxu0 0.0
    %1049 = vmatprep.subr.mxu0 0.0
    %1050 = vmatpush2.msra.mxu0 0.0
    %1051 = vmatprep.subr.mxu0 0.0
    %1052 = vmatpush2.msra.mxu0 0.0
    %1053 = vmatprep.subr.mxu0 0.0
    %1054 = vmatpush2.msra.mxu0 0.0
    %1055 = vmatprep.subr.mxu0 0.0
    %1056 = vmatpush2.msra.mxu0 0.0
    %1057 = vmatprep.subr.mxu0 0.0
    %1058 = vmatpush2.msra.mxu0 0.0
    %1059 = vmatprep.subr.mxu0 0.0
    %1060 = vmatpush2.msra.mxu0 0.0
    %1061 = vmatprep.subr.mxu0 0.0
    %1062 = vmatpush2.msra.mxu0 0.0
    %1063 = vmatprep.subr.mxu0 0.0
    %1064 = vmatpush2.msra.mxu0 0.0
    %1065 = vmatprep.subr.mxu0 0.0
    %1066 = vmatpush2.msra.mxu0 0.0
    %1067 = vmatprep.subr.mxu0 0.0
    %1068 = vmatpush2.msra.mxu0 0.0
    %1069 = vmatprep.subr.mxu0 0.0
    %1070 = vmatpush2.msra.mxu0 0.0
    %1071 = vmatprep.subr.mxu0 0.0
    %1072 = vmatpush2.msra.mxu0 0.0
    %1073 = vmatprep.subr.mxu0 0.0
    %1074 = vmatpush2.msra.mxu0 0.0
    %1075 = vmatprep.mubr.f32.mxu0 0.0
    %1076 = vmatmul.mubr.f32.gmra.mxu0 %v1009
    %v1077 = vpop.f32.mrf.mxu0
    %v1078 = vadd.f32 0.0, %v1077
    %v1079 = vpop.f32.mrf.mxu0
    %v1080 = vadd.f32 0.0, %v1079
    %1081 = vdwg.mxu0
    %v1084 = vrot.slane %v1078, 4
    %v1085 = vrot.slane %v1080, 4
    %v1088 = vadd.f32 %v336, %v1084
    %v1089 = vadd.f32 %v338, %v1085
    %v1090 = vxor.u32 %v1088, 2147483648
    %v1091 = vxor.u32 %v1089, 2147483648
    %v1092 = vmul.f32 %v1090, 1.442695
    %v1093 = vpow.pop %v1092
    %v1094 = vmul.f32 %v1091, 1.442695
    %v1095 = vpow.pop %v1094
    %v1096 = vadd.f32 %v1093, 1.0
    %v1097 = vadd.f32 %v1095, 1.0
    %v1098 = vrcp.pop %v1096
    %v1099 = vmul.f32 1.0, %v1098
    %v1100 = vrcp.pop %v1097
    %v1101 = vmul.f32 1.0, %v1100
    %v1102 = vtanh.pop %v1089
    %v1104 = vrot.slane %v998, 6
    %v1106 = vmul.f32 %v1099, %v1104
    %v1107 = vmul.f32 %v1099, %v1102
    %1109 = vrot.lane.b32.xlu0 %v1107, 64
    %v1110 = vpop.permute.xlu0 %1109
    %v1112 = vadd.f32 %v1106, %v1110
    %v1113 = vtanh.pop %v1112
    %v1114 = vmul.f32 %v1101, %v1113
    %1116 = vrot.lane.b32.xlu0 %v1114, 64
    %v1117 = vpop.permute.xlu0 %1116
    %1119 = vst.msk [vmem:[#allocation2 + $0x8] sm:$0x30] %vm670, %v1117
    %v1120 = vrot.slane %v1114, 4
    %1121 = vrot.lane.b32.xlu0 %v1120, 64
    %v1122 = vpop.permute.xlu0 %1121
    %v1123 = vsel %vm340, %v1122, 0
    %1125 = vmatprep.subr.mxu0 0.0
    %1126 = vmatpush1.msra.mxu0 0.0
    %1127 = vmatprep.subr.mxu0 0.0
    %1128 = vmatpush1.msra.mxu0 0.0
    %1129 = vmatprep.subr.mxu0 0.0
    %1130 = vmatpush1.msra.mxu0 0.0
    %1131 = vmatprep.subr.mxu0 0.0
    %1132 = vmatpush1.msra.mxu0 0.0
    %1133 = vmatprep.subr.mxu0 0.0
    %1134 = vmatpush1.msra.mxu0 0.0
    %1135 = vmatprep.subr.mxu0 0.0
    %1136 = vmatpush1.msra.mxu0 0.0
    %1137 = vmatprep.subr.mxu0 0.0
    %1138 = vmatpush1.msra.mxu0 0.0
    %1139 = vmatprep.subr.mxu0 0.0
    %1140 = vmatpush1.msra.mxu0 0.0
    %1141 = vmatprep.subr.mxu0 %v74
    %1142 = vmatpush1.msra.mxu0 %v73
    %1143 = vmatprep.subr.mxu0 %v72
    %1144 = vmatpush1.msra.mxu0 %v71
    %1145 = vmatprep.subr.mxu0 %v70
    %1146 = vmatpush1.msra.mxu0 %v69
    %1147 = vmatprep.subr.mxu0 %v68
    %1148 = vmatpush1.msra.mxu0 %v67
    %1149 = vmatprep.subr.mxu0 %v66
    %1150 = vmatpush1.msra.mxu0 %v65
    %1151 = vmatprep.subr.mxu0 %v64
    %1152 = vmatpush1.msra.mxu0 %v63
    %1153 = vmatprep.subr.mxu0 %v62
    %1154 = vmatpush1.msra.mxu0 %v61
    %1155 = vmatprep.subr.mxu0 %v60
    %1156 = vmatpush1.msra.mxu0 %v59
    %1157 = vmatprep.subr.mxu0 0.0
    %1158 = vmatpush2.msra.mxu0 0.0
    %1159 = vmatprep.subr.mxu0 0.0
    %1160 = vmatpush2.msra.mxu0 0.0
    %1161 = vmatprep.subr.mxu0 0.0
    %1162 = vmatpush2.msra.mxu0 0.0
    %1163 = vmatprep.subr.mxu0 0.0
    %1164 = vmatpush2.msra.mxu0 0.0
    %1165 = vmatprep.subr.mxu0 0.0
    %1166 = vmatpush2.msra.mxu0 0.0
    %1167 = vmatprep.subr.mxu0 0.0
    %1168 = vmatpush2.msra.mxu0 0.0
    %1169 = vmatprep.subr.mxu0 0.0
    %1170 = vmatpush2.msra.mxu0 0.0
    %1171 = vmatprep.subr.mxu0 0.0
    %1172 = vmatpush2.msra.mxu0 0.0
    %1173 = vmatprep.subr.mxu0 0.0
    %1174 = vmatpush2.msra.mxu0 0.0
    %1175 = vmatprep.subr.mxu0 0.0
    %1176 = vmatpush2.msra.mxu0 0.0
    %1177 = vmatprep.subr.mxu0 0.0
    %1178 = vmatpush2.msra.mxu0 0.0
    %1179 = vmatprep.subr.mxu0 0.0
    %1180 = vmatpush2.msra.mxu0 0.0
    %1181 = vmatprep.subr.mxu0 0.0
    %1182 = vmatpush2.msra.mxu0 0.0
    %1183 = vmatprep.subr.mxu0 0.0
    %1184 = vmatpush2.msra.mxu0 0.0
    %1185 = vmatprep.subr.mxu0 0.0
    %1186 = vmatpush2.msra.mxu0 0.0
    %1187 = vmatprep.subr.mxu0 0.0
    %1188 = vmatpush2.msra.mxu0 0.0
    %1189 = vmatprep.mubr.f32.mxu0 0.0
    %1190 = vmatmul.mubr.f32.gmra.mxu0 %v1123
    %v1191 = vpop.f32.mrf.mxu0
    %v1192 = vadd.f32 0.0, %v1191
    %v1193 = vpop.f32.mrf.mxu0
    %v1194 = vadd.f32 0.0, %v1193
    %1195 = vdwg.mxu0
    %v1198 = vrot.slane %v1192, 2
    %v1199 = vrot.slane %v1194, 2
    %v1202 = vadd.f32 %v336, %v1198
    %v1203 = vadd.f32 %v338, %v1199
    %v1204 = vxor.u32 %v1202, 2147483648
    %v1205 = vxor.u32 %v1203, 2147483648
    %v1206 = vmul.f32 %v1204, 1.442695
    %v1207 = vpow.pop %v1206
    %v1208 = vmul.f32 %v1205, 1.442695
    %v1209 = vpow.pop %v1208
    %v1210 = vadd.f32 %v1207, 1.0
    %v1211 = vadd.f32 %v1209, 1.0
    %v1212 = vrcp.pop %v1210
    %v1213 = vmul.f32 1.0, %v1212
    %v1214 = vrcp.pop %v1211
    %v1215 = vmul.f32 1.0, %v1214
    %v1216 = vtanh.pop %v1203
    %v1218 = vrot.slane %v1112, 6
    %v1220 = vmul.f32 %v1213, %v1218
    %v1221 = vmul.f32 %v1213, %v1216
    %1223 = vrot.lane.b32.xlu0 %v1221, 64
    %v1224 = vpop.permute.xlu0 %1223
    %v1226 = vadd.f32 %v1220, %v1224
    %v1227 = vtanh.pop %v1226
    %v1228 = vmul.f32 %v1215, %v1227
    %1230 = vrot.lane.b32.xlu0 %v1228, 64
    %v1231 = vpop.permute.xlu0 %1230
    %1233 = vst.msk [vmem:[#allocation2 + $0x8] sm:$0xc0] %vm785, %v1231
    %v1234 = vld [vmem:[#allocation2] sm:$0xff]
    %v1235 = vld [vmem:[#allocation2 + $0x8] sm:$0xff]
    %v1237 = vlaneseq
    %v1238 = vshrl.u32 %v1237, 7
    %v1239 = vsub.s32 0, %v1238
    %v1240 = vrot.slane %v164, %v1239
    %v1241 = vlaneseq
    %v1242 = vshrl.u32 %v1241, 7
    %v1243 = vsub.s32 1, %v1242
    %v1244 = vrot.slane %v164, %v1243
    %v1245 = vlaneseq
    %v1246 = vshrl.u32 %v1245, 7
    %v1247 = vsub.s32 2, %v1246
    %v1248 = vrot.slane %v164, %v1247
    %v1249 = vlaneseq
    %v1250 = vshrl.u32 %v1249, 7
    %v1251 = vsub.s32 3, %v1250
    %v1252 = vrot.slane %v164, %v1251
    %v1258 = vsel %vm340, %v1234, 0
    %v1261 = vsel %vm340, %v1235, 0
    %1263 = vmatprep.subr.mxu0 0.0
    %1264 = vmatpush1.msra.mxu0 0.0
    %1265 = vmatprep.subr.mxu0 0.0
    %1266 = vmatpush1.msra.mxu0 0.0
    %1267 = vmatprep.subr.mxu0 0.0
    %1268 = vmatpush1.msra.mxu0 0.0
    %1269 = vmatprep.subr.mxu0 0.0
    %1270 = vmatpush1.msra.mxu0 0.0
    %1271 = vmatprep.subr.mxu0 0.0
    %1272 = vmatpush1.msra.mxu0 0.0
    %1273 = vmatprep.subr.mxu0 0.0
    %1274 = vmatpush1.msra.mxu0 0.0
    %1275 = vmatprep.subr.mxu0 0.0
    %1276 = vmatpush1.msra.mxu0 0.0
    %1277 = vmatprep.subr.mxu0 0.0
    %1278 = vmatpush1.msra.mxu0 0.0
    %1279 = vmatprep.subr.mxu0 %v160
    %1280 = vmatpush1.msra.mxu0 %v159
    %1281 = vmatprep.subr.mxu0 %v156
    %1282 = vmatpush1.msra.mxu0 %v155
    %1283 = vmatprep.subr.mxu0 %v152
    %1284 = vmatpush1.msra.mxu0 %v151
    %1285 = vmatprep.subr.mxu0 %v148
    %1286 = vmatpush1.msra.mxu0 %v147
    %1287 = vmatprep.subr.mxu0 %v144
    %1288 = vmatpush1.msra.mxu0 %v143
    %1289 = vmatprep.subr.mxu0 %v140
    %1290 = vmatpush1.msra.mxu0 %v139
    %1291 = vmatprep.subr.mxu0 %v136
    %1292 = vmatpush1.msra.mxu0 %v135
    %1293 = vmatprep.subr.mxu0 %v132
    %1294 = vmatpush1.msra.mxu0 %v131
    %1295 = vmatprep.subr.mxu0 0.0
    %1296 = vmatpush2.msra.mxu0 0.0
    %1297 = vmatprep.subr.mxu0 0.0
    %1298 = vmatpush2.msra.mxu0 0.0
    %1299 = vmatprep.subr.mxu0 0.0
    %1300 = vmatpush2.msra.mxu0 0.0
    %1301 = vmatprep.subr.mxu0 0.0
    %1302 = vmatpush2.msra.mxu0 0.0
    %1303 = vmatprep.subr.mxu0 0.0
    %1304 = vmatpush2.msra.mxu0 0.0
    %1305 = vmatprep.subr.mxu0 0.0
    %1306 = vmatpush2.msra.mxu0 0.0
    %1307 = vmatprep.subr.mxu0 0.0
    %1308 = vmatpush2.msra.mxu0 0.0
    %1309 = vmatprep.subr.mxu0 0.0
    %1310 = vmatpush2.msra.mxu0 0.0
    %1311 = vmatprep.subr.mxu0 0.0
    %1312 = vmatpush2.msra.mxu0 0.0
    %1313 = vmatprep.subr.mxu0 0.0
    %1314 = vmatpush2.msra.mxu0 0.0
    %1315 = vmatprep.subr.mxu0 0.0
    %1316 = vmatpush2.msra.mxu0 0.0
    %1317 = vmatprep.subr.mxu0 0.0
    %1318 = vmatpush2.msra.mxu0 0.0
    %1319 = vmatprep.subr.mxu0 0.0
    %1320 = vmatpush2.msra.mxu0 0.0
    %1321 = vmatprep.subr.mxu0 0.0
    %1322 = vmatpush2.msra.mxu0 0.0
    %1323 = vmatprep.subr.mxu0 0.0
    %1324 = vmatpush2.msra.mxu0 0.0
    %1325 = vmatprep.subr.mxu0 0.0
    %1326 = vmatpush2.msra.mxu0 0.0
    %1327 = vmatprep.mubr.f32.mxu0 0.0
    %1328 = vmatmul.mubr.f32.gmra.mxu0 %v1258
    %v1329 = vpop.f32.mrf.mxu0
    %v1330 = vadd.f32 %v1240, %v1329
    %v1331 = vpop.f32.mrf.mxu0
    %v1332 = vadd.f32 %v1244, %v1331
    %1333 = vmatprep.mubr.f32.mxu0 0.0
    %1334 = vmatmul.mubr.f32.gmra.mxu0 %v1261
    %v1335 = vpop.f32.mrf.mxu0
    %v1336 = vadd.f32 %v1240, %v1335
    %v1337 = vpop.f32.mrf.mxu0
    %v1338 = vadd.f32 %v1244, %v1337
    %1339 = vdwg.mxu0
    %1340 = vmatprep.subr.mxu0 0.0
    %1341 = vmatpush1.msra.mxu0 0.0
    %1342 = vmatprep.subr.mxu0 0.0
    %1343 = vmatpush1.msra.mxu0 0.0
    %1344 = vmatprep.subr.mxu0 0.0
    %1345 = vmatpush1.msra.mxu0 0.0
    %1346 = vmatprep.subr.mxu0 0.0
    %1347 = vmatpush1.msra.mxu0 0.0
    %1348 = vmatprep.subr.mxu0 0.0
    %1349 = vmatpush1.msra.mxu0 0.0
    %1350 = vmatprep.subr.mxu0 0.0
    %1351 = vmatpush1.msra.mxu0 0.0
    %1352 = vmatprep.subr.mxu0 0.0
    %1353 = vmatpush1.msra.mxu0 0.0
    %1354 = vmatprep.subr.mxu0 0.0
    %1355 = vmatpush1.msra.mxu0 0.0
    %1356 = vmatprep.subr.mxu0 %v162
    %1357 = vmatpush1.msra.mxu0 %v161
    %1358 = vmatprep.subr.mxu0 %v158
    %1359 = vmatpush1.msra.mxu0 %v157
    %1360 = vmatprep.subr.mxu0 %v154
    %1361 = vmatpush1.msra.mxu0 %v153
    %1362 = vmatprep.subr.mxu0 %v150
    %1363 = vmatpush1.msra.mxu0 %v149
    %1364 = vmatprep.subr.mxu0 %v146
    %1365 = vmatpush1.msra.mxu0 %v145
    %1366 = vmatprep.subr.mxu0 %v142
    %1367 = vmatpush1.msra.mxu0 %v141
    %1368 = vmatprep.subr.mxu0 %v138
    %1369 = vmatpush1.msra.mxu0 %v137
    %1370 = vmatprep.subr.mxu0 %v134
    %1371 = vmatpush1.msra.mxu0 %v133
    %1372 = vmatprep.subr.mxu0 0.0
    %1373 = vmatpush2.msra.mxu0 0.0
    %1374 = vmatprep.subr.mxu0 0.0
    %1375 = vmatpush2.msra.mxu0 0.0
    %1376 = vmatprep.subr.mxu0 0.0
    %1377 = vmatpush2.msra.mxu0 0.0
    %1378 = vmatprep.subr.mxu0 0.0
    %1379 = vmatpush2.msra.mxu0 0.0
    %1380 = vmatprep.subr.mxu0 0.0
    %1381 = vmatpush2.msra.mxu0 0.0
    %1382 = vmatprep.subr.mxu0 0.0
    %1383 = vmatpush2.msra.mxu0 0.0
    %1384 = vmatprep.subr.mxu0 0.0
    %1385 = vmatpush2.msra.mxu0 0.0
    %1386 = vmatprep.subr.mxu0 0.0
    %1387 = vmatpush2.msra.mxu0 0.0
    %1388 = vmatprep.subr.mxu0 0.0
    %1389 = vmatpush2.msra.mxu0 0.0
    %1390 = vmatprep.subr.mxu0 0.0
    %1391 = vmatpush2.msra.mxu0 0.0
    %1392 = vmatprep.subr.mxu0 0.0
    %1393 = vmatpush2.msra.mxu0 0.0
    %1394 = vmatprep.subr.mxu0 0.0
    %1395 = vmatpush2.msra.mxu0 0.0
    %1396 = vmatprep.subr.mxu0 0.0
    %1397 = vmatpush2.msra.mxu0 0.0
    %1398 = vmatprep.subr.mxu0 0.0
    %1399 = vmatpush2.msra.mxu0 0.0
    %1400 = vmatprep.subr.mxu0 0.0
    %1401 = vmatpush2.msra.mxu0 0.0
    %1402 = vmatprep.subr.mxu0 0.0
    %1403 = vmatpush2.msra.mxu0 0.0
    %1404 = vmatprep.mubr.f32.mxu0 0.0
    %1405 = vmatmul.mubr.f32.gmra.mxu0 %v1258
    %v1406 = vpop.f32.mrf.mxu0
    %v1407 = vpop.f32.mrf.mxu0
    %v1408 = vadd.f32 %v1252, %v1407
    %1409 = vmatprep.mubr.f32.mxu0 0.0
    %1410 = vmatmul.mubr.f32.gmra.mxu0 %v1261
    %v1411 = vpop.f32.mrf.mxu0
    %v1412 = vadd.f32 %v1248, %v1411
    %v1413 = vpop.f32.mrf.mxu0
    %1414 = vdwg.mxu0
    %v1416 = vrot.slane %v1338, 6
    %v1418 = vadd.f32 %v1330, %v1416
    %vm1419 = vcmask 261120
    %v1420 = vsel %vm1419, 0.0, 0
    %1422 = vmatprep.subr.mxu0 0.0
    %1423 = vmatpush1.msra.mxu0 0.0
    %1424 = vmatprep.subr.mxu0 0.0
    %1425 = vmatpush1.msra.mxu0 0.0
    %1426 = vmatprep.subr.mxu0 0.0
    %1427 = vmatpush1.msra.mxu0 0.0
    %1428 = vmatprep.subr.mxu0 0.0
    %1429 = vmatpush1.msra.mxu0 0.0
    %1430 = vmatprep.subr.mxu0 0.0
    %1431 = vmatpush1.msra.mxu0 0.0
    %1432 = vmatprep.subr.mxu0 0.0
    %1433 = vmatpush1.msra.mxu0 0.0
    %1434 = vmatprep.subr.mxu0 0.0
    %1435 = vmatpush1.msra.mxu0 0.0
    %1436 = vmatprep.subr.mxu0 0.0
    %1437 = vmatpush1.msra.mxu0 0.0
    %1438 = vmatprep.subr.mxu0 0.0
    %1439 = vmatpush1.msra.mxu0 0.0
    %1440 = vmatprep.subr.mxu0 0.0
    %1441 = vmatpush1.msra.mxu0 0.0
    %1442 = vmatprep.subr.mxu0 0.0
    %1443 = vmatpush1.msra.mxu0 0.0
    %1444 = vmatprep.subr.mxu0 0.0
    %1445 = vmatpush1.msra.mxu0 0.0
    %1446 = vmatprep.subr.mxu0 0.0
    %1447 = vmatpush1.msra.mxu0 %v110
    %1448 = vmatprep.subr.mxu0 0.0
    %1449 = vmatpush1.msra.mxu0 %v109
    %1450 = vmatprep.subr.mxu0 0.0
    %1451 = vmatpush1.msra.mxu0 %v108
    %1452 = vmatprep.subr.mxu0 0.0
    %1453 = vmatpush1.msra.mxu0 %v107
    %1454 = vmatprep.subr.mxu0 0.0
    %1455 = vmatpush2.msra.mxu0 0.0
    %1456 = vmatprep.subr.mxu0 0.0
    %1457 = vmatpush2.msra.mxu0 0.0
    %1458 = vmatprep.subr.mxu0 0.0
    %1459 = vmatpush2.msra.mxu0 0.0
    %1460 = vmatprep.subr.mxu0 0.0
    %1461 = vmatpush2.msra.mxu0 0.0
    %1462 = vmatprep.subr.mxu0 0.0
    %1463 = vmatpush2.msra.mxu0 0.0
    %1464 = vmatprep.subr.mxu0 0.0
    %1465 = vmatpush2.msra.mxu0 0.0
    %1466 = vmatprep.subr.mxu0 0.0
    %1467 = vmatpush2.msra.mxu0 0.0
    %1468 = vmatprep.subr.mxu0 0.0
    %1469 = vmatpush2.msra.mxu0 0.0
    %1470 = vmatprep.subr.mxu0 0.0
    %1471 = vmatpush2.msra.mxu0 0.0
    %1472 = vmatprep.subr.mxu0 0.0
    %1473 = vmatpush2.msra.mxu0 0.0
    %1474 = vmatprep.subr.mxu0 0.0
    %1475 = vmatpush2.msra.mxu0 0.0
    %1476 = vmatprep.subr.mxu0 0.0
    %1477 = vmatpush2.msra.mxu0 0.0
    %1478 = vmatprep.subr.mxu0 0.0
    %1479 = vmatpush2.msra.mxu0 0.0
    %1480 = vmatprep.subr.mxu0 0.0
    %1481 = vmatpush2.msra.mxu0 0.0
    %1482 = vmatprep.subr.mxu0 0.0
    %1483 = vmatpush2.msra.mxu0 0.0
    %1484 = vmatprep.subr.mxu0 0.0
    %1485 = vmatpush2.msra.mxu0 0.0
    %1486 = vmatprep.mubr.f32.mxu0 0.0
    %1487 = vmatmul.mubr.f32.gmra.mxu0 %v1420
    %v1488 = vpop.f32.mrf.mxu0
    %v1489 = vadd.f32 0.0, %v1488
    %v1490 = vpop.f32.mrf.mxu0
    %1491 = vdwg.mxu0
    %v1492 = vadd.f32 %v1418, %v1489
    %v1493 = vxor.u32 %v1492, 2147483648
    %v1494 = vmul.f32 %v1493, 1.442695
    %v1495 = vpow.pop %v1494
    %v1496 = vadd.f32 %v1495, 1.0
    %v1497 = vrcp.pop %v1496
    %v1498 = vmul.f32 1.0, %v1497
    %v1499 = vtanh.pop %v1492
    %v1500 = vmul.f32 %v1498, 0.0
    %1502 = vrot.lane.b32.xlu0 %v1499, 64
    %v1503 = vpop.permute.xlu0 %1502
    %v1505 = vmul.f32 %v1498, %v1503
    %1507 = vrot.lane.b32.xlu0 %v1505, 32
    %v1508 = vpop.permute.xlu0 %1507
    %v1510 = vadd.f32 %v1500, %v1508
    %v1511 = vtanh.pop %v1510
    %1513 = vrot.lane.b32.xlu0 %v1511, 64
    %v1514 = vpop.permute.xlu0 %1513
    %v1516 = vmul.f32 %v1498, %v1514
    %v1517 = vrot.slane %v1338, 2
    %v1519 = vadd.f32 %v1330, %v1517
    %1521 = vrot.lane.b32.xlu0 %v1516, 32
    %v1522 = vpop.permute.xlu0 %1521
    %v1523 = vsel %vm1419, %v1522, 0
    %1525 = vmatprep.subr.mxu0 0.0
    %1526 = vmatpush1.msra.mxu0 0.0
    %1527 = vmatprep.subr.mxu0 0.0
    %1528 = vmatpush1.msra.mxu0 0.0
    %1529 = vmatprep.subr.mxu0 0.0
    %1530 = vmatpush1.msra.mxu0 0.0
    %1531 = vmatprep.subr.mxu0 0.0
    %1532 = vmatpush1.msra.mxu0 0.0
    %1533 = vmatprep.subr.mxu0 0.0
    %1534 = vmatpush1.msra.mxu0 0.0
    %1535 = vmatprep.subr.mxu0 0.0
    %1536 = vmatpush1.msra.mxu0 0.0
    %1537 = vmatprep.subr.mxu0 0.0
    %1538 = vmatpush1.msra.mxu0 0.0
    %1539 = vmatprep.subr.mxu0 0.0
    %1540 = vmatpush1.msra.mxu0 0.0
    %1541 = vmatprep.subr.mxu0 0.0
    %1542 = vmatpush1.msra.mxu0 0.0
    %1543 = vmatprep.subr.mxu0 0.0
    %1544 = vmatpush1.msra.mxu0 0.0
    %1545 = vmatprep.subr.mxu0 0.0
    %1546 = vmatpush1.msra.mxu0 0.0
    %1547 = vmatprep.subr.mxu0 0.0
    %1548 = vmatpush1.msra.mxu0 0.0
    %1549 = vmatprep.subr.mxu0 0.0
    %1550 = vmatpush1.msra.mxu0 %v110
    %1551 = vmatprep.subr.mxu0 0.0
    %1552 = vmatpush1.msra.mxu0 %v109
    %1553 = vmatprep.subr.mxu0 0.0
    %1554 = vmatpush1.msra.mxu0 %v108
    %1555 = vmatprep.subr.mxu0 0.0
    %1556 = vmatpush1.msra.mxu0 %v107
    %1557 = vmatprep.subr.mxu0 0.0
    %1558 = vmatpush2.msra.mxu0 0.0
    %1559 = vmatprep.subr.mxu0 0.0
    %1560 = vmatpush2.msra.mxu0 0.0
    %1561 = vmatprep.subr.mxu0 0.0
    %1562 = vmatpush2.msra.mxu0 0.0
    %1563 = vmatprep.subr.mxu0 0.0
    %1564 = vmatpush2.msra.mxu0 0.0
    %1565 = vmatprep.subr.mxu0 0.0
    %1566 = vmatpush2.msra.mxu0 0.0
    %1567 = vmatprep.subr.mxu0 0.0
    %1568 = vmatpush2.msra.mxu0 0.0
    %1569 = vmatprep.subr.mxu0 0.0
    %1570 = vmatpush2.msra.mxu0 0.0
    %1571 = vmatprep.subr.mxu0 0.0
    %1572 = vmatpush2.msra.mxu0 0.0
    %1573 = vmatprep.subr.mxu0 0.0
    %1574 = vmatpush2.msra.mxu0 0.0
    %1575 = vmatprep.subr.mxu0 0.0
    %1576 = vmatpush2.msra.mxu0 0.0
    %1577 = vmatprep.subr.mxu0 0.0
    %1578 = vmatpush2.msra.mxu0 0.0
    %1579 = vmatprep.subr.mxu0 0.0
    %1580 = vmatpush2.msra.mxu0 0.0
    %1581 = vmatprep.subr.mxu0 0.0
    %1582 = vmatpush2.msra.mxu0 0.0
    %1583 = vmatprep.subr.mxu0 0.0
    %1584 = vmatpush2.msra.mxu0 0.0
    %1585 = vmatprep.subr.mxu0 0.0
    %1586 = vmatpush2.msra.mxu0 0.0
    %1587 = vmatprep.subr.mxu0 0.0
    %1588 = vmatpush2.msra.mxu0 0.0
    %1589 = vmatprep.mubr.f32.mxu0 0.0
    %1590 = vmatmul.mubr.f32.gmra.mxu0 %v1523
    %v1591 = vpop.f32.mrf.mxu0
    %v1592 = vadd.f32 0.0, %v1591
    %v1593 = vpop.f32.mrf.mxu0
    %1594 = vdwg.mxu0
    %v1596 = vrot.slane %v1592, 6
    %v1598 = vadd.f32 %v1519, %v1596
    %v1599 = vxor.u32 %v1598, 2147483648
    %v1600 = vmul.f32 %v1599, 1.442695
    %v1601 = vpow.pop %v1600
    %v1602 = vadd.f32 %v1601, 1.0
    %v1603 = vrcp.pop %v1602
    %v1604 = vmul.f32 1.0, %v1603
    %v1605 = vtanh.pop %v1598
    %v1607 = vrot.slane %v1510, 6
    %v1609 = vmul.f32 %v1604, %v1607
    %1611 = vrot.lane.b32.xlu0 %v1605, 64
    %v1612 = vpop.permute.xlu0 %1611
    %v1614 = vmul.f32 %v1604, %v1612
    %1616 = vrot.lane.b32.xlu0 %v1614, 32
    %v1617 = vpop.permute.xlu0 %1616
    %v1619 = vadd.f32 %v1609, %v1617
    %v1620 = vtanh.pop %v1619
    %1622 = vrot.lane.b32.xlu0 %v1620, 64
    %v1623 = vpop.permute.xlu0 %1622
    %v1625 = vmul.f32 %v1604, %v1623
    %v1627 = vrot.slane %v1625, 2
    %1628 = vrot.lane.b32.xlu0 %v1627, 32
    %v1629 = vpop.permute.xlu0 %1628
    %v1630 = vsel %vm1419, %v1629, 0
    %1632 = vmatprep.subr.mxu0 0.0
    %1633 = vmatpush1.msra.mxu0 0.0
    %1634 = vmatprep.subr.mxu0 0.0
    %1635 = vmatpush1.msra.mxu0 0.0
    %1636 = vmatprep.subr.mxu0 0.0
    %1637 = vmatpush1.msra.mxu0 0.0
    %1638 = vmatprep.subr.mxu0 0.0
    %1639 = vmatpush1.msra.mxu0 0.0
    %1640 = vmatprep.subr.mxu0 0.0
    %1641 = vmatpush1.msra.mxu0 0.0
    %1642 = vmatprep.subr.mxu0 0.0
    %1643 = vmatpush1.msra.mxu0 0.0
    %1644 = vmatprep.subr.mxu0 0.0
    %1645 = vmatpush1.msra.mxu0 0.0
    %1646 = vmatprep.subr.mxu0 0.0
    %1647 = vmatpush1.msra.mxu0 0.0
    %1648 = vmatprep.subr.mxu0 0.0
    %1649 = vmatpush1.msra.mxu0 0.0
    %1650 = vmatprep.subr.mxu0 0.0
    %1651 = vmatpush1.msra.mxu0 0.0
    %1652 = vmatprep.subr.mxu0 0.0
    %1653 = vmatpush1.msra.mxu0 0.0
    %1654 = vmatprep.subr.mxu0 0.0
    %1655 = vmatpush1.msra.mxu0 0.0
    %1656 = vmatprep.subr.mxu0 0.0
    %1657 = vmatpush1.msra.mxu0 %v110
    %1658 = vmatprep.subr.mxu0 0.0
    %1659 = vmatpush1.msra.mxu0 %v109
    %1660 = vmatprep.subr.mxu0 0.0
    %1661 = vmatpush1.msra.mxu0 %v108
    %1662 = vmatprep.subr.mxu0 0.0
    %1663 = vmatpush1.msra.mxu0 %v107
    %1664 = vmatprep.subr.mxu0 0.0
    %1665 = vmatpush2.msra.mxu0 0.0
    %1666 = vmatprep.subr.mxu0 0.0
    %1667 = vmatpush2.msra.mxu0 0.0
    %1668 = vmatprep.subr.mxu0 0.0
    %1669 = vmatpush2.msra.mxu0 0.0
    %1670 = vmatprep.subr.mxu0 0.0
    %1671 = vmatpush2.msra.mxu0 0.0
    %1672 = vmatprep.subr.mxu0 0.0
    %1673 = vmatpush2.msra.mxu0 0.0
    %1674 = vmatprep.subr.mxu0 0.0
    %1675 = vmatpush2.msra.mxu0 0.0
    %1676 = vmatprep.subr.mxu0 0.0
    %1677 = vmatpush2.msra.mxu0 0.0
    %1678 = vmatprep.subr.mxu0 0.0
    %1679 = vmatpush2.msra.mxu0 0.0
    %1680 = vmatprep.subr.mxu0 0.0
    %1681 = vmatpush2.msra.mxu0 0.0
    %1682 = vmatprep.subr.mxu0 0.0
    %1683 = vmatpush2.msra.mxu0 0.0
    %1684 = vmatprep.subr.mxu0 0.0
    %1685 = vmatpush2.msra.mxu0 0.0
    %1686 = vmatprep.subr.mxu0 0.0
    %1687 = vmatpush2.msra.mxu0 0.0
    %1688 = vmatprep.subr.mxu0 0.0
    %1689 = vmatpush2.msra.mxu0 0.0
    %1690 = vmatprep.subr.mxu0 0.0
    %1691 = vmatpush2.msra.mxu0 0.0
    %1692 = vmatprep.subr.mxu0 0.0
    %1693 = vmatpush2.msra.mxu0 0.0
    %1694 = vmatprep.subr.mxu0 0.0
    %1695 = vmatpush2.msra.mxu0 0.0
    %1696 = vmatprep.mubr.f32.mxu0 0.0
    %1697 = vmatmul.mubr.f32.gmra.mxu0 %v1630
    %v1698 = vpop.f32.mrf.mxu0
    %v1699 = vadd.f32 0.0, %v1698
    %v1700 = vpop.f32.mrf.mxu0
    %1701 = vdwg.mxu0
    %v1703 = vrot.slane %v1699, 4
    %v1705 = vadd.f32 %v1418, %v1703
    %v1706 = vxor.u32 %v1705, 2147483648
    %v1707 = vmul.f32 %v1706, 1.442695
    %v1708 = vpow.pop %v1707
    %v1709 = vadd.f32 %v1708, 1.0
    %v1710 = vrcp.pop %v1709
    %v1711 = vmul.f32 1.0, %v1710
    %v1712 = vtanh.pop %v1705
    %v1714 = vrot.slane %v1619, 6
    %v1716 = vmul.f32 %v1711, %v1714
    %1718 = vrot.lane.b32.xlu0 %v1712, 64
    %v1719 = vpop.permute.xlu0 %1718
    %v1721 = vmul.f32 %v1711, %v1719
    %1723 = vrot.lane.b32.xlu0 %v1721, 32
    %v1724 = vpop.permute.xlu0 %1723
    %v1726 = vadd.f32 %v1716, %v1724
    %v1727 = vtanh.pop %v1726
    %1729 = vrot.lane.b32.xlu0 %v1727, 64
    %v1730 = vpop.permute.xlu0 %1729
    %v1732 = vmul.f32 %v1711, %v1730
    %v1734 = vrot.slane %v1732, 4
    %1735 = vrot.lane.b32.xlu0 %v1734, 32
    %v1736 = vpop.permute.xlu0 %1735
    %v1737 = vsel %vm1419, %v1736, 0
    %1739 = vmatprep.subr.mxu0 0.0
    %1740 = vmatpush1.msra.mxu0 0.0
    %1741 = vmatprep.subr.mxu0 0.0
    %1742 = vmatpush1.msra.mxu0 0.0
    %1743 = vmatprep.subr.mxu0 0.0
    %1744 = vmatpush1.msra.mxu0 0.0
    %1745 = vmatprep.subr.mxu0 0.0
    %1746 = vmatpush1.msra.mxu0 0.0
    %1747 = vmatprep.subr.mxu0 0.0
    %1748 = vmatpush1.msra.mxu0 0.0
    %1749 = vmatprep.subr.mxu0 0.0
    %1750 = vmatpush1.msra.mxu0 0.0
    %1751 = vmatprep.subr.mxu0 0.0
    %1752 = vmatpush1.msra.mxu0 0.0
    %1753 = vmatprep.subr.mxu0 0.0
    %1754 = vmatpush1.msra.mxu0 0.0
    %1755 = vmatprep.subr.mxu0 0.0
    %1756 = vmatpush1.msra.mxu0 0.0
    %1757 = vmatprep.subr.mxu0 0.0
    %1758 = vmatpush1.msra.mxu0 0.0
    %1759 = vmatprep.subr.mxu0 0.0
    %1760 = vmatpush1.msra.mxu0 0.0
    %1761 = vmatprep.subr.mxu0 0.0
    %1762 = vmatpush1.msra.mxu0 0.0
    %1763 = vmatprep.subr.mxu0 0.0
    %1764 = vmatpush1.msra.mxu0 %v110
    %1765 = vmatprep.subr.mxu0 0.0
    %1766 = vmatpush1.msra.mxu0 %v109
    %1767 = vmatprep.subr.mxu0 0.0
    %1768 = vmatpush1.msra.mxu0 %v108
    %1769 = vmatprep.subr.mxu0 0.0
    %1770 = vmatpush1.msra.mxu0 %v107
    %1771 = vmatprep.subr.mxu0 0.0
    %1772 = vmatpush2.msra.mxu0 0.0
    %1773 = vmatprep.subr.mxu0 0.0
    %1774 = vmatpush2.msra.mxu0 0.0
    %1775 = vmatprep.subr.mxu0 0.0
    %1776 = vmatpush2.msra.mxu0 0.0
    %1777 = vmatprep.subr.mxu0 0.0
    %1778 = vmatpush2.msra.mxu0 0.0
    %1779 = vmatprep.subr.mxu0 0.0
    %1780 = vmatpush2.msra.mxu0 0.0
    %1781 = vmatprep.subr.mxu0 0.0
    %1782 = vmatpush2.msra.mxu0 0.0
    %1783 = vmatprep.subr.mxu0 0.0
    %1784 = vmatpush2.msra.mxu0 0.0
    %1785 = vmatprep.subr.mxu0 0.0
    %1786 = vmatpush2.msra.mxu0 0.0
    %1787 = vmatprep.subr.mxu0 0.0
    %1788 = vmatpush2.msra.mxu0 0.0
    %1789 = vmatprep.subr.mxu0 0.0
    %1790 = vmatpush2.msra.mxu0 0.0
    %1791 = vmatprep.subr.mxu0 0.0
    %1792 = vmatpush2.msra.mxu0 0.0
    %1793 = vmatprep.subr.mxu0 0.0
    %1794 = vmatpush2.msra.mxu0 0.0
    %1795 = vmatprep.subr.mxu0 0.0
    %1796 = vmatpush2.msra.mxu0 0.0
    %1797 = vmatprep.subr.mxu0 0.0
    %1798 = vmatpush2.msra.mxu0 0.0
    %1799 = vmatprep.subr.mxu0 0.0
    %1800 = vmatpush2.msra.mxu0 0.0
    %1801 = vmatprep.subr.mxu0 0.0
    %1802 = vmatpush2.msra.mxu0 0.0
    %1803 = vmatprep.mubr.f32.mxu0 0.0
    %1804 = vmatmul.mubr.f32.gmra.mxu0 %v1737
    %v1805 = vpop.f32.mrf.mxu0
    %v1806 = vadd.f32 0.0, %v1805
    %v1807 = vpop.f32.mrf.mxu0
    %1808 = vdwg.mxu0
    %v1810 = vrot.slane %v1806, 2
    %v1812 = vadd.f32 %v1519, %v1810
    %v1813 = vxor.u32 %v1812, 2147483648
    %v1814 = vmul.f32 %v1813, 1.442695
    %v1815 = vpow.pop %v1814
    %v1816 = vadd.f32 %v1815, 1.0
    %v1817 = vrcp.pop %v1816
    %v1818 = vmul.f32 1.0, %v1817
    %v1819 = vtanh.pop %v1812
    %v1821 = vrot.slane %v1726, 6
    %v1823 = vmul.f32 %v1818, %v1821
    %1825 = vrot.lane.b32.xlu0 %v1819, 64
    %v1826 = vpop.permute.xlu0 %1825
    %v1828 = vmul.f32 %v1818, %v1826
    %1830 = vrot.lane.b32.xlu0 %v1828, 32
    %v1831 = vpop.permute.xlu0 %1830
    %v1833 = vadd.f32 %v1823, %v1831
    %v1834 = vtanh.pop %v1833
    %1836 = vrot.lane.b32.xlu0 %v1834, 64
    %v1837 = vpop.permute.xlu0 %1836
    %v1839 = vmul.f32 %v1818, %v1837
    %v1841 = vrot.slane %v1332, 6
    %v1843 = vadd.f32 %v1336, %v1841
    %v1845 = vrot.slane %v1839, 6
    %1846 = vrot.lane.b32.xlu0 %v1845, 32
    %v1847 = vpop.permute.xlu0 %1846
    %v1848 = vsel %vm1419, %v1847, 0
    %1850 = vmatprep.subr.mxu0 0.0
    %1851 = vmatpush1.msra.mxu0 0.0
    %1852 = vmatprep.subr.mxu0 0.0
    %1853 = vmatpush1.msra.mxu0 0.0
    %1854 = vmatprep.subr.mxu0 0.0
    %1855 = vmatpush1.msra.mxu0 0.0
    %1856 = vmatprep.subr.mxu0 0.0
    %1857 = vmatpush1.msra.mxu0 0.0
    %1858 = vmatprep.subr.mxu0 0.0
    %1859 = vmatpush1.msra.mxu0 0.0
    %1860 = vmatprep.subr.mxu0 0.0
    %1861 = vmatpush1.msra.mxu0 0.0
    %1862 = vmatprep.subr.mxu0 0.0
    %1863 = vmatpush1.msra.mxu0 0.0
    %1864 = vmatprep.subr.mxu0 0.0
    %1865 = vmatpush1.msra.mxu0 0.0
    %1866 = vmatprep.subr.mxu0 0.0
    %1867 = vmatpush1.msra.mxu0 0.0
    %1868 = vmatprep.subr.mxu0 0.0
    %1869 = vmatpush1.msra.mxu0 0.0
    %1870 = vmatprep.subr.mxu0 0.0
    %1871 = vmatpush1.msra.mxu0 0.0
    %1872 = vmatprep.subr.mxu0 0.0
    %1873 = vmatpush1.msra.mxu0 0.0
    %1874 = vmatprep.subr.mxu0 0.0
    %1875 = vmatpush1.msra.mxu0 %v110
    %1876 = vmatprep.subr.mxu0 0.0
    %1877 = vmatpush1.msra.mxu0 %v109
    %1878 = vmatprep.subr.mxu0 0.0
    %1879 = vmatpush1.msra.mxu0 %v108
    %1880 = vmatprep.subr.mxu0 0.0
    %1881 = vmatpush1.msra.mxu0 %v107
    %1882 = vmatprep.subr.mxu0 0.0
    %1883 = vmatpush2.msra.mxu0 0.0
    %1884 = vmatprep.subr.mxu0 0.0
    %1885 = vmatpush2.msra.mxu0 0.0
    %1886 = vmatprep.subr.mxu0 0.0
    %1887 = vmatpush2.msra.mxu0 0.0
    %1888 = vmatprep.subr.mxu0 0.0
    %1889 = vmatpush2.msra.mxu0 0.0
    %1890 = vmatprep.subr.mxu0 0.0
    %1891 = vmatpush2.msra.mxu0 0.0
    %1892 = vmatprep.subr.mxu0 0.0
    %1893 = vmatpush2.msra.mxu0 0.0
    %1894 = vmatprep.subr.mxu0 0.0
    %1895 = vmatpush2.msra.mxu0 0.0
    %1896 = vmatprep.subr.mxu0 0.0
    %1897 = vmatpush2.msra.mxu0 0.0
    %1898 = vmatprep.subr.mxu0 0.0
    %1899 = vmatpush2.msra.mxu0 0.0
    %1900 = vmatprep.subr.mxu0 0.0
    %1901 = vmatpush2.msra.mxu0 0.0
    %1902 = vmatprep.subr.mxu0 0.0
    %1903 = vmatpush2.msra.mxu0 0.0
    %1904 = vmatprep.subr.mxu0 0.0
    %1905 = vmatpush2.msra.mxu0 0.0
    %1906 = vmatprep.subr.mxu0 0.0
    %1907 = vmatpush2.msra.mxu0 0.0
    %1908 = vmatprep.subr.mxu0 0.0
    %1909 = vmatpush2.msra.mxu0 0.0
    %1910 = vmatprep.subr.mxu0 0.0
    %1911 = vmatpush2.msra.mxu0 0.0
    %1912 = vmatprep.subr.mxu0 0.0
    %1913 = vmatpush2.msra.mxu0 0.0
    %1914 = vmatprep.mubr.f32.mxu0 0.0
    %1915 = vmatmul.mubr.f32.gmra.mxu0 %v1848
    %v1916 = vpop.f32.mrf.mxu0
    %v1917 = vadd.f32 0.0, %v1916
    %v1918 = vpop.f32.mrf.mxu0
    %1919 = vdwg.mxu0
    %v1920 = vadd.f32 %v1843, %v1917
    %v1921 = vxor.u32 %v1920, 2147483648
    %v1922 = vmul.f32 %v1921, 1.442695
    %v1923 = vpow.pop %v1922
    %v1924 = vadd.f32 %v1923, 1.0
    %v1925 = vrcp.pop %v1924
    %v1926 = vmul.f32 1.0, %v1925
    %v1927 = vtanh.pop %v1920
    %v1929 = vrot.slane %v1833, 6
    %v1931 = vmul.f32 %v1926, %v1929
    %1933 = vrot.lane.b32.xlu0 %v1927, 64
    %v1934 = vpop.permute.xlu0 %1933
    %v1936 = vmul.f32 %v1926, %v1934
    %1938 = vrot.lane.b32.xlu0 %v1936, 32
    %v1939 = vpop.permute.xlu0 %1938
    %v1941 = vadd.f32 %v1931, %v1939
    %v1942 = vtanh.pop %v1941
    %1944 = vrot.lane.b32.xlu0 %v1942, 64
    %v1945 = vpop.permute.xlu0 %1944
    %v1947 = vmul.f32 %v1926, %v1945
    %v1948 = vrot.slane %v1332, 2
    %v1950 = vadd.f32 %v1336, %v1948
    %1952 = vrot.lane.b32.xlu0 %v1947, 32
    %v1953 = vpop.permute.xlu0 %1952
    %v1954 = vsel %vm1419, %v1953, 0
    %1956 = vmatprep.subr.mxu0 0.0
    %1957 = vmatpush1.msra.mxu0 0.0
    %1958 = vmatprep.subr.mxu0 0.0
    %1959 = vmatpush1.msra.mxu0 0.0
    %1960 = vmatprep.subr.mxu0 0.0
    %1961 = vmatpush1.msra.mxu0 0.0
    %1962 = vmatprep.subr.mxu0 0.0
    %1963 = vmatpush1.msra.mxu0 0.0
    %1964 = vmatprep.subr.mxu0 0.0
    %1965 = vmatpush1.msra.mxu0 0.0
    %1966 = vmatprep.subr.mxu0 0.0
    %1967 = vmatpush1.msra.mxu0 0.0
    %1968 = vmatprep.subr.mxu0 0.0
    %1969 = vmatpush1.msra.mxu0 0.0
    %1970 = vmatprep.subr.mxu0 0.0
    %1971 = vmatpush1.msra.mxu0 0.0
    %1972 = vmatprep.subr.mxu0 0.0
    %1973 = vmatpush1.msra.mxu0 0.0
    %1974 = vmatprep.subr.mxu0 0.0
    %1975 = vmatpush1.msra.mxu0 0.0
    %1976 = vmatprep.subr.mxu0 0.0
    %1977 = vmatpush1.msra.mxu0 0.0
    %1978 = vmatprep.subr.mxu0 0.0
    %1979 = vmatpush1.msra.mxu0 0.0
    %1980 = vmatprep.subr.mxu0 0.0
    %1981 = vmatpush1.msra.mxu0 %v110
    %1982 = vmatprep.subr.mxu0 0.0
    %1983 = vmatpush1.msra.mxu0 %v109
    %1984 = vmatprep.subr.mxu0 0.0
    %1985 = vmatpush1.msra.mxu0 %v108
    %1986 = vmatprep.subr.mxu0 0.0
    %1987 = vmatpush1.msra.mxu0 %v107
    %1988 = vmatprep.subr.mxu0 0.0
    %1989 = vmatpush2.msra.mxu0 0.0
    %1990 = vmatprep.subr.mxu0 0.0
    %1991 = vmatpush2.msra.mxu0 0.0
    %1992 = vmatprep.subr.mxu0 0.0
    %1993 = vmatpush2.msra.mxu0 0.0
    %1994 = vmatprep.subr.mxu0 0.0
    %1995 = vmatpush2.msra.mxu0 0.0
    %1996 = vmatprep.subr.mxu0 0.0
    %1997 = vmatpush2.msra.mxu0 0.0
    %1998 = vmatprep.subr.mxu0 0.0
    %1999 = vmatpush2.msra.mxu0 0.0
    %2000 = vmatprep.subr.mxu0 0.0
    %2001 = vmatpush2.msra.mxu0 0.0
    %2002 = vmatprep.subr.mxu0 0.0
    %2003 = vmatpush2.msra.mxu0 0.0
    %2004 = vmatprep.subr.mxu0 0.0
    %2005 = vmatpush2.msra.mxu0 0.0
    %2006 = vmatprep.subr.mxu0 0.0
    %2007 = vmatpush2.msra.mxu0 0.0
    %2008 = vmatprep.subr.mxu0 0.0
    %2009 = vmatpush2.msra.mxu0 0.0
    %2010 = vmatprep.subr.mxu0 0.0
    %2011 = vmatpush2.msra.mxu0 0.0
    %2012 = vmatprep.subr.mxu0 0.0
    %2013 = vmatpush2.msra.mxu0 0.0
    %2014 = vmatprep.subr.mxu0 0.0
    %2015 = vmatpush2.msra.mxu0 0.0
    %2016 = vmatprep.subr.mxu0 0.0
    %2017 = vmatpush2.msra.mxu0 0.0
    %2018 = vmatprep.subr.mxu0 0.0
    %2019 = vmatpush2.msra.mxu0 0.0
    %2020 = vmatprep.mubr.f32.mxu0 0.0
    %2021 = vmatmul.mubr.f32.gmra.mxu0 %v1954
    %v2022 = vpop.f32.mrf.mxu0
    %v2023 = vadd.f32 0.0, %v2022
    %v2024 = vpop.f32.mrf.mxu0
    %2025 = vdwg.mxu0
    %v2027 = vrot.slane %v2023, 6
    %v2029 = vadd.f32 %v1950, %v2027
    %v2030 = vxor.u32 %v2029, 2147483648
    %v2031 = vmul.f32 %v2030, 1.442695
    %v2032 = vpow.pop %v2031
    %v2033 = vadd.f32 %v2032, 1.0
    %v2034 = vrcp.pop %v2033
    %v2035 = vmul.f32 1.0, %v2034
    %v2036 = vtanh.pop %v2029
    %v2038 = vrot.slane %v1941, 6
    %v2040 = vmul.f32 %v2035, %v2038
    %2042 = vrot.lane.b32.xlu0 %v2036, 64
    %v2043 = vpop.permute.xlu0 %2042
    %v2045 = vmul.f32 %v2035, %v2043
    %2047 = vrot.lane.b32.xlu0 %v2045, 32
    %v2048 = vpop.permute.xlu0 %2047
    %v2050 = vadd.f32 %v2040, %v2048
    %v2051 = vtanh.pop %v2050
    %2053 = vrot.lane.b32.xlu0 %v2051, 64
    %v2054 = vpop.permute.xlu0 %2053
    %v2056 = vmul.f32 %v2035, %v2054
    %v2058 = vrot.slane %v2056, 2
    %2059 = vrot.lane.b32.xlu0 %v2058, 32
    %v2060 = vpop.permute.xlu0 %2059
    %v2061 = vsel %vm1419, %v2060, 0
    %2063 = vmatprep.subr.mxu0 0.0
    %2064 = vmatpush1.msra.mxu0 0.0
    %2065 = vmatprep.subr.mxu0 0.0
    %2066 = vmatpush1.msra.mxu0 0.0
    %2067 = vmatprep.subr.mxu0 0.0
    %2068 = vmatpush1.msra.mxu0 0.0
    %2069 = vmatprep.subr.mxu0 0.0
    %2070 = vmatpush1.msra.mxu0 0.0
    %2071 = vmatprep.subr.mxu0 0.0
    %2072 = vmatpush1.msra.mxu0 0.0
    %2073 = vmatprep.subr.mxu0 0.0
    %2074 = vmatpush1.msra.mxu0 0.0
    %2075 = vmatprep.subr.mxu0 0.0
    %2076 = vmatpush1.msra.mxu0 0.0
    %2077 = vmatprep.subr.mxu0 0.0
    %2078 = vmatpush1.msra.mxu0 0.0
    %2079 = vmatprep.subr.mxu0 0.0
    %2080 = vmatpush1.msra.mxu0 0.0
    %2081 = vmatprep.subr.mxu0 0.0
    %2082 = vmatpush1.msra.mxu0 0.0
    %2083 = vmatprep.subr.mxu0 0.0
    %2084 = vmatpush1.msra.mxu0 0.0
    %2085 = vmatprep.subr.mxu0 0.0
    %2086 = vmatpush1.msra.mxu0 0.0
    %2087 = vmatprep.subr.mxu0 0.0
    %2088 = vmatpush1.msra.mxu0 %v110
    %2089 = vmatprep.subr.mxu0 0.0
    %2090 = vmatpush1.msra.mxu0 %v109
    %2091 = vmatprep.subr.mxu0 0.0
    %2092 = vmatpush1.msra.mxu0 %v108
    %2093 = vmatprep.subr.mxu0 0.0
    %2094 = vmatpush1.msra.mxu0 %v107
    %2095 = vmatprep.subr.mxu0 0.0
    %2096 = vmatpush2.msra.mxu0 0.0
    %2097 = vmatprep.subr.mxu0 0.0
    %2098 = vmatpush2.msra.mxu0 0.0
    %2099 = vmatprep.subr.mxu0 0.0
    %2100 = vmatpush2.msra.mxu0 0.0
    %2101 = vmatprep.subr.mxu0 0.0
    %2102 = vmatpush2.msra.mxu0 0.0
    %2103 = vmatprep.subr.mxu0 0.0
    %2104 = vmatpush2.msra.mxu0 0.0
    %2105 = vmatprep.subr.mxu0 0.0
    %2106 = vmatpush2.msra.mxu0 0.0
    %2107 = vmatprep.subr.mxu0 0.0
    %2108 = vmatpush2.msra.mxu0 0.0
    %2109 = vmatprep.subr.mxu0 0.0
    %2110 = vmatpush2.msra.mxu0 0.0
    %2111 = vmatprep.subr.mxu0 0.0
    %2112 = vmatpush2.msra.mxu0 0.0
    %2113 = vmatprep.subr.mxu0 0.0
    %2114 = vmatpush2.msra.mxu0 0.0
    %2115 = vmatprep.subr.mxu0 0.0
    %2116 = vmatpush2.msra.mxu0 0.0
    %2117 = vmatprep.subr.mxu0 0.0
    %2118 = vmatpush2.msra.mxu0 0.0
    %2119 = vmatprep.subr.mxu0 0.0
    %2120 = vmatpush2.msra.mxu0 0.0
    %2121 = vmatprep.subr.mxu0 0.0
    %2122 = vmatpush2.msra.mxu0 0.0
    %2123 = vmatprep.subr.mxu0 0.0
    %2124 = vmatpush2.msra.mxu0 0.0
    %2125 = vmatprep.subr.mxu0 0.0
    %2126 = vmatpush2.msra.mxu0 0.0
    %2127 = vmatprep.mubr.f32.mxu0 0.0
    %2128 = vmatmul.mubr.f32.gmra.mxu0 %v2061
    %v2129 = vpop.f32.mrf.mxu0
    %v2130 = vadd.f32 0.0, %v2129
    %v2131 = vpop.f32.mrf.mxu0
    %2132 = vdwg.mxu0
    %v2134 = vrot.slane %v2130, 4
    %v2136 = vadd.f32 %v1843, %v2134
    %v2137 = vxor.u32 %v2136, 2147483648
    %v2138 = vmul.f32 %v2137, 1.442695
    %v2139 = vpow.pop %v2138
    %v2140 = vadd.f32 %v2139, 1.0
    %v2141 = vrcp.pop %v2140
    %v2142 = vmul.f32 1.0, %v2141
    %v2143 = vtanh.pop %v2136
    %v2145 = vrot.slane %v2050, 6
    %v2147 = vmul.f32 %v2142, %v2145
    %2149 = vrot.lane.b32.xlu0 %v2143, 64
    %v2150 = vpop.permute.xlu0 %2149
    %v2152 = vmul.f32 %v2142, %v2150
    %2154 = vrot.lane.b32.xlu0 %v2152, 32
    %v2155 = vpop.permute.xlu0 %2154
    %v2157 = vadd.f32 %v2147, %v2155
    %v2158 = vtanh.pop %v2157
    %2160 = vrot.lane.b32.xlu0 %v2158, 64
    %v2161 = vpop.permute.xlu0 %2160
    %v2163 = vmul.f32 %v2142, %v2161
    %v2165 = vrot.slane %v2163, 4
    %2166 = vrot.lane.b32.xlu0 %v2165, 32
    %v2167 = vpop.permute.xlu0 %2166
    %v2168 = vsel %vm1419, %v2167, 0
    %2170 = vmatprep.subr.mxu0 0.0
    %2171 = vmatpush1.msra.mxu0 0.0
    %2172 = vmatprep.subr.mxu0 0.0
    %2173 = vmatpush1.msra.mxu0 0.0
    %2174 = vmatprep.subr.mxu0 0.0
    %2175 = vmatpush1.msra.mxu0 0.0
    %2176 = vmatprep.subr.mxu0 0.0
    %2177 = vmatpush1.msra.mxu0 0.0
    %2178 = vmatprep.subr.mxu0 0.0
    %2179 = vmatpush1.msra.mxu0 0.0
    %2180 = vmatprep.subr.mxu0 0.0
    %2181 = vmatpush1.msra.mxu0 0.0
    %2182 = vmatprep.subr.mxu0 0.0
    %2183 = vmatpush1.msra.mxu0 0.0
    %2184 = vmatprep.subr.mxu0 0.0
    %2185 = vmatpush1.msra.mxu0 0.0
    %2186 = vmatprep.subr.mxu0 0.0
    %2187 = vmatpush1.msra.mxu0 0.0
    %2188 = vmatprep.subr.mxu0 0.0
    %2189 = vmatpush1.msra.mxu0 0.0
    %2190 = vmatprep.subr.mxu0 0.0
    %2191 = vmatpush1.msra.mxu0 0.0
    %2192 = vmatprep.subr.mxu0 0.0
    %2193 = vmatpush1.msra.mxu0 0.0
    %2194 = vmatprep.subr.mxu0 0.0
    %2195 = vmatpush1.msra.mxu0 %v110
    %2196 = vmatprep.subr.mxu0 0.0
    %2197 = vmatpush1.msra.mxu0 %v109
    %2198 = vmatprep.subr.mxu0 0.0
    %2199 = vmatpush1.msra.mxu0 %v108
    %2200 = vmatprep.subr.mxu0 0.0
    %2201 = vmatpush1.msra.mxu0 %v107
    %2202 = vmatprep.subr.mxu0 0.0
    %2203 = vmatpush2.msra.mxu0 0.0
    %2204 = vmatprep.subr.mxu0 0.0
    %2205 = vmatpush2.msra.mxu0 0.0
    %2206 = vmatprep.subr.mxu0 0.0
    %2207 = vmatpush2.msra.mxu0 0.0
    %2208 = vmatprep.subr.mxu0 0.0
    %2209 = vmatpush2.msra.mxu0 0.0
    %2210 = vmatprep.subr.mxu0 0.0
    %2211 = vmatpush2.msra.mxu0 0.0
    %2212 = vmatprep.subr.mxu0 0.0
    %2213 = vmatpush2.msra.mxu0 0.0
    %2214 = vmatprep.subr.mxu0 0.0
    %2215 = vmatpush2.msra.mxu0 0.0
    %2216 = vmatprep.subr.mxu0 0.0
    %2217 = vmatpush2.msra.mxu0 0.0
    %2218 = vmatprep.subr.mxu0 0.0
    %2219 = vmatpush2.msra.mxu0 0.0
    %2220 = vmatprep.subr.mxu0 0.0
    %2221 = vmatpush2.msra.mxu0 0.0
    %2222 = vmatprep.subr.mxu0 0.0
    %2223 = vmatpush2.msra.mxu0 0.0
    %2224 = vmatprep.subr.mxu0 0.0
    %2225 = vmatpush2.msra.mxu0 0.0
    %2226 = vmatprep.subr.mxu0 0.0
    %2227 = vmatpush2.msra.mxu0 0.0
    %2228 = vmatprep.subr.mxu0 0.0
    %2229 = vmatpush2.msra.mxu0 0.0
    %2230 = vmatprep.subr.mxu0 0.0
    %2231 = vmatpush2.msra.mxu0 0.0
    %2232 = vmatprep.subr.mxu0 0.0
    %2233 = vmatpush2.msra.mxu0 0.0
    %2234 = vmatprep.mubr.f32.mxu0 0.0
    %2235 = vmatmul.mubr.f32.gmra.mxu0 %v2168
    %v2236 = vpop.f32.mrf.mxu0
    %v2237 = vadd.f32 0.0, %v2236
    %v2238 = vpop.f32.mrf.mxu0
    %2239 = vdwg.mxu0
    %v2241 = vrot.slane %v2237, 2
    %v2243 = vadd.f32 %v1950, %v2241
    %v2244 = vxor.u32 %v2243, 2147483648
    %v2245 = vmul.f32 %v2244, 1.442695
    %v2246 = vpow.pop %v2245
    %v2247 = vadd.f32 %v2246, 1.0
    %v2248 = vrcp.pop %v2247
    %v2249 = vmul.f32 1.0, %v2248
    %v2250 = vtanh.pop %v2243
    %v2252 = vrot.slane %v2157, 6
    %v2254 = vmul.f32 %v2249, %v2252
    %2256 = vrot.lane.b32.xlu0 %v2250, 64
    %v2257 = vpop.permute.xlu0 %2256
    %v2259 = vmul.f32 %v2249, %v2257
    %2261 = vrot.lane.b32.xlu0 %v2259, 32
    %v2262 = vpop.permute.xlu0 %2261
    %v2264 = vadd.f32 %v2254, %v2262
    %v2265 = vtanh.pop %v2264
    %2267 = vrot.lane.b32.xlu0 %v2265, 64
    %v2268 = vpop.permute.xlu0 %2267
    %v2270 = vmul.f32 %v2249, %v2268
    %v2272 = vrot.slane %v1408, 2
    %v2274 = vadd.f32 %v1412, %v2272
    %v2275 = vxor.u32 %v2274, 2147483648
    %v2276 = vmul.f32 %v2275, 1.442695
    %v2277 = vpow.pop %v2276
    %v2278 = vadd.f32 %v2277, 1.0
    %v2279 = vrcp.pop %v2278
    %v2280 = vmul.f32 1.0, %v2279
    %v2281 = vtanh.pop %v2274
    %2283 = vrot.lane.b32.xlu0 %v2281, 64
    %v2284 = vpop.permute.xlu0 %2283
    %v2286 = vmul.f32 %v2280, %v2284
    %v2287 = vtanh.pop %v2286
    %2289 = vrot.lane.b32.xlu0 %v2287, 96
    %v2290 = vpop.permute.xlu0 %2289
    %v2292 = vmul.f32 %v2280, %v2290
    %2294 = vrot.lane.b32.xlu0 %v2270, 32
    %v2295 = vpop.permute.xlu0 %2294
    %2298 = vrot.lane.b32.xlu0 %v2292, 64
    %v2299 = vpop.permute.xlu0 %2298
    %v2301 = vsel %vm1419, %v2295, %v2299
    %v2303 = vlaneseq
    %v2304 = vshrl.u32 %v2303, 7
    %v2305 = vsub.s32 0, %v2304
    %v2306 = vrot.slane %v126, %v2305
    %v2307 = vlaneseq
    %v2308 = vshrl.u32 %v2307, 7
    %v2309 = vsub.s32 1, %v2308
    %v2310 = vrot.slane %v126, %v2309
    %v2314 = vrot.slane %v2301, 6
    %v2315 = vsel %vm340, %v2314, 0
    %2317 = vmatprep.subr.mxu0 0.0
    %2318 = vmatpush1.msra.mxu0 0.0
    %2319 = vmatprep.subr.mxu0 0.0
    %2320 = vmatpush1.msra.mxu0 0.0
    %2321 = vmatprep.subr.mxu0 0.0
    %2322 = vmatpush1.msra.mxu0 0.0
    %2323 = vmatprep.subr.mxu0 0.0
    %2324 = vmatpush1.msra.mxu0 0.0
    %2325 = vmatprep.subr.mxu0 0.0
    %2326 = vmatpush1.msra.mxu0 0.0
    %2327 = vmatprep.subr.mxu0 0.0
    %2328 = vmatpush1.msra.mxu0 0.0
    %2329 = vmatprep.subr.mxu0 0.0
    %2330 = vmatpush1.msra.mxu0 0.0
    %2331 = vmatprep.subr.mxu0 0.0
    %2332 = vmatpush1.msra.mxu0 0.0
    %2333 = vmatprep.subr.mxu0 %v90
    %2334 = vmatpush1.msra.mxu0 %v89
    %2335 = vmatprep.subr.mxu0 %v88
    %2336 = vmatpush1.msra.mxu0 %v87
    %2337 = vmatprep.subr.mxu0 %v86
    %2338 = vmatpush1.msra.mxu0 %v85
    %2339 = vmatprep.subr.mxu0 %v84
    %2340 = vmatpush1.msra.mxu0 %v83
    %2341 = vmatprep.subr.mxu0 %v82
    %2342 = vmatpush1.msra.mxu0 %v81
    %2343 = vmatprep.subr.mxu0 %v80
    %2344 = vmatpush1.msra.mxu0 %v79
    %2345 = vmatprep.subr.mxu0 %v78
    %2346 = vmatpush1.msra.mxu0 %v77
    %2347 = vmatprep.subr.mxu0 %v76
    %2348 = vmatpush1.msra.mxu0 %v75
    %2349 = vmatprep.subr.mxu0 0.0
    %2350 = vmatpush2.msra.mxu0 0.0
    %2351 = vmatprep.subr.mxu0 0.0
    %2352 = vmatpush2.msra.mxu0 0.0
    %2353 = vmatprep.subr.mxu0 0.0
    %2354 = vmatpush2.msra.mxu0 0.0
    %2355 = vmatprep.subr.mxu0 0.0
    %2356 = vmatpush2.msra.mxu0 0.0
    %2357 = vmatprep.subr.mxu0 0.0
    %2358 = vmatpush2.msra.mxu0 0.0
    %2359 = vmatprep.subr.mxu0 0.0
    %2360 = vmatpush2.msra.mxu0 0.0
    %2361 = vmatprep.subr.mxu0 0.0
    %2362 = vmatpush2.msra.mxu0 0.0
    %2363 = vmatprep.subr.mxu0 0.0
    %2364 = vmatpush2.msra.mxu0 0.0
    %2365 = vmatprep.subr.mxu0 0.0
    %2366 = vmatpush2.msra.mxu0 0.0
    %2367 = vmatprep.subr.mxu0 0.0
    %2368 = vmatpush2.msra.mxu0 0.0
    %2369 = vmatprep.subr.mxu0 0.0
    %2370 = vmatpush2.msra.mxu0 0.0
    %2371 = vmatprep.subr.mxu0 0.0
    %2372 = vmatpush2.msra.mxu0 0.0
    %2373 = vmatprep.subr.mxu0 0.0
    %2374 = vmatpush2.msra.mxu0 0.0
    %2375 = vmatprep.subr.mxu0 0.0
    %2376 = vmatpush2.msra.mxu0 0.0
    %2377 = vmatprep.subr.mxu0 0.0
    %2378 = vmatpush2.msra.mxu0 0.0
    %2379 = vmatprep.subr.mxu0 0.0
    %2380 = vmatpush2.msra.mxu0 0.0
    %2381 = vmatprep.mubr.f32.mxu0 0.0
    %2382 = vmatmul.mubr.f32.gmra.mxu0 %v2315
    %v2383 = vpop.f32.mrf.mxu0
    %v2384 = vadd.f32 %v2306, %v2383
    %v2385 = vpop.f32.mrf.mxu0
    %v2386 = vadd.f32 %v2310, %v2385
    %2387 = vdwg.mxu0
    %v2388 = vxor.u32 %v2384, 2147483648
    %v2389 = vxor.u32 %v2386, 2147483648
    %v2390 = vmul.f32 %v2388, 1.442695
    %v2391 = vpow.pop %v2390
    %v2392 = vmul.f32 %v2389, 1.442695
    %v2393 = vpow.pop %v2392
    %v2394 = vadd.f32 %v2391, 1.0
    %v2395 = vadd.f32 %v2393, 1.0
    %v2396 = vrcp.pop %v2394
    %v2397 = vmul.f32 1.0, %v2396
    %v2398 = vrcp.pop %v2395
    %v2399 = vmul.f32 1.0, %v2398
    %v2400 = vtanh.pop %v2386
    %v2401 = vmul.f32 %v2397, %v2400
    %v2402 = vtanh.pop %v2401
    %2404 = vrot.lane.b32.xlu0 %v2402, 64
    %v2405 = vpop.permute.xlu0 %2404
    %v2407 = vmul.f32 %v2399, %v2405
    %v2409 = vlaneseq
    %v2410 = vshrl.u32 %v2409, 7
    %v2411 = vsub.s32 0, %v2410
    %v2412 = vrot.slane %v128, %v2411
    %v2413 = vlaneseq
    %v2414 = vshrl.u32 %v2413, 7
    %v2415 = vsub.s32 1, %v2414
    %v2416 = vrot.slane %v128, %v2415
    %2420 = vrot.lane.b32.xlu0 %v2407, 64
    %v2421 = vpop.permute.xlu0 %2420
    %v2422 = vsel %vm340, %v2421, 0
    %2424 = vmatprep.subr.mxu0 0.0
    %2425 = vmatpush1.msra.mxu0 0.0
    %2426 = vmatprep.subr.mxu0 0.0
    %2427 = vmatpush1.msra.mxu0 0.0
    %2428 = vmatprep.subr.mxu0 0.0
    %2429 = vmatpush1.msra.mxu0 0.0
    %2430 = vmatprep.subr.mxu0 0.0
    %2431 = vmatpush1.msra.mxu0 0.0
    %2432 = vmatprep.subr.mxu0 0.0
    %2433 = vmatpush1.msra.mxu0 0.0
    %2434 = vmatprep.subr.mxu0 0.0
    %2435 = vmatpush1.msra.mxu0 0.0
    %2436 = vmatprep.subr.mxu0 0.0
    %2437 = vmatpush1.msra.mxu0 0.0
    %2438 = vmatprep.subr.mxu0 0.0
    %2439 = vmatpush1.msra.mxu0 0.0
    %2440 = vmatprep.subr.mxu0 %v106
    %2441 = vmatpush1.msra.mxu0 %v105
    %2442 = vmatprep.subr.mxu0 %v104
    %2443 = vmatpush1.msra.mxu0 %v103
    %2444 = vmatprep.subr.mxu0 %v102
    %2445 = vmatpush1.msra.mxu0 %v101
    %2446 = vmatprep.subr.mxu0 %v100
    %2447 = vmatpush1.msra.mxu0 %v99
    %2448 = vmatprep.subr.mxu0 %v98
    %2449 = vmatpush1.msra.mxu0 %v97
    %2450 = vmatprep.subr.mxu0 %v96
    %2451 = vmatpush1.msra.mxu0 %v95
    %2452 = vmatprep.subr.mxu0 %v94
    %2453 = vmatpush1.msra.mxu0 %v93
    %2454 = vmatprep.subr.mxu0 %v92
    %2455 = vmatpush1.msra.mxu0 %v91
    %2456 = vmatprep.subr.mxu0 0.0
    %2457 = vmatpush2.msra.mxu0 0.0
    %2458 = vmatprep.subr.mxu0 0.0
    %2459 = vmatpush2.msra.mxu0 0.0
    %2460 = vmatprep.subr.mxu0 0.0
    %2461 = vmatpush2.msra.mxu0 0.0
    %2462 = vmatprep.subr.mxu0 0.0
    %2463 = vmatpush2.msra.mxu0 0.0
    %2464 = vmatprep.subr.mxu0 0.0
    %2465 = vmatpush2.msra.mxu0 0.0
    %2466 = vmatprep.subr.mxu0 0.0
    %2467 = vmatpush2.msra.mxu0 0.0
    %2468 = vmatprep.subr.mxu0 0.0
    %2469 = vmatpush2.msra.mxu0 0.0
    %2470 = vmatprep.subr.mxu0 0.0
    %2471 = vmatpush2.msra.mxu0 0.0
    %2472 = vmatprep.subr.mxu0 0.0
    %2473 = vmatpush2.msra.mxu0 0.0
    %2474 = vmatprep.subr.mxu0 0.0
    %2475 = vmatpush2.msra.mxu0 0.0
    %2476 = vmatprep.subr.mxu0 0.0
    %2477 = vmatpush2.msra.mxu0 0.0
    %2478 = vmatprep.subr.mxu0 0.0
    %2479 = vmatpush2.msra.mxu0 0.0
    %2480 = vmatprep.subr.mxu0 0.0
    %2481 = vmatpush2.msra.mxu0 0.0
    %2482 = vmatprep.subr.mxu0 0.0
    %2483 = vmatpush2.msra.mxu0 0.0
    %2484 = vmatprep.subr.mxu0 0.0
    %2485 = vmatpush2.msra.mxu0 0.0
    %2486 = vmatprep.subr.mxu0 0.0
    %2487 = vmatpush2.msra.mxu0 0.0
    %2488 = vmatprep.mubr.f32.mxu0 0.0
    %2489 = vmatmul.mubr.f32.gmra.mxu0 %v2422
    %v2490 = vpop.f32.mrf.mxu0
    %v2491 = vadd.f32 %v2412, %v2490
    %v2492 = vpop.f32.mrf.mxu0
    %v2493 = vadd.f32 %v2416, %v2492
    %2494 = vdwg.mxu0
    %v2495 = vxor.u32 %v2491, 2147483648
    %v2496 = vxor.u32 %v2493, 2147483648
    %v2497 = vmul.f32 %v2495, 1.442695
    %v2498 = vpow.pop %v2497
    %v2499 = vmul.f32 %v2496, 1.442695
    %v2500 = vpow.pop %v2499
    %v2501 = vadd.f32 %v2498, 1.0
    %v2502 = vadd.f32 %v2500, 1.0
    %v2503 = vrcp.pop %v2501
    %v2504 = vmul.f32 1.0, %v2503
    %v2505 = vrcp.pop %v2502
    %v2506 = vmul.f32 1.0, %v2505
    %v2507 = vtanh.pop %v2493
    %v2508 = vmul.f32 %v2504, %v2507
    %v2509 = vtanh.pop %v2508
    %2511 = vrot.lane.b32.xlu0 %v2509, 64
    %v2512 = vpop.permute.xlu0 %2511
    %v2514 = vmul.f32 %v2506, %v2512
    %2516 = vrot.lane.b32.xlu0 %v2514, 64
    %v2517 = vpop.permute.xlu0 %2516
    %v2518 = vsel %vm340, %v2517, 0
    %2520 = vmatprep.subr.mxu0 0.0
    %2521 = vmatpush1.msra.mxu0 0.0
    %2522 = vmatprep.subr.mxu0 0.0
    %2523 = vmatpush1.msra.mxu0 0.0
    %2524 = vmatprep.subr.mxu0 0.0
    %2525 = vmatpush1.msra.mxu0 0.0
    %2526 = vmatprep.subr.mxu0 0.0
    %2527 = vmatpush1.msra.mxu0 0.0
    %2528 = vmatprep.subr.mxu0 0.0
    %2529 = vmatpush1.msra.mxu0 0.0
    %2530 = vmatprep.subr.mxu0 0.0
    %2531 = vmatpush1.msra.mxu0 0.0
    %2532 = vmatprep.subr.mxu0 0.0
    %2533 = vmatpush1.msra.mxu0 0.0
    %2534 = vmatprep.subr.mxu0 0.0
    %2535 = vmatpush1.msra.mxu0 0.0
    %2536 = vmatprep.subr.mxu0 0.0
    %2537 = vmatpush1.msra.mxu0 %v118
    %2538 = vmatprep.subr.mxu0 0.0
    %2539 = vmatpush1.msra.mxu0 %v117
    %2540 = vmatprep.subr.mxu0 0.0
    %2541 = vmatpush1.msra.mxu0 %v116
    %2542 = vmatprep.subr.mxu0 0.0
    %2543 = vmatpush1.msra.mxu0 %v115
    %2544 = vmatprep.subr.mxu0 0.0
    %2545 = vmatpush1.msra.mxu0 %v114
    %2546 = vmatprep.subr.mxu0 0.0
    %2547 = vmatpush1.msra.mxu0 %v113
    %2548 = vmatprep.subr.mxu0 0.0
    %2549 = vmatpush1.msra.mxu0 %v112
    %2550 = vmatprep.subr.mxu0 0.0
    %2551 = vmatpush1.msra.mxu0 %v111
    %2552 = vmatprep.subr.mxu0 0.0
    %2553 = vmatpush2.msra.mxu0 0.0
    %2554 = vmatprep.subr.mxu0 0.0
    %2555 = vmatpush2.msra.mxu0 0.0
    %2556 = vmatprep.subr.mxu0 0.0
    %2557 = vmatpush2.msra.mxu0 0.0
    %2558 = vmatprep.subr.mxu0 0.0
    %2559 = vmatpush2.msra.mxu0 0.0
    %2560 = vmatprep.subr.mxu0 0.0
    %2561 = vmatpush2.msra.mxu0 0.0
    %2562 = vmatprep.subr.mxu0 0.0
    %2563 = vmatpush2.msra.mxu0 0.0
    %2564 = vmatprep.subr.mxu0 0.0
    %2565 = vmatpush2.msra.mxu0 0.0
    %2566 = vmatprep.subr.mxu0 0.0
    %2567 = vmatpush2.msra.mxu0 0.0
    %2568 = vmatprep.subr.mxu0 0.0
    %2569 = vmatpush2.msra.mxu0 0.0
    %2570 = vmatprep.subr.mxu0 0.0
    %2571 = vmatpush2.msra.mxu0 0.0
    %2572 = vmatprep.subr.mxu0 0.0
    %2573 = vmatpush2.msra.mxu0 0.0
    %2574 = vmatprep.subr.mxu0 0.0
    %2575 = vmatpush2.msra.mxu0 0.0
    %2576 = vmatprep.subr.mxu0 0.0
    %2577 = vmatpush2.msra.mxu0 0.0
    %2578 = vmatprep.subr.mxu0 0.0
    %2579 = vmatpush2.msra.mxu0 0.0
    %2580 = vmatprep.subr.mxu0 0.0
    %2581 = vmatpush2.msra.mxu0 0.0
    %2582 = vmatprep.subr.mxu0 0.0
    %2583 = vmatpush2.msra.mxu0 0.0
    %2584 = vmatprep.mubr.f32.mxu0 0.0
    %2585 = vmatmul.mubr.f32.gmra.mxu0 %v2518
    %v2586 = vpop.f32.mrf.mxu0
    %v2587 = vadd.f32 %v129, %v2586
    %v2588 = vpop.f32.mrf.mxu0
    %2589 = vdwg.mxu0
    %v2590 = vmax.f32 %v2587, 0.0
    %v2592 = vsel %vm1419, %v2590, 0
    %2594 = vmatprep.subr.mxu0 0.0
    %2595 = vmatpush1.msra.mxu0 0.0
    %2596 = vmatprep.subr.mxu0 0.0
    %2597 = vmatpush1.msra.mxu0 0.0
    %2598 = vmatprep.subr.mxu0 0.0
    %2599 = vmatpush1.msra.mxu0 0.0
    %2600 = vmatprep.subr.mxu0 0.0
    %2601 = vmatpush1.msra.mxu0 0.0
    %2602 = vmatprep.subr.mxu0 0.0
    %2603 = vmatpush1.msra.mxu0 0.0
    %2604 = vmatprep.subr.mxu0 0.0
    %2605 = vmatpush1.msra.mxu0 0.0
    %2606 = vmatprep.subr.mxu0 0.0
    %2607 = vmatpush1.msra.mxu0 0.0
    %2608 = vmatprep.subr.mxu0 0.0
    %2609 = vmatpush1.msra.mxu0 0.0
    %2610 = vmatprep.subr.mxu0 0.0
    %2611 = vmatpush1.msra.mxu0 0.0
    %2612 = vmatprep.subr.mxu0 0.0
    %2613 = vmatpush1.msra.mxu0 0.0
    %2614 = vmatprep.subr.mxu0 0.0
    %2615 = vmatpush1.msra.mxu0 0.0
    %2616 = vmatprep.subr.mxu0 0.0
    %2617 = vmatpush1.msra.mxu0 0.0
    %2618 = vmatprep.subr.mxu0 0.0
    %2619 = vmatpush1.msra.mxu0 %v122
    %2620 = vmatprep.subr.mxu0 0.0
    %2621 = vmatpush1.msra.mxu0 %v121
    %2622 = vmatprep.subr.mxu0 0.0
    %2623 = vmatpush1.msra.mxu0 %v120
    %2624 = vmatprep.subr.mxu0 0.0
    %2625 = vmatpush1.msra.mxu0 %v119
    %2626 = vmatprep.subr.mxu0 0.0
    %2627 = vmatpush2.msra.mxu0 0.0
    %2628 = vmatprep.subr.mxu0 0.0
    %2629 = vmatpush2.msra.mxu0 0.0
    %2630 = vmatprep.subr.mxu0 0.0
    %2631 = vmatpush2.msra.mxu0 0.0
    %2632 = vmatprep.subr.mxu0 0.0
    %2633 = vmatpush2.msra.mxu0 0.0
    %2634 = vmatprep.subr.mxu0 0.0
    %2635 = vmatpush2.msra.mxu0 0.0
    %2636 = vmatprep.subr.mxu0 0.0
    %2637 = vmatpush2.msra.mxu0 0.0
    %2638 = vmatprep.subr.mxu0 0.0
    %2639 = vmatpush2.msra.mxu0 0.0
    %2640 = vmatprep.subr.mxu0 0.0
    %2641 = vmatpush2.msra.mxu0 0.0
    %2642 = vmatprep.subr.mxu0 0.0
    %2643 = vmatpush2.msra.mxu0 0.0
    %2644 = vmatprep.subr.mxu0 0.0
    %2645 = vmatpush2.msra.mxu0 0.0
    %2646 = vmatprep.subr.mxu0 0.0
    %2647 = vmatpush2.msra.mxu0 0.0
    %2648 = vmatprep.subr.mxu0 0.0
    %2649 = vmatpush2.msra.mxu0 0.0
    %2650 = vmatprep.subr.mxu0 0.0
    %2651 = vmatpush2.msra.mxu0 0.0
    %2652 = vmatprep.subr.mxu0 0.0
    %2653 = vmatpush2.msra.mxu0 0.0
    %2654 = vmatprep.subr.mxu0 0.0
    %2655 = vmatpush2.msra.mxu0 0.0
    %2656 = vmatprep.subr.mxu0 0.0
    %2657 = vmatpush2.msra.mxu0 0.0
    %2658 = vmatprep.mubr.f32.mxu0 0.0
    %2659 = vmatmul.mubr.f32.gmra.mxu0 %v2592
    %v2660 = vpop.f32.mrf.mxu0
    %v2661 = vadd.f32 %v130, %v2660
    %v2662 = vpop.f32.mrf.mxu0
    %2663 = vdwg.mxu0
    %vm2664 = vcmask 1024
    %2665 = vst.msk [vmem:[%s3] sm:$0x3] %vm2664, %v2661
    // Predicated region
    $region26: #{predictor_forward.1} parent=1 // pred_check
      _
    $region27: #{predictor_forward.1} parent=1 // pred_check_branch
      %2667 = sbr.rel (0) target = $region29
    $region28: #{predictor_forward.1} parent=1 // pred_region
      _
    $region29: #{predictor_forward.1} parent=1 // pred_fallthru
      _
    // Predicated region
    $region30: #{predictor_forward.1} parent=1 // pred_check
      _
    $region31: #{predictor_forward.1} parent=1 // pred_check_branch
      %2669 = sbr.rel (0) target = $region33
    $region32: #{predictor_forward.1} parent=1 // pred_region
      _
    $region33: #{predictor_forward.1} parent=1 // pred_fallthru
      _
    %2670 = vsyncpa [#allocation4], 1
    %2671 = vsyncpa [#allocation6], 1

</llo_original>
